<compile_context>
chip_gen: v7x
topology: tpu7x:2x2x1
jax: 0.10.0
libtpu: 0.0.40
codegen_flags: <defaults>
</compile_context>

<pallas_src>
import functools

import jax
import jax.numpy as jnp
from jax.experimental import pallas as pl
from jax.experimental.pallas import tpu as pltpu


# ----------------------------------------------------------------------------
# Fused Pallas kernel
# ----------------------------------------------------------------------------
def fused_cnn_kernel(xb_ref, w1_ref, b1_ref, w2_ref, b2_ref,
                     wf1_ref, bf1_ref, wf2_ref, bf2_ref,
                     o_ref, c1_ref, c2_ref, flat_ref, *, B, H, W):
    """Row layout: spatial row index = b*H*W + h*W + w, channels on lanes.

      xb_ref   [L1w, 108]   input im2col slab: col (j*9 + ky*3 + kx)*Cin + cin
                            = x[b, h+j? ...] — precisely x2d[r + j + ky*W + kx, cin]
                            (j = kx-shift copy index for conv2)
      w1_ref   [108, 96]    block-diag conv1 weight (3 copies of [36, 32])
      b1_ref   [1, 96]      conv1 bias tiled 3x
      w2_ref   [3, 96, 64]  conv2 weight grouped by ky, rows ordered (kx, cin)
      b2_ref   [1, 64]
      wf1_ref  [2304, 128]  fc1 weight, rows pre-permuted to (ho, wo, c)
      bf1_ref  [1, 128]
      wf2_ref  [128, Npad]  fc2 weight, columns zero-padded to 128 multiple
      bf2_ref  [1, Npad]
      o_ref    [B, Npad]
      c1_ref   [L1w, 96]    scratch: conv1 output incl. kx-shifted copies
      c2_ref   [L2, 64]     scratch: conv2 output (row pitch W)
      flat_ref [B, 2304]    scratch: pooled activations in fc1 input order
    """
    HW = H * W
    HO2, WO2 = H - 4, W - 4          # conv2 valid output extent
    PH, PW = HO2 // 2, WO2 // 2      # pooled extent
    C2 = w2_ref.shape[-1]
    L2 = (B - 1) * HW + (HO2 - 1) * W + WO2   # conv2 rows needed by the pool

    # ---- conv1 (+ReLU): one K=108 MXU matmul ---------------------------------
    # Produces, at row r, the three kx-shifted copies of the conv1 output that
    # conv2's taps need: c1[r, kx*32 + c] = relu(conv1(r + kx))[c].
    c1_ref[...] = jnp.maximum(
        jnp.dot(xb_ref[...], w1_ref[...], preferred_element_type=jnp.float32)
        + b1_ref[...], 0.0)

    # ---- conv2 (+ReLU): three ky-grouped K=96 matmuls, accumulated in VMEM ----
    c2_ref[...] = jnp.dot(c1_ref[0:L2, :], w2_ref[0],
                          preferred_element_type=jnp.float32)
    c2_ref[...] += jnp.dot(c1_ref[W:W + L2, :], w2_ref[1],
                           preferred_element_type=jnp.float32)
    c2_ref[...] += jnp.dot(c1_ref[2 * W:2 * W + L2, :], w2_ref[2],
                           preferred_element_type=jnp.float32)
    c2_ref[...] = jnp.maximum(c2_ref[...] + b2_ref[...], 0.0)

    # ---- fused 2x2 max-pool + flatten -----------------------------------------
    # Pooled value (ho, wo) comes from conv2 rows base + 2*W*ho + 2*wo +
    # {0, 1, W, W+1}: take the 4-tap max once at slab level, then scatter the
    # (ho, wo) rows into the flattened fc1 layout (fc1 weight rows were
    # permuted offline to match this (ho, wo, c) order).
    LP = 2 * W * (PH - 1) + 2 * (PW - 1) + 1
    for b in range(B):
        base = b * HW
        m4 = jnp.maximum(
            jnp.maximum(c2_ref[base:base + LP, :],
                        c2_ref[base + 1:base + 1 + LP, :]),
            jnp.maximum(c2_ref[base + W:base + W + LP, :],
                        c2_ref[base + W + 1:base + W + 1 + LP, :]))
        for ho in range(PH):
            row = jnp.concatenate(
                [m4[2 * W * ho + 2 * wo:2 * W * ho + 2 * wo + 1, :]
                 for wo in range(PW)],
                axis=-1)                                      # [1, PW*C2]
            flat_ref[b:b + 1, ho * PW * C2:(ho + 1) * PW * C2] = row

    # ---- fc1 (+ReLU) and fc2 (lane-dense padded output) -----------------------
    h = jnp.maximum(
        jnp.dot(flat_ref[...], wf1_ref[...],
                preferred_element_type=jnp.float32) + bf1_ref[...], 0.0)
    o_ref[...] = (jnp.dot(h, wf2_ref[...],
                          preferred_element_type=jnp.float32)
                  + bf2_ref[...]).astype(o_ref.dtype)


# ----------------------------------------------------------------------------
# Wrapper
# ----------------------------------------------------------------------------
_VMEM = pl.BlockSpec(memory_space=pltpu.MemorySpace.VMEM)


@functools.partial(jax.jit, static_argnames=("num_classes",))
def simple_cnn_forward(prepared, x_nchw, *, num_classes):
    B, Cin, H, W = x_nchw.shape
    HW = H * W
    HO2, WO2 = H - 4, W - 4
    PH, PW = HO2 // 2, WO2 // 2
    C1, C2 = 32, 64
    L2 = (B - 1) * HW + (HO2 - 1) * W + WO2
    L1w = L2 + 2 * W                      # conv1 rows (incl. shifted copies)
    n_pad = prepared["wf2"].shape[-1]

    # NCHW -> NHWC, flatten spatially, then the 27-column im2col slab
    # (9 conv1 taps x 3 kx-shift copies for conv2), all one XLA fusion.
    x2d = jnp.transpose(x_nchw, (0, 2, 3, 1)).reshape(B * HW, Cin)
    pieces = [x2d[j + ky * W + kx: j + ky * W + kx + L1w, :]
              for j in range(3) for ky in range(3) for kx in range(3)]
    x_big = jnp.concatenate(pieces, axis=-1)          # [L1w, 27*Cin]

    kern = functools.partial(fused_cnn_kernel, B=B, H=H, W=W)
    out = pl.pallas_call(
        kern,
        out_shape=jax.ShapeDtypeStruct((B, n_pad), jnp.float32),
        in_specs=[_VMEM] * 9,
        out_specs=_VMEM,
        scratch_shapes=[
            pltpu.VMEM((L1w, 3 * C1), jnp.float32),      # conv1 output (3 copies)
            pltpu.VMEM((L2, C2), jnp.float32),           # conv2 output
            pltpu.VMEM((B, PH * PW * C2), jnp.float32),  # flattened fc1 input
        ],
    )(x_big, prepared["w1"], prepared["b1"], prepared["w2"], prepared["b2"],
      prepared["wf1"], prepared["bf1"], prepared["wf2"], prepared["bf2"])
    return out[:, :num_classes]


# ----------------------------------------------------------------------------
# Parameter setup (all layout transforms folded offline, once)
# ----------------------------------------------------------------------------
def init_params(key, input_channels, num_classes):
    ks = jax.random.split(key, 8)
    s = 0.05
    return {
        "conv1_w": s * jax.random.normal(ks[0], (32, input_channels, 3, 3), jnp.float32),
        "conv1_b": s * jax.random.normal(ks[1], (32,), jnp.float32),
        "conv2_w": s * jax.random.normal(ks[2], (64, 32, 3, 3), jnp.float32),
        "conv2_b": s * jax.random.normal(ks[3], (64,), jnp.float32),
        "fc1_w": s * jax.random.normal(ks[4], (128, 64 * 6 * 6), jnp.float32),  # torch [out,in]
        "fc1_b": s * jax.random.normal(ks[5], (128,), jnp.float32),
        "fc2_w": s * jax.random.normal(ks[6], (num_classes, 128), jnp.float32),
        "fc2_b": s * jax.random.normal(ks[7], (num_classes,), jnp.float32),
    }


def prepare_params(params, num_classes):
    cin = params["conv1_w"].shape[1]
    n_pad = ((num_classes + 127) // 128) * 128
    # conv1: OIHW -> [(ky,kx,cin), cout], then 3x block-diag so a single matmul
    # also emits the kx-shifted copies conv2 needs (K = 27*cin, N = 96).
    w1_flat = jnp.transpose(params["conv1_w"], (2, 3, 1, 0)).reshape(9 * cin, 32)
    w1_big = jnp.zeros((3 * 9 * cin, 3 * 32), jnp.float32)
    for j in range(3):
        w1_big = w1_big.at[j * 9 * cin:(j + 1) * 9 * cin,
                           j * 32:(j + 1) * 32].set(w1_flat)
    b1w = jnp.tile(params["conv1_b"].reshape(1, 32), (1, 3))
    # conv2: OIHW -> ky-grouped [(kx, cin), cout] = [3, 96, 64].
    w2g = jnp.transpose(params["conv2_w"], (2, 3, 1, 0)).reshape(3, 3 * 32, 64)
    # fc1: torch column order is (c, ho, wo); permute rows to (ho, wo, c) so the
    # kernel can flatten the pooled NHWC activations directly.
    wf1 = jnp.transpose(params["fc1_w"].reshape(128, 64, 6, 6),
                        (2, 3, 1, 0)).reshape(64 * 6 * 6, 128)
    # fc2: transpose + zero-pad columns to a lane-dense multiple of 128.
    wf2 = jnp.zeros((128, n_pad), jnp.float32).at[:, :num_classes].set(
        params["fc2_w"].T)
    bf2 = jnp.zeros((1, n_pad), jnp.float32).at[:, :num_classes].set(
        params["fc2_b"])
    return {
        "w1": w1_big, "b1": b1w,
        "w2": w2g, "b2": params["conv2_b"].reshape(1, 64),
        "wf1": wf1, "bf1": params["fc1_b"].reshape(1, 128),
        "wf2": wf2, "bf2": bf2,
    }


# ----------------------------------------------------------------------------
# Pure-JAX reference (for correctness check only)
# ----------------------------------------------------------------------------
def reference_forward(params, x_nchw):
    dn = jax.lax.conv_dimension_numbers(x_nchw.shape, params["conv1_w"].shape,
                                        ("NCHW", "OIHW", "NCHW"))
    x = jax.lax.conv_general_dilated(x_nchw, params["conv1_w"], (1, 1), "VALID",
                                     dimension_numbers=dn)
    x = jax.nn.relu(x + params["conv1_b"][None, :, None, None])
    dn = jax.lax.conv_dimension_numbers(x.shape, params["conv2_w"].shape,
                                        ("NCHW", "OIHW", "NCHW"))
    x = jax.lax.conv_general_dilated(x, params["conv2_w"], (1, 1), "VALID",
                                     dimension_numbers=dn)
    x = jax.nn.relu(x + params["conv2_b"][None, :, None, None])
    x = jax.lax.reduce_window(x, -jnp.inf, jax.lax.max,
                              (1, 1, 2, 2), (1, 1, 2, 2), "VALID")
    x = x.reshape(x.shape[0], -1)
    x = jax.nn.relu(x @ params["fc1_w"].T + params["fc1_b"])
    x = x @ params["fc2_w"].T + params["fc2_b"]
    return x


# ----------------------------------------------------------------------------
# Main
# ----------------------------------------------------------------------------
if __name__ == "__main__":
    input_channels = 4
    num_classes = 10
    batch = 2
    spatial = 16  # implied by fc1 input size 64*6*6

    key = jax.random.PRNGKey(0)
    pkey, xkey = jax.random.split(key)
    params = init_params(pkey, input_channels, num_classes)
    prepared = prepare_params(params, num_classes)
    x = jax.random.normal(xkey, (batch, input_channels, spatial, spatial),
                          jnp.float32)

    out = simple_cnn_forward(prepared, x, num_classes=num_classes)
    out = jax.block_until_ready(out)

    ref = jax.block_until_ready(reference_forward(params, x))
    assert out.shape == (batch, num_classes), out.shape
    assert jnp.allclose(out, ref, rtol=1e-4, atol=1e-3), (
        f"max abs diff {jnp.max(jnp.abs(out - ref))}")

    print("KERNEL_OK")
</pallas_src>

<mosaic_0001>
module attributes {stable_mosaic.version = 11 : i64} {
  func.func @fused_cnn_kernel(%arg0: memref<476x108xf32, #tpu.memory_space<vmem>>, %arg1: memref<108x96xf32, #tpu.memory_space<vmem>>, %arg2: memref<1x96xf32, #tpu.memory_space<vmem>>, %arg3: memref<3x96x64xf32, #tpu.memory_space<vmem>>, %arg4: memref<1x64xf32, #tpu.memory_space<vmem>>, %arg5: memref<2304x128xf32, #tpu.memory_space<vmem>>, %arg6: memref<1x128xf32, #tpu.memory_space<vmem>>, %arg7: memref<128x128xf32, #tpu.memory_space<vmem>>, %arg8: memref<1x128xf32, #tpu.memory_space<vmem>>, %arg9: memref<2x128xf32, #tpu.memory_space<vmem>>, %arg10: memref<476x96xf32, #tpu.memory_space<vmem>>, %arg11: memref<444x64xf32, #tpu.memory_space<vmem>>, %arg12: memref<2x2304xf32, #tpu.memory_space<vmem>>) attributes {dimension_semantics = [], scalar_prefetch = 0 : i64, scratch_operands = 3 : i64, tpu.core_type = #tpu.core_type<tc>} {
    %c0 = arith.constant 0 : index
    %c0_0 = arith.constant 0 : index
    %0 = vector.load %arg0[%c0, %c0_0] : memref<476x108xf32, #tpu.memory_space<vmem>>, vector<476x108xf32>
    %c0_1 = arith.constant 0 : index
    %c0_2 = arith.constant 0 : index
    %1 = vector.load %arg1[%c0_1, %c0_2] : memref<108x96xf32, #tpu.memory_space<vmem>>, vector<108x96xf32>
    %cst = arith.constant dense<0.000000e+00> : vector<476x96xf32>
    %2 = tpu.matmul %0, %1, %cst {dimension_numbers = #tpu.dot_dimension_numbers<[1], [0], [0], [1], [0, 0, 1, 1], [], []>} : vector<476x108xf32>, vector<108x96xf32>, vector<476x96xf32> -> vector<476x96xf32>
    %c0_3 = arith.constant 0 : index
    %c0_4 = arith.constant 0 : index
    %3 = vector.load %arg2[%c0_3, %c0_4] : memref<1x96xf32, #tpu.memory_space<vmem>>, vector<1x96xf32>
    %4 = vector.broadcast %3 : vector<1x96xf32> to vector<476x96xf32>
    %5 = arith.addf %2, %4 : vector<476x96xf32>
    %cst_5 = arith.constant 0.000000e+00 : f32
    %6 = vector.broadcast %cst_5 : f32 to vector<476x96xf32>
    %7 = arith.maximumf %5, %6 : vector<476x96xf32>
    %c0_6 = arith.constant 0 : index
    %c0_7 = arith.constant 0 : index
    %8 = vector.load %arg10[%c0_6, %c0_7] : memref<476x96xf32, #tpu.memory_space<vmem>>, vector<476x96xf32>
    tpu.vector_store %arg10[%c0_6, %c0_7], %7 {strides = array<i32>} : memref<476x96xf32, #tpu.memory_space<vmem>>, vector<476x96xf32>,
    %c0_8 = arith.constant 0 : index
    %c0_9 = arith.constant 0 : index
    %9 = vector.load %arg10[%c0_8, %c0_9] : memref<476x96xf32, #tpu.memory_space<vmem>>, vector<444x96xf32>
    %c0_10 = arith.constant 0 : index
    %c0_11 = arith.constant 0 : index
    %c0_12 = arith.constant 0 : index
    %10 = vector.load %arg3[%c0_10, %c0_11, %c0_12] : memref<3x96x64xf32, #tpu.memory_space<vmem>>, vector<1x96x64xf32>
    %11 = vector.shape_cast %10 : vector<1x96x64xf32> to vector<96x64xf32>
    %cst_13 = arith.constant dense<0.000000e+00> : vector<444x64xf32>
    %12 = tpu.matmul %9, %11, %cst_13 {dimension_numbers = #tpu.dot_dimension_numbers<[1], [0], [0], [1], [0, 0, 1, 1], [], []>} : vector<444x96xf32>, vector<96x64xf32>, vector<444x64xf32> -> vector<444x64xf32>
    %c0_14 = arith.constant 0 : index
    %c0_15 = arith.constant 0 : index
    %13 = vector.load %arg11[%c0_14, %c0_15] : memref<444x64xf32, #tpu.memory_space<vmem>>, vector<444x64xf32>
    tpu.vector_store %arg11[%c0_14, %c0_15], %12 {strides = array<i32>} : memref<444x64xf32, #tpu.memory_space<vmem>>, vector<444x64xf32>,
    %c0_16 = arith.constant 0 : index
    %c0_17 = arith.constant 0 : index
    %14 = vector.load %arg11[%c0_16, %c0_17] : memref<444x64xf32, #tpu.memory_space<vmem>>, vector<444x64xf32>
    %c16 = arith.constant 16 : index
    %c0_18 = arith.constant 0 : index
    %15 = vector.load %arg10[%c16, %c0_18] : memref<476x96xf32, #tpu.memory_space<vmem>>, vector<444x96xf32>
    %c1 = arith.constant 1 : index
    %c0_19 = arith.constant 0 : index
    %c0_20 = arith.constant 0 : index
    %16 = vector.load %arg3[%c1, %c0_19, %c0_20] : memref<3x96x64xf32, #tpu.memory_space<vmem>>, vector<1x96x64xf32>
    %17 = vector.shape_cast %16 : vector<1x96x64xf32> to vector<96x64xf32>
    %cst_21 = arith.constant dense<0.000000e+00> : vector<444x64xf32>
    %18 = tpu.matmul %15, %17, %cst_21 {dimension_numbers = #tpu.dot_dimension_numbers<[1], [0], [0], [1], [0, 0, 1, 1], [], []>} : vector<444x96xf32>, vector<96x64xf32>, vector<444x64xf32> -> vector<444x64xf32>
    %19 = arith.addf %14, %18 : vector<444x64xf32>
    %c0_22 = arith.constant 0 : index
    %c0_23 = arith.constant 0 : index
    %20 = vector.load %arg11[%c0_22, %c0_23] : memref<444x64xf32, #tpu.memory_space<vmem>>, vector<444x64xf32>
    tpu.vector_store %arg11[%c0_22, %c0_23], %19 {strides = array<i32>} : memref<444x64xf32, #tpu.memory_space<vmem>>, vector<444x64xf32>,
    %c0_24 = arith.constant 0 : index
    %c0_25 = arith.constant 0 : index
    %21 = vector.load %arg11[%c0_24, %c0_25] : memref<444x64xf32, #tpu.memory_space<vmem>>, vector<444x64xf32>
    %c32 = arith.constant 32 : index
    %c0_26 = arith.constant 0 : index
    %22 = vector.load %arg10[%c32, %c0_26] : memref<476x96xf32, #tpu.memory_space<vmem>>, vector<444x96xf32>
    %c2 = arith.constant 2 : index
    %c0_27 = arith.constant 0 : index
    %c0_28 = arith.constant 0 : index
    %23 = vector.load %arg3[%c2, %c0_27, %c0_28] : memref<3x96x64xf32, #tpu.memory_space<vmem>>, vector<1x96x64xf32>
    %24 = vector.shape_cast %23 : vector<1x96x64xf32> to vector<96x64xf32>
    %cst_29 = arith.constant dense<0.000000e+00> : vector<444x64xf32>
    %25 = tpu.matmul %22, %24, %cst_29 {dimension_numbers = #tpu.dot_dimension_numbers<[1], [0], [0], [1], [0, 0, 1, 1], [], []>} : vector<444x96xf32>, vector<96x64xf32>, vector<444x64xf32> -> vector<444x64xf32>
    %26 = arith.addf %21, %25 : vector<444x64xf32>
    %c0_30 = arith.constant 0 : index
    %c0_31 = arith.constant 0 : index
    %27 = vector.load %arg11[%c0_30, %c0_31] : memref<444x64xf32, #tpu.memory_space<vmem>>, vector<444x64xf32>
    tpu.vector_store %arg11[%c0_30, %c0_31], %26 {strides = array<i32>} : memref<444x64xf32, #tpu.memory_space<vmem>>, vector<444x64xf32>,
    %c0_32 = arith.constant 0 : index
    %c0_33 = arith.constant 0 : index
    %28 = vector.load %arg11[%c0_32, %c0_33] : memref<444x64xf32, #tpu.memory_space<vmem>>, vector<444x64xf32>
    %c0_34 = arith.constant 0 : index
    %c0_35 = arith.constant 0 : index
    %29 = vector.load %arg4[%c0_34, %c0_35] : memref<1x64xf32, #tpu.memory_space<vmem>>, vector<1x64xf32>
    %30 = vector.broadcast %29 : vector<1x64xf32> to vector<444x64xf32>
    %31 = arith.addf %28, %30 : vector<444x64xf32>
    %cst_36 = arith.constant 0.000000e+00 : f32
    %32 = vector.broadcast %cst_36 : f32 to vector<444x64xf32>
    %33 = arith.maximumf %31, %32 : vector<444x64xf32>
    %c0_37 = arith.constant 0 : index
    %c0_38 = arith.constant 0 : index
    %34 = vector.load %arg11[%c0_37, %c0_38] : memref<444x64xf32, #tpu.memory_space<vmem>>, vector<444x64xf32>
    tpu.vector_store %arg11[%c0_37, %c0_38], %33 {strides = array<i32>} : memref<444x64xf32, #tpu.memory_space<vmem>>, vector<444x64xf32>,
    %c0_39 = arith.constant 0 : index
    %c0_40 = arith.constant 0 : index
    %35 = vector.load %arg11[%c0_39, %c0_40] : memref<444x64xf32, #tpu.memory_space<vmem>>, vector<171x64xf32>
    %c1_41 = arith.constant 1 : index
    %c0_42 = arith.constant 0 : index
    %36 = vector.load %arg11[%c1_41, %c0_42] : memref<444x64xf32, #tpu.memory_space<vmem>>, vector<171x64xf32>
    %37 = arith.maximumf %35, %36 : vector<171x64xf32>
    %c16_43 = arith.constant 16 : index
    %c0_44 = arith.constant 0 : index
    %38 = vector.load %arg11[%c16_43, %c0_44] : memref<444x64xf32, #tpu.memory_space<vmem>>, vector<171x64xf32>
    %c17 = arith.constant 17 : index
    %c0_45 = arith.constant 0 : index
    %39 = vector.load %arg11[%c17, %c0_45] : memref<444x64xf32, #tpu.memory_space<vmem>>, vector<171x64xf32>
    %40 = arith.maximumf %38, %39 : vector<171x64xf32>
    %41 = arith.maximumf %37, %40 : vector<171x64xf32>
    %42 = vector.extract_strided_slice %41 {offsets = [0, 0], sizes = [1, 64], strides = [1, 1]} : vector<171x64xf32> to vector<1x64xf32>
    %43 = vector.extract_strided_slice %41 {offsets = [2, 0], sizes = [1, 64], strides = [1, 1]} : vector<171x64xf32> to vector<1x64xf32>
    %44 = vector.extract_strided_slice %41 {offsets = [4, 0], sizes = [1, 64], strides = [1, 1]} : vector<171x64xf32> to vector<1x64xf32>
    %45 = vector.extract_strided_slice %41 {offsets = [6, 0], sizes = [1, 64], strides = [1, 1]} : vector<171x64xf32> to vector<1x64xf32>
    %46 = vector.extract_strided_slice %41 {offsets = [8, 0], sizes = [1, 64], strides = [1, 1]} : vector<171x64xf32> to vector<1x64xf32>
    %47 = vector.extract_strided_slice %41 {offsets = [10, 0], sizes = [1, 64], strides = [1, 1]} : vector<171x64xf32> to vector<1x64xf32>
    %48 = tpu.concatenate %42, %43, %44, %45, %46, %47 in 1 : vector<1x64xf32>, vector<1x64xf32>, vector<1x64xf32>, vector<1x64xf32>, vector<1x64xf32>, vector<1x64xf32> -> vector<1x384xf32>
    %c0_46 = arith.constant 0 : index
    %c0_47 = arith.constant 0 : index
    %49 = vector.load %arg12[%c0_46, %c0_47] : memref<2x2304xf32, #tpu.memory_space<vmem>>, vector<1x384xf32>
    tpu.vector_store %arg12[%c0_46, %c0_47], %48 {strides = array<i32>} : memref<2x2304xf32, #tpu.memory_space<vmem>>, vector<1x384xf32>,
    %50 = vector.extract_strided_slice %41 {offsets = [32, 0], sizes = [1, 64], strides = [1, 1]} : vector<171x64xf32> to vector<1x64xf32>
    %51 = vector.extract_strided_slice %41 {offsets = [34, 0], sizes = [1, 64], strides = [1, 1]} : vector<171x64xf32> to vector<1x64xf32>
    %52 = vector.extract_strided_slice %41 {offsets = [36, 0], sizes = [1, 64], strides = [1, 1]} : vector<171x64xf32> to vector<1x64xf32>
    %53 = vector.extract_strided_slice %41 {offsets = [38, 0], sizes = [1, 64], strides = [1, 1]} : vector<171x64xf32> to vector<1x64xf32>
    %54 = vector.extract_strided_slice %41 {offsets = [40, 0], sizes = [1, 64], strides = [1, 1]} : vector<171x64xf32> to vector<1x64xf32>
    %55 = vector.extract_strided_slice %41 {offsets = [42, 0], sizes = [1, 64], strides = [1, 1]} : vector<171x64xf32> to vector<1x64xf32>
    %56 = tpu.concatenate %50, %51, %52, %53, %54, %55 in 1 : vector<1x64xf32>, vector<1x64xf32>, vector<1x64xf32>, vector<1x64xf32>, vector<1x64xf32>, vector<1x64xf32> -> vector<1x384xf32>
    %c0_48 = arith.constant 0 : index
    %c384 = arith.constant 384 : index
    %57 = vector.load %arg12[%c0_48, %c384] : memref<2x2304xf32, #tpu.memory_space<vmem>>, vector<1x384xf32>
    tpu.vector_store %arg12[%c0_48, %c384], %56 {strides = array<i32>} : memref<2x2304xf32, #tpu.memory_space<vmem>>, vector<1x384xf32>,
    %58 = vector.extract_strided_slice %41 {offsets = [64, 0], sizes = [1, 64], strides = [1, 1]} : vector<171x64xf32> to vector<1x64xf32>
    %59 = vector.extract_strided_slice %41 {offsets = [66, 0], sizes = [1, 64], strides = [1, 1]} : vector<171x64xf32> to vector<1x64xf32>
    %60 = vector.extract_strided_slice %41 {offsets = [68, 0], sizes = [1, 64], strides = [1, 1]} : vector<171x64xf32> to vector<1x64xf32>
    %61 = vector.extract_strided_slice %41 {offsets = [70, 0], sizes = [1, 64], strides = [1, 1]} : vector<171x64xf32> to vector<1x64xf32>
    %62 = vector.extract_strided_slice %41 {offsets = [72, 0], sizes = [1, 64], strides = [1, 1]} : vector<171x64xf32> to vector<1x64xf32>
    %63 = vector.extract_strided_slice %41 {offsets = [74, 0], sizes = [1, 64], strides = [1, 1]} : vector<171x64xf32> to vector<1x64xf32>
    %64 = tpu.concatenate %58, %59, %60, %61, %62, %63 in 1 : vector<1x64xf32>, vector<1x64xf32>, vector<1x64xf32>, vector<1x64xf32>, vector<1x64xf32>, vector<1x64xf32> -> vector<1x384xf32>
    %c0_49 = arith.constant 0 : index
    %c768 = arith.constant 768 : index
    %65 = vector.load %arg12[%c0_49, %c768] : memref<2x2304xf32, #tpu.memory_space<vmem>>, vector<1x384xf32>
    tpu.vector_store %arg12[%c0_49, %c768], %64 {strides = array<i32>} : memref<2x2304xf32, #tpu.memory_space<vmem>>, vector<1x384xf32>,
    %66 = vector.extract_strided_slice %41 {offsets = [96, 0], sizes = [1, 64], strides = [1, 1]} : vector<171x64xf32> to vector<1x64xf32>
    %67 = vector.extract_strided_slice %41 {offsets = [98, 0], sizes = [1, 64], strides = [1, 1]} : vector<171x64xf32> to vector<1x64xf32>
    %68 = vector.extract_strided_slice %41 {offsets = [100, 0], sizes = [1, 64], strides = [1, 1]} : vector<171x64xf32> to vector<1x64xf32>
    %69 = vector.extract_strided_slice %41 {offsets = [102, 0], sizes = [1, 64], strides = [1, 1]} : vector<171x64xf32> to vector<1x64xf32>
    %70 = vector.extract_strided_slice %41 {offsets = [104, 0], sizes = [1, 64], strides = [1, 1]} : vector<171x64xf32> to vector<1x64xf32>
    %71 = vector.extract_strided_slice %41 {offsets = [106, 0], sizes = [1, 64], strides = [1, 1]} : vector<171x64xf32> to vector<1x64xf32>
    %72 = tpu.concatenate %66, %67, %68, %69, %70, %71 in 1 : vector<1x64xf32>, vector<1x64xf32>, vector<1x64xf32>, vector<1x64xf32>, vector<1x64xf32>, vector<1x64xf32> -> vector<1x384xf32>
    %c0_50 = arith.constant 0 : index
    %c1152 = arith.constant 1152 : index
    %73 = vector.load %arg12[%c0_50, %c1152] : memref<2x2304xf32, #tpu.memory_space<vmem>>, vector<1x384xf32>
    tpu.vector_store %arg12[%c0_50, %c1152], %72 {strides = array<i32>} : memref<2x2304xf32, #tpu.memory_space<vmem>>, vector<1x384xf32>,
    %74 = vector.extract_strided_slice %41 {offsets = [128, 0], sizes = [1, 64], strides = [1, 1]} : vector<171x64xf32> to vector<1x64xf32>
    %75 = vector.extract_strided_slice %41 {offsets = [130, 0], sizes = [1, 64], strides = [1, 1]} : vector<171x64xf32> to vector<1x64xf32>
    %76 = vector.extract_strided_slice %41 {offsets = [132, 0], sizes = [1, 64], strides = [1, 1]} : vector<171x64xf32> to vector<1x64xf32>
    %77 = vector.extract_strided_slice %41 {offsets = [134, 0], sizes = [1, 64], strides = [1, 1]} : vector<171x64xf32> to vector<1x64xf32>
    %78 = vector.extract_strided_slice %41 {offsets = [136, 0], sizes = [1, 64], strides = [1, 1]} : vector<171x64xf32> to vector<1x64xf32>
    %79 = vector.extract_strided_slice %41 {offsets = [138, 0], sizes = [1, 64], strides = [1, 1]} : vector<171x64xf32> to vector<1x64xf32>
    %80 = tpu.concatenate %74, %75, %76, %77, %78, %79 in 1 : vector<1x64xf32>, vector<1x64xf32>, vector<1x64xf32>, vector<1x64xf32>, vector<1x64xf32>, vector<1x64xf32> -> vector<1x384xf32>
    %c0_51 = arith.constant 0 : index
    %c1536 = arith.constant 1536 : index
    %81 = vector.load %arg12[%c0_51, %c1536] : memref<2x2304xf32, #tpu.memory_space<vmem>>, vector<1x384xf32>
    tpu.vector_store %arg12[%c0_51, %c1536], %80 {strides = array<i32>} : memref<2x2304xf32, #tpu.memory_space<vmem>>, vector<1x384xf32>,
    %82 = vector.extract_strided_slice %41 {offsets = [160, 0], sizes = [1, 64], strides = [1, 1]} : vector<171x64xf32> to vector<1x64xf32>
    %83 = vector.extract_strided_slice %41 {offsets = [162, 0], sizes = [1, 64], strides = [1, 1]} : vector<171x64xf32> to vector<1x64xf32>
    %84 = vector.extract_strided_slice %41 {offsets = [164, 0], sizes = [1, 64], strides = [1, 1]} : vector<171x64xf32> to vector<1x64xf32>
    %85 = vector.extract_strided_slice %41 {offsets = [166, 0], sizes = [1, 64], strides = [1, 1]} : vector<171x64xf32> to vector<1x64xf32>
    %86 = vector.extract_strided_slice %41 {offsets = [168, 0], sizes = [1, 64], strides = [1, 1]} : vector<171x64xf32> to vector<1x64xf32>
    %87 = vector.extract_strided_slice %41 {offsets = [170, 0], sizes = [1, 64], strides = [1, 1]} : vector<171x64xf32> to vector<1x64xf32>
    %88 = tpu.concatenate %82, %83, %84, %85, %86, %87 in 1 : vector<1x64xf32>, vector<1x64xf32>, vector<1x64xf32>, vector<1x64xf32>, vector<1x64xf32>, vector<1x64xf32> -> vector<1x384xf32>
    %c0_52 = arith.constant 0 : index
    %c1920 = arith.constant 1920 : index
    %89 = vector.load %arg12[%c0_52, %c1920] : memref<2x2304xf32, #tpu.memory_space<vmem>>, vector<1x384xf32>
    tpu.vector_store %arg12[%c0_52, %c1920], %88 {strides = array<i32>} : memref<2x2304xf32, #tpu.memory_space<vmem>>, vector<1x384xf32>,
    %c256 = arith.constant 256 : index
    %c0_53 = arith.constant 0 : index
    %90 = vector.load %arg11[%c256, %c0_53] : memref<444x64xf32, #tpu.memory_space<vmem>>, vector<171x64xf32>
    %c257 = arith.constant 257 : index
    %c0_54 = arith.constant 0 : index
    %91 = vector.load %arg11[%c257, %c0_54] : memref<444x64xf32, #tpu.memory_space<vmem>>, vector<171x64xf32>
    %92 = arith.maximumf %90, %91 : vector<171x64xf32>
    %c272 = arith.constant 272 : index
    %c0_55 = arith.constant 0 : index
    %93 = vector.load %arg11[%c272, %c0_55] : memref<444x64xf32, #tpu.memory_space<vmem>>, vector<171x64xf32>
    %c273 = arith.constant 273 : index
    %c0_56 = arith.constant 0 : index
    %94 = vector.load %arg11[%c273, %c0_56] : memref<444x64xf32, #tpu.memory_space<vmem>>, vector<171x64xf32>
    %95 = arith.maximumf %93, %94 : vector<171x64xf32>
    %96 = arith.maximumf %92, %95 : vector<171x64xf32>
    %97 = vector.extract_strided_slice %96 {offsets = [0, 0], sizes = [1, 64], strides = [1, 1]} : vector<171x64xf32> to vector<1x64xf32>
    %98 = vector.extract_strided_slice %96 {offsets = [2, 0], sizes = [1, 64], strides = [1, 1]} : vector<171x64xf32> to vector<1x64xf32>
    %99 = vector.extract_strided_slice %96 {offsets = [4, 0], sizes = [1, 64], strides = [1, 1]} : vector<171x64xf32> to vector<1x64xf32>
    %100 = vector.extract_strided_slice %96 {offsets = [6, 0], sizes = [1, 64], strides = [1, 1]} : vector<171x64xf32> to vector<1x64xf32>
    %101 = vector.extract_strided_slice %96 {offsets = [8, 0], sizes = [1, 64], strides = [1, 1]} : vector<171x64xf32> to vector<1x64xf32>
    %102 = vector.extract_strided_slice %96 {offsets = [10, 0], sizes = [1, 64], strides = [1, 1]} : vector<171x64xf32> to vector<1x64xf32>
    %103 = tpu.concatenate %97, %98, %99, %100, %101, %102 in 1 : vector<1x64xf32>, vector<1x64xf32>, vector<1x64xf32>, vector<1x64xf32>, vector<1x64xf32>, vector<1x64xf32> -> vector<1x384xf32>
    %c1_57 = arith.constant 1 : index
    %c0_58 = arith.constant 0 : index
    %104 = vector.load %arg12[%c1_57, %c0_58] : memref<2x2304xf32, #tpu.memory_space<vmem>>, vector<1x384xf32>
    tpu.vector_store %arg12[%c1_57, %c0_58], %103 {strides = array<i32>} : memref<2x2304xf32, #tpu.memory_space<vmem>>, vector<1x384xf32>,
    %105 = vector.extract_strided_slice %96 {offsets = [32, 0], sizes = [1, 64], strides = [1, 1]} : vector<171x64xf32> to vector<1x64xf32>
    %106 = vector.extract_strided_slice %96 {offsets = [34, 0], sizes = [1, 64], strides = [1, 1]} : vector<171x64xf32> to vector<1x64xf32>
    %107 = vector.extract_strided_slice %96 {offsets = [36, 0], sizes = [1, 64], strides = [1, 1]} : vector<171x64xf32> to vector<1x64xf32>
    %108 = vector.extract_strided_slice %96 {offsets = [38, 0], sizes = [1, 64], strides = [1, 1]} : vector<171x64xf32> to vector<1x64xf32>
    %109 = vector.extract_strided_slice %96 {offsets = [40, 0], sizes = [1, 64], strides = [1, 1]} : vector<171x64xf32> to vector<1x64xf32>
    %110 = vector.extract_strided_slice %96 {offsets = [42, 0], sizes = [1, 64], strides = [1, 1]} : vector<171x64xf32> to vector<1x64xf32>
    %111 = tpu.concatenate %105, %106, %107, %108, %109, %110 in 1 : vector<1x64xf32>, vector<1x64xf32>, vector<1x64xf32>, vector<1x64xf32>, vector<1x64xf32>, vector<1x64xf32> -> vector<1x384xf32>
    %c1_59 = arith.constant 1 : index
    %c384_60 = arith.constant 384 : index
    %112 = vector.load %arg12[%c1_59, %c384_60] : memref<2x2304xf32, #tpu.memory_space<vmem>>, vector<1x384xf32>
    tpu.vector_store %arg12[%c1_59, %c384_60], %111 {strides = array<i32>} : memref<2x2304xf32, #tpu.memory_space<vmem>>, vector<1x384xf32>,
    %113 = vector.extract_strided_slice %96 {offsets = [64, 0], sizes = [1, 64], strides = [1, 1]} : vector<171x64xf32> to vector<1x64xf32>
    %114 = vector.extract_strided_slice %96 {offsets = [66, 0], sizes = [1, 64], strides = [1, 1]} : vector<171x64xf32> to vector<1x64xf32>
    %115 = vector.extract_strided_slice %96 {offsets = [68, 0], sizes = [1, 64], strides = [1, 1]} : vector<171x64xf32> to vector<1x64xf32>
    %116 = vector.extract_strided_slice %96 {offsets = [70, 0], sizes = [1, 64], strides = [1, 1]} : vector<171x64xf32> to vector<1x64xf32>
    %117 = vector.extract_strided_slice %96 {offsets = [72, 0], sizes = [1, 64], strides = [1, 1]} : vector<171x64xf32> to vector<1x64xf32>
    %118 = vector.extract_strided_slice %96 {offsets = [74, 0], sizes = [1, 64], strides = [1, 1]} : vector<171x64xf32> to vector<1x64xf32>
    %119 = tpu.concatenate %113, %114, %115, %116, %117, %118 in 1 : vector<1x64xf32>, vector<1x64xf32>, vector<1x64xf32>, vector<1x64xf32>, vector<1x64xf32>, vector<1x64xf32> -> vector<1x384xf32>
    %c1_61 = arith.constant 1 : index
    %c768_62 = arith.constant 768 : index
    %120 = vector.load %arg12[%c1_61, %c768_62] : memref<2x2304xf32, #tpu.memory_space<vmem>>, vector<1x384xf32>
    tpu.vector_store %arg12[%c1_61, %c768_62], %119 {strides = array<i32>} : memref<2x2304xf32, #tpu.memory_space<vmem>>, vector<1x384xf32>,
    %121 = vector.extract_strided_slice %96 {offsets = [96, 0], sizes = [1, 64], strides = [1, 1]} : vector<171x64xf32> to vector<1x64xf32>
    %122 = vector.extract_strided_slice %96 {offsets = [98, 0], sizes = [1, 64], strides = [1, 1]} : vector<171x64xf32> to vector<1x64xf32>
    %123 = vector.extract_strided_slice %96 {offsets = [100, 0], sizes = [1, 64], strides = [1, 1]} : vector<171x64xf32> to vector<1x64xf32>
    %124 = vector.extract_strided_slice %96 {offsets = [102, 0], sizes = [1, 64], strides = [1, 1]} : vector<171x64xf32> to vector<1x64xf32>
    %125 = vector.extract_strided_slice %96 {offsets = [104, 0], sizes = [1, 64], strides = [1, 1]} : vector<171x64xf32> to vector<1x64xf32>
    %126 = vector.extract_strided_slice %96 {offsets = [106, 0], sizes = [1, 64], strides = [1, 1]} : vector<171x64xf32> to vector<1x64xf32>
    %127 = tpu.concatenate %121, %122, %123, %124, %125, %126 in 1 : vector<1x64xf32>, vector<1x64xf32>, vector<1x64xf32>, vector<1x64xf32>, vector<1x64xf32>, vector<1x64xf32> -> vector<1x384xf32>
    %c1_63 = arith.constant 1 : index
    %c1152_64 = arith.constant 1152 : index
    %128 = vector.load %arg12[%c1_63, %c1152_64] : memref<2x2304xf32, #tpu.memory_space<vmem>>, vector<1x384xf32>
    tpu.vector_store %arg12[%c1_63, %c1152_64], %127 {strides = array<i32>} : memref<2x2304xf32, #tpu.memory_space<vmem>>, vector<1x384xf32>,
    %129 = vector.extract_strided_slice %96 {offsets = [128, 0], sizes = [1, 64], strides = [1, 1]} : vector<171x64xf32> to vector<1x64xf32>
    %130 = vector.extract_strided_slice %96 {offsets = [130, 0], sizes = [1, 64], strides = [1, 1]} : vector<171x64xf32> to vector<1x64xf32>
    %131 = vector.extract_strided_slice %96 {offsets = [132, 0], sizes = [1, 64], strides = [1, 1]} : vector<171x64xf32> to vector<1x64xf32>
    %132 = vector.extract_strided_slice %96 {offsets = [134, 0], sizes = [1, 64], strides = [1, 1]} : vector<171x64xf32> to vector<1x64xf32>
    %133 = vector.extract_strided_slice %96 {offsets = [136, 0], sizes = [1, 64], strides = [1, 1]} : vector<171x64xf32> to vector<1x64xf32>
    %134 = vector.extract_strided_slice %96 {offsets = [138, 0], sizes = [1, 64], strides = [1, 1]} : vector<171x64xf32> to vector<1x64xf32>
    %135 = tpu.concatenate %129, %130, %131, %132, %133, %134 in 1 : vector<1x64xf32>, vector<1x64xf32>, vector<1x64xf32>, vector<1x64xf32>, vector<1x64xf32>, vector<1x64xf32> -> vector<1x384xf32>
    %c1_65 = arith.constant 1 : index
    %c1536_66 = arith.constant 1536 : index
    %136 = vector.load %arg12[%c1_65, %c1536_66] : memref<2x2304xf32, #tpu.memory_space<vmem>>, vector<1x384xf32>
    tpu.vector_store %arg12[%c1_65, %c1536_66], %135 {strides = array<i32>} : memref<2x2304xf32, #tpu.memory_space<vmem>>, vector<1x384xf32>,
    %137 = vector.extract_strided_slice %96 {offsets = [160, 0], sizes = [1, 64], strides = [1, 1]} : vector<171x64xf32> to vector<1x64xf32>
    %138 = vector.extract_strided_slice %96 {offsets = [162, 0], sizes = [1, 64], strides = [1, 1]} : vector<171x64xf32> to vector<1x64xf32>
    %139 = vector.extract_strided_slice %96 {offsets = [164, 0], sizes = [1, 64], strides = [1, 1]} : vector<171x64xf32> to vector<1x64xf32>
    %140 = vector.extract_strided_slice %96 {offsets = [166, 0], sizes = [1, 64], strides = [1, 1]} : vector<171x64xf32> to vector<1x64xf32>
    %141 = vector.extract_strided_slice %96 {offsets = [168, 0], sizes = [1, 64], strides = [1, 1]} : vector<171x64xf32> to vector<1x64xf32>
    %142 = vector.extract_strided_slice %96 {offsets = [170, 0], sizes = [1, 64], strides = [1, 1]} : vector<171x64xf32> to vector<1x64xf32>
    %143 = tpu.concatenate %137, %138, %139, %140, %141, %142 in 1 : vector<1x64xf32>, vector<1x64xf32>, vector<1x64xf32>, vector<1x64xf32>, vector<1x64xf32>, vector<1x64xf32> -> vector<1x384xf32>
    %c1_67 = arith.constant 1 : index
    %c1920_68 = arith.constant 1920 : index
    %144 = vector.load %arg12[%c1_67, %c1920_68] : memref<2x2304xf32, #tpu.memory_space<vmem>>, vector<1x384xf32>
    tpu.vector_store %arg12[%c1_67, %c1920_68], %143 {strides = array<i32>} : memref<2x2304xf32, #tpu.memory_space<vmem>>, vector<1x384xf32>,
    %c0_69 = arith.constant 0 : index
    %c0_70 = arith.constant 0 : index
    %145 = vector.load %arg12[%c0_69, %c0_70] : memref<2x2304xf32, #tpu.memory_space<vmem>>, vector<2x2304xf32>
    %c0_71 = arith.constant 0 : index
    %c0_72 = arith.constant 0 : index
    %146 = vector.load %arg5[%c0_71, %c0_72] : memref<2304x128xf32, #tpu.memory_space<vmem>>, vector<2304x128xf32>
    %cst_73 = arith.constant dense<0.000000e+00> : vector<2x128xf32>
    %147 = tpu.matmul %145, %146, %cst_73 {dimension_numbers = #tpu.dot_dimension_numbers<[1], [0], [0], [1], [0, 0, 1, 1], [], []>} : vector<2x2304xf32>, vector<2304x128xf32>, vector<2x128xf32> -> vector<2x128xf32>
    %c0_74 = arith.constant 0 : index
    %c0_75 = arith.constant 0 : index
    %148 = vector.load %arg6[%c0_74, %c0_75] : memref<1x128xf32, #tpu.memory_space<vmem>>, vector<1x128xf32>
    %149 = vector.broadcast %148 : vector<1x128xf32> to vector<2x128xf32>
    %150 = arith.addf %147, %149 : vector<2x128xf32>
    %cst_76 = arith.constant 0.000000e+00 : f32
    %151 = vector.broadcast %cst_76 : f32 to vector<2x128xf32>
    %152 = arith.maximumf %150, %151 : vector<2x128xf32>
    %c0_77 = arith.constant 0 : index
    %c0_78 = arith.constant 0 : index
    %153 = vector.load %arg7[%c0_77, %c0_78] : memref<128x128xf32, #tpu.memory_space<vmem>>, vector<128x128xf32>
    %cst_79 = arith.constant dense<0.000000e+00> : vector<2x128xf32>
    %154 = tpu.matmul %152, %153, %cst_79 {dimension_numbers = #tpu.dot_dimension_numbers<[1], [0], [0], [1], [0, 0, 1, 1], [], []>} : vector<2x128xf32>, vector<128x128xf32>, vector<2x128xf32> -> vector<2x128xf32>
    %c0_80 = arith.constant 0 : index
    %c0_81 = arith.constant 0 : index
    %155 = vector.load %arg8[%c0_80, %c0_81] : memref<1x128xf32, #tpu.memory_space<vmem>>, vector<1x128xf32>
    %156 = vector.broadcast %155 : vector<1x128xf32> to vector<2x128xf32>
    %157 = arith.addf %154, %156 : vector<2x128xf32>
    %c0_82 = arith.constant 0 : index
    %c0_83 = arith.constant 0 : index
    %158 = vector.load %arg9[%c0_82, %c0_83] : memref<2x128xf32, #tpu.memory_space<vmem>>, vector<2x128xf32>
    tpu.vector_store %arg9[%c0_82, %c0_83], %157 {strides = array<i32>} : memref<2x128xf32, #tpu.memory_space<vmem>>, vector<2x128xf32>,
    return
  }
}

</mosaic_0001>

<llo_original>
// kernel: simple_cnn_forward.1
$region0: #{simple_cnn_forward.1}
  #allocation0 [shape = 'u32[]', space=smem, size = 0x4, offset = 0x4, fixed_abs, tag = 'smem constant byte address 0x4 - core index']
  #allocation1 [shape = 'u32[144,128]{1,0:T(1,128)}', space=vmem, size = 0x12000, scoped, tag = 'internal scratch']
  #allocation2 [shape = 'f32[476,96]{1,0:T(8,128)}', space=vmem, size = 0x3c000, scoped, tag = 'scratch operand']
  #allocation3 [shape = 'f32[444,64]{1,0:T(8,128)}', space=vmem, size = 0x38000, scoped, tag = 'scratch operand']
  #allocation4 [shape = 'f32[2,2304]{1,0:T(2,128)}', space=vmem, size = 0x4800, scoped, tag = 'scratch operand']
  %s0 = inlined_call_operand.vmem [shape: f32[476,108], index: 0, kind: input, shape index: {}]
  %s1 = inlined_call_operand.vmem [shape: f32[108,96], index: 1, kind: input, shape index: {}]
  %s2 = inlined_call_operand.vmem [shape: f32[1,96], index: 2, kind: input, shape index: {}]
  %s3 = inlined_call_operand.vmem [shape: f32[3,96,64], index: 3, kind: input, shape index: {}]
  %s4 = inlined_call_operand.vmem [shape: f32[1,64], index: 4, kind: input, shape index: {}]
  %s5 = inlined_call_operand.vmem [shape: f32[2304,128], index: 5, kind: input, shape index: {}]
  %s6 = inlined_call_operand.vmem [shape: f32[1,128], index: 6, kind: input, shape index: {}]
  %s7 = inlined_call_operand.vmem [shape: f32[128,128], index: 7, kind: input, shape index: {}]
  %s8 = inlined_call_operand.vmem [shape: f32[1,128], index: 8, kind: input, shape index: {}]
  %s9 = inlined_call_operand.hbm [shape: f32[2,128], index: 9, kind: output, shape index: {}]
  %s10 = sld [smem:[#allocation0]]
  $region46: #{simple_cnn_forward.1} parent=0
    _
  %s12 = ssub.s32 1, %s10
  %s13 = scalar_select 0, %s12, %s10
  $region1: #{simple_cnn_forward.1} parent=0
    #allocation5 [shape = 'u8[1024]{0}', space=vmem, size = 0x400, scoped, tag = 'output window, operand 0, single buffered']
    #allocation6 [shape = 's32[1]{0}', space=sflag, size = 0x4, scoped, tag = 'scoped memory for simple_cnn_forward.1']
    %14 = vsyncpa [#allocation6], 0
    // Predicated region
    $region2: #{simple_cnn_forward.1} parent=1 // pred_check
      _
    $region3: #{simple_cnn_forward.1} parent=1 // pred_check_branch
      %16 = sbr.rel (0) target = $region5
    $region4: #{simple_cnn_forward.1} parent=1 // pred_region
      _
    $region5: #{simple_cnn_forward.1} parent=1 // pred_fallthru
      _
    // Predicated region
    $region6: #{simple_cnn_forward.1} parent=1 // pred_check
      _
    $region7: #{simple_cnn_forward.1} parent=1 // pred_check_branch
      %18 = sbr.rel (0) target = $region9
    $region8: #{simple_cnn_forward.1} parent=1 // pred_region
      _
    $region9: #{simple_cnn_forward.1} parent=1 // pred_fallthru
      _
    // Predicated region
    $region10: #{simple_cnn_forward.1} parent=1 // pred_check
      _
    $region11: #{simple_cnn_forward.1} parent=1 // pred_check_branch
      %20 = sbr.rel (0) target = $region13
    $region12: #{simple_cnn_forward.1} parent=1 // pred_region
      _
    $region13: #{simple_cnn_forward.1} parent=1 // pred_fallthru
      _
    // Predicated region
    $region14: #{simple_cnn_forward.1} parent=1 // pred_check
      _
    $region15: #{simple_cnn_forward.1} parent=1 // pred_check_branch
      %22 = sbr.rel (0) target = $region17
    $region16: #{simple_cnn_forward.1} parent=1 // pred_region
      _
    $region17: #{simple_cnn_forward.1} parent=1 // pred_fallthru
      _
    // Predicated region
    $region18: #{simple_cnn_forward.1} parent=1 // pred_check
      _
    $region19: #{simple_cnn_forward.1} parent=1 // pred_check_branch
      %24 = sbr.rel (0) target = $region21
    $region20: #{simple_cnn_forward.1} parent=1 // pred_region
      _
    $region21: #{simple_cnn_forward.1} parent=1 // pred_fallthru
      _
    // Predicated region
    $region22: #{simple_cnn_forward.1} parent=1 // pred_check
      _
    $region23: #{simple_cnn_forward.1} parent=1 // pred_check_branch
      %26 = sbr.rel (0) target = $region25
    $region24: #{simple_cnn_forward.1} parent=1 // pred_region
      _
    $region25: #{simple_cnn_forward.1} parent=1 // pred_fallthru
      _
    // Predicated region
    $region26: #{simple_cnn_forward.1} parent=1 // pred_check
      _
    $region27: #{simple_cnn_forward.1} parent=1 // pred_check_branch
      %28 = sbr.rel (0) target = $region29
    $region28: #{simple_cnn_forward.1} parent=1 // pred_region
      _
    $region29: #{simple_cnn_forward.1} parent=1 // pred_fallthru
      _
    // Predicated region
    $region30: #{simple_cnn_forward.1} parent=1 // pred_check
      _
    $region31: #{simple_cnn_forward.1} parent=1 // pred_check_branch
      %30 = sbr.rel (0) target = $region33
    $region32: #{simple_cnn_forward.1} parent=1 // pred_region
      _
    $region33: #{simple_cnn_forward.1} parent=1 // pred_fallthru
      _
    // Predicated region
    $region34: #{simple_cnn_forward.1} parent=1 // pred_check
      _
    $region35: #{simple_cnn_forward.1} parent=1 // pred_check_branch
      %32 = sbr.rel (0) target = $region37
    $region36: #{simple_cnn_forward.1} parent=1 // pred_region
      _
    $region37: #{simple_cnn_forward.1} parent=1 // pred_fallthru
      _
    %v33 = vld [vmem:[%s0] sm:$0xff]
    %v34 = vld [vmem:[%s0 + $0x8] sm:$0xff]
    %v35 = vld [vmem:[%s0 + $0x10] sm:$0xff]
    %v36 = vld [vmem:[%s0 + $0x18] sm:$0xff]
    %v37 = vld [vmem:[%s0 + $0x20] sm:$0xff]
    %v38 = vld [vmem:[%s0 + $0x28] sm:$0xff]
    %v39 = vld [vmem:[%s0 + $0x30] sm:$0xff]
    %v40 = vld [vmem:[%s0 + $0x38] sm:$0xff]
    %v41 = vld [vmem:[%s0 + $0x40] sm:$0xff]
    %v42 = vld [vmem:[%s0 + $0x48] sm:$0xff]
    %v43 = vld [vmem:[%s0 + $0x50] sm:$0xff]
    %v44 = vld [vmem:[%s0 + $0x58] sm:$0xff]
    %v45 = vld [vmem:[%s0 + $0x60] sm:$0xff]
    %v46 = vld [vmem:[%s0 + $0x68] sm:$0xff]
    %v47 = vld [vmem:[%s0 + $0x70] sm:$0xff]
    %v48 = vld [vmem:[%s0 + $0x78] sm:$0xff]
    %v49 = vld [vmem:[%s0 + $0x80] sm:$0xff]
    %v50 = vld [vmem:[%s0 + $0x88] sm:$0xff]
    %v51 = vld [vmem:[%s0 + $0x90] sm:$0xff]
    %v52 = vld [vmem:[%s0 + $0x98] sm:$0xff]
    %v53 = vld [vmem:[%s0 + $0xa0] sm:$0xff]
    %v54 = vld [vmem:[%s0 + $0xa8] sm:$0xff]
    %v55 = vld [vmem:[%s0 + $0xb0] sm:$0xff]
    %v56 = vld [vmem:[%s0 + $0xb8] sm:$0xff]
    %v57 = vld [vmem:[%s0 + $0xc0] sm:$0xff]
    %v58 = vld [vmem:[%s0 + $0xc8] sm:$0xff]
    %v59 = vld [vmem:[%s0 + $0xd0] sm:$0xff]
    %v60 = vld [vmem:[%s0 + $0xd8] sm:$0xff]
    %v61 = vld [vmem:[%s0 + $0xe0] sm:$0xff]
    %v62 = vld [vmem:[%s0 + $0xe8] sm:$0xff]
    %v63 = vld [vmem:[%s0 + $0xf0] sm:$0xff]
    %v64 = vld [vmem:[%s0 + $0xf8] sm:$0xff]
    %v65 = vld [vmem:[%s0 + $0x100] sm:$0xff]
    %v66 = vld [vmem:[%s0 + $0x108] sm:$0xff]
    %v67 = vld [vmem:[%s0 + $0x110] sm:$0xff]
    %v68 = vld [vmem:[%s0 + $0x118] sm:$0xff]
    %v69 = vld [vmem:[%s0 + $0x120] sm:$0xff]
    %v70 = vld [vmem:[%s0 + $0x128] sm:$0xff]
    %v71 = vld [vmem:[%s0 + $0x130] sm:$0xff]
    %v72 = vld [vmem:[%s0 + $0x138] sm:$0xff]
    %v73 = vld [vmem:[%s0 + $0x140] sm:$0xff]
    %v74 = vld [vmem:[%s0 + $0x148] sm:$0xff]
    %v75 = vld [vmem:[%s0 + $0x150] sm:$0xff]
    %v76 = vld [vmem:[%s0 + $0x158] sm:$0xff]
    %v77 = vld [vmem:[%s0 + $0x160] sm:$0xff]
    %v78 = vld [vmem:[%s0 + $0x168] sm:$0xff]
    %v79 = vld [vmem:[%s0 + $0x170] sm:$0xff]
    %v80 = vld [vmem:[%s0 + $0x178] sm:$0xff]
    %v81 = vld [vmem:[%s0 + $0x180] sm:$0xff]
    %v82 = vld [vmem:[%s0 + $0x188] sm:$0xff]
    %v83 = vld [vmem:[%s0 + $0x190] sm:$0xff]
    %v84 = vld [vmem:[%s0 + $0x198] sm:$0xff]
    %v85 = vld [vmem:[%s0 + $0x1a0] sm:$0xff]
    %v86 = vld [vmem:[%s0 + $0x1a8] sm:$0xff]
    %v87 = vld [vmem:[%s0 + $0x1b0] sm:$0xff]
    %v88 = vld [vmem:[%s0 + $0x1b8] sm:$0xff]
    %v89 = vld [vmem:[%s0 + $0x1c0] sm:$0xff]
    %v90 = vld [vmem:[%s0 + $0x1c8] sm:$0xff]
    %v91 = vld [vmem:[%s0 + $0x1d0] sm:$0xff]
    %v92 = vld [vmem:[%s0 + $0x1d8] sm:$0xf]
    %v93 = vld [vmem:[%s1] sm:$0xff]
    %v94 = vld [vmem:[%s1 + $0x8] sm:$0xff]
    %v95 = vld [vmem:[%s1 + $0x10] sm:$0xff]
    %v96 = vld [vmem:[%s1 + $0x18] sm:$0xff]
    %v97 = vld [vmem:[%s1 + $0x20] sm:$0xff]
    %v98 = vld [vmem:[%s1 + $0x28] sm:$0xff]
    %v99 = vld [vmem:[%s1 + $0x30] sm:$0xff]
    %v100 = vld [vmem:[%s1 + $0x38] sm:$0xff]
    %v101 = vld [vmem:[%s1 + $0x40] sm:$0xff]
    %v102 = vld [vmem:[%s1 + $0x48] sm:$0xff]
    %v103 = vld [vmem:[%s1 + $0x50] sm:$0xff]
    %v104 = vld [vmem:[%s1 + $0x58] sm:$0xff]
    %v105 = vld [vmem:[%s1 + $0x60] sm:$0xff]
    %v106 = vld [vmem:[%s1 + $0x68] sm:$0xf]
    %v107 = vld [vmem:[%s2] sm:$0x1]
    %v109 = vlaneseq
    %v110 = vshrl.u32 %v109, 7
    %v111 = vsub.s32 0, %v110
    %v112 = vrot.slane %v107, %v111
    %vm114 = vcmask 883712
    %v116 = vsel %vm114, %v33, 0
    %v119 = vsel %vm114, %v34, 0
    %v122 = vsel %vm114, %v35, 0
    %v125 = vsel %vm114, %v36, 0
    %v128 = vsel %vm114, %v37, 0
    %v131 = vsel %vm114, %v38, 0
    %v134 = vsel %vm114, %v39, 0
    %v137 = vsel %vm114, %v40, 0
    %v140 = vsel %vm114, %v41, 0
    %v143 = vsel %vm114, %v42, 0
    %v146 = vsel %vm114, %v43, 0
    %v149 = vsel %vm114, %v44, 0
    %v152 = vsel %vm114, %v45, 0
    %v155 = vsel %vm114, %v46, 0
    %v158 = vsel %vm114, %v47, 0
    %v161 = vsel %vm114, %v48, 0
    %v164 = vsel %vm114, %v49, 0
    %v167 = vsel %vm114, %v50, 0
    %v170 = vsel %vm114, %v51, 0
    %v173 = vsel %vm114, %v52, 0
    %v176 = vsel %vm114, %v53, 0
    %v179 = vsel %vm114, %v54, 0
    %v182 = vsel %vm114, %v55, 0
    %v185 = vsel %vm114, %v56, 0
    %v188 = vsel %vm114, %v57, 0
    %v191 = vsel %vm114, %v58, 0
    %v194 = vsel %vm114, %v59, 0
    %v197 = vsel %vm114, %v60, 0
    %v200 = vsel %vm114, %v61, 0
    %v203 = vsel %vm114, %v62, 0
    %v206 = vsel %vm114, %v63, 0
    %v209 = vsel %vm114, %v64, 0
    %v212 = vsel %vm114, %v65, 0
    %v215 = vsel %vm114, %v66, 0
    %v218 = vsel %vm114, %v67, 0
    %v221 = vsel %vm114, %v68, 0
    %v224 = vsel %vm114, %v69, 0
    %v227 = vsel %vm114, %v70, 0
    %v230 = vsel %vm114, %v71, 0
    %v233 = vsel %vm114, %v72, 0
    %v236 = vsel %vm114, %v73, 0
    %v239 = vsel %vm114, %v74, 0
    %v242 = vsel %vm114, %v75, 0
    %v245 = vsel %vm114, %v76, 0
    %v248 = vsel %vm114, %v77, 0
    %v251 = vsel %vm114, %v78, 0
    %v254 = vsel %vm114, %v79, 0
    %v257 = vsel %vm114, %v80, 0
    %v260 = vsel %vm114, %v81, 0
    %v263 = vsel %vm114, %v82, 0
    %v266 = vsel %vm114, %v83, 0
    %v269 = vsel %vm114, %v84, 0
    %v272 = vsel %vm114, %v85, 0
    %v275 = vsel %vm114, %v86, 0
    %v278 = vsel %vm114, %v87, 0
    %v281 = vsel %vm114, %v88, 0
    %v284 = vsel %vm114, %v89, 0
    %v287 = vsel %vm114, %v90, 0
    %v290 = vsel %vm114, %v91, 0
    %v293 = vsel %vm114, %v92, 0
    %vm295 = vcmask 1043456
    %v297 = vsel %vm295, %v106, 0
    %299 = vmatprep.subr.mxu0 0.0
    %300 = vmatpush1.msra.mxu0 %v93
    %301 = vmatprep.subr.mxu0 0.0
    %302 = vmatpush1.msra.mxu0 %v94
    %303 = vmatprep.subr.mxu0 0.0
    %304 = vmatpush1.msra.mxu0 %v95
    %305 = vmatprep.subr.mxu0 0.0
    %306 = vmatpush1.msra.mxu0 %v96
    %307 = vmatprep.subr.mxu0 0.0
    %308 = vmatpush1.msra.mxu0 %v97
    %309 = vmatprep.subr.mxu0 0.0
    %310 = vmatpush1.msra.mxu0 %v98
    %311 = vmatprep.subr.mxu0 0.0
    %312 = vmatpush1.msra.mxu0 %v99
    %313 = vmatprep.subr.mxu0 0.0
    %314 = vmatpush1.msra.mxu0 %v100
    %315 = vmatprep.subr.mxu0 0.0
    %316 = vmatpush1.msra.mxu0 %v101
    %317 = vmatprep.subr.mxu0 0.0
    %318 = vmatpush1.msra.mxu0 %v102
    %319 = vmatprep.subr.mxu0 0.0
    %320 = vmatpush1.msra.mxu0 %v103
    %321 = vmatprep.subr.mxu0 0.0
    %322 = vmatpush1.msra.mxu0 %v104
    %323 = vmatprep.subr.mxu0 0.0
    %324 = vmatpush1.msra.mxu0 %v105
    %325 = vmatprep.subr.mxu0 0.0
    %326 = vmatpush1.msra.mxu0 %v297
    %327 = vmatprep.subr.mxu0 0.0
    %328 = vmatpush1.msra.mxu0 0.0
    %329 = vmatprep.subr.mxu0 0.0
    %330 = vmatpush1.msra.mxu0 0.0
    %331 = vmatprep.subr.mxu0 0.0
    %332 = vmatpush1.msra.mxu0 0.0
    %333 = vmatprep.subr.mxu0 0.0
    %334 = vmatpush1.msra.mxu0 0.0
    %335 = vmatprep.subr.mxu0 0.0
    %336 = vmatpush1.msra.mxu0 0.0
    %337 = vmatprep.subr.mxu0 0.0
    %338 = vmatpush1.msra.mxu0 0.0
    %339 = vmatprep.subr.mxu0 0.0
    %340 = vmatpush1.msra.mxu0 0.0
    %341 = vmatprep.subr.mxu0 0.0
    %342 = vmatpush1.msra.mxu0 0.0
    %343 = vmatprep.subr.mxu0 0.0
    %344 = vmatpush1.msra.mxu0 0.0
    %345 = vmatprep.subr.mxu0 0.0
    %346 = vmatpush1.msra.mxu0 0.0
    %347 = vmatprep.subr.mxu0 0.0
    %348 = vmatpush1.msra.mxu0 0.0
    %349 = vmatprep.subr.mxu0 0.0
    %350 = vmatpush1.msra.mxu0 0.0
    %351 = vmatprep.subr.mxu0 0.0
    %352 = vmatpush1.msra.mxu0 0.0
    %353 = vmatprep.subr.mxu0 0.0
    %354 = vmatpush1.msra.mxu0 0.0
    %355 = vmatprep.subr.mxu0 0.0
    %356 = vmatpush1.msra.mxu0 0.0
    %357 = vmatprep.subr.mxu0 0.0
    %358 = vmatpush1.msra.mxu0 0.0
    %359 = vmatprep.subr.mxu0 0.0
    %360 = vmatpush1.msra.mxu0 0.0
    %361 = vmatprep.subr.mxu0 0.0
    %362 = vmatpush1.msra.mxu0 0.0
    %363 = vmatprep.mubr.f32.mxu0 0.0
    %364 = vmatmul.mubr.f32.gmra.mrb[0].mxu0 %v116
    %v365 = vpop.f32.mrb[0].mxu0
    %v366 = vadd.f32 %v112, %v365
    %v367 = vpop.f32.mrb[0].mxu0
    %368 = vmatprep.mubr.f32.mxu0 0.0
    %369 = vmatmul.mubr.f32.gmra.mrb[0].mxu0 %v119
    %v370 = vpop.f32.mrb[0].mxu0
    %v371 = vadd.f32 %v112, %v370
    %v372 = vpop.f32.mrb[0].mxu0
    %373 = vmatprep.mubr.f32.mxu0 0.0
    %374 = vmatmul.mubr.f32.gmra.mrb[0].mxu0 %v122
    %v375 = vpop.f32.mrb[0].mxu0
    %v376 = vadd.f32 %v112, %v375
    %v377 = vpop.f32.mrb[0].mxu0
    %378 = vmatprep.mubr.f32.mxu0 0.0
    %379 = vmatmul.mubr.f32.gmra.mrb[0].mxu0 %v125
    %v380 = vpop.f32.mrb[0].mxu0
    %v381 = vadd.f32 %v112, %v380
    %v382 = vpop.f32.mrb[0].mxu0
    %383 = vmatprep.mubr.f32.mxu0 0.0
    %384 = vmatmul.mubr.f32.gmra.mrb[0].mxu0 %v128
    %v385 = vpop.f32.mrb[0].mxu0
    %v386 = vadd.f32 %v112, %v385
    %v387 = vpop.f32.mrb[0].mxu0
    %388 = vmatprep.mubr.f32.mxu0 0.0
    %389 = vmatmul.mubr.f32.gmra.mrb[0].mxu0 %v131
    %v390 = vpop.f32.mrb[0].mxu0
    %v391 = vadd.f32 %v112, %v390
    %v392 = vpop.f32.mrb[0].mxu0
    %393 = vmatprep.mubr.f32.mxu0 0.0
    %394 = vmatmul.mubr.f32.gmra.mrb[0].mxu0 %v134
    %v395 = vpop.f32.mrb[0].mxu0
    %v396 = vadd.f32 %v112, %v395
    %v397 = vpop.f32.mrb[0].mxu0
    %398 = vmatprep.mubr.f32.mxu0 0.0
    %399 = vmatmul.mubr.f32.gmra.mrb[0].mxu0 %v137
    %v400 = vpop.f32.mrb[0].mxu0
    %v401 = vadd.f32 %v112, %v400
    %v402 = vpop.f32.mrb[0].mxu0
    %403 = vmatprep.mubr.f32.mxu0 0.0
    %404 = vmatmul.mubr.f32.gmra.mrb[0].mxu0 %v140
    %v405 = vpop.f32.mrb[0].mxu0
    %v406 = vadd.f32 %v112, %v405
    %v407 = vpop.f32.mrb[0].mxu0
    %408 = vmatprep.mubr.f32.mxu0 0.0
    %409 = vmatmul.mubr.f32.gmra.mrb[0].mxu0 %v143
    %v410 = vpop.f32.mrb[0].mxu0
    %v411 = vadd.f32 %v112, %v410
    %v412 = vpop.f32.mrb[0].mxu0
    %413 = vmatprep.mubr.f32.mxu0 0.0
    %414 = vmatmul.mubr.f32.gmra.mrb[0].mxu0 %v146
    %v415 = vpop.f32.mrb[0].mxu0
    %v416 = vadd.f32 %v112, %v415
    %v417 = vpop.f32.mrb[0].mxu0
    %418 = vmatprep.mubr.f32.mxu0 0.0
    %419 = vmatmul.mubr.f32.gmra.mrb[0].mxu0 %v149
    %v420 = vpop.f32.mrb[0].mxu0
    %v421 = vadd.f32 %v112, %v420
    %v422 = vpop.f32.mrb[0].mxu0
    %423 = vmatprep.mubr.f32.mxu0 0.0
    %424 = vmatmul.mubr.f32.gmra.mrb[0].mxu0 %v152
    %v425 = vpop.f32.mrb[0].mxu0
    %v426 = vadd.f32 %v112, %v425
    %v427 = vpop.f32.mrb[0].mxu0
    %428 = vmatprep.mubr.f32.mxu0 0.0
    %429 = vmatmul.mubr.f32.gmra.mrb[0].mxu0 %v155
    %v430 = vpop.f32.mrb[0].mxu0
    %v431 = vadd.f32 %v112, %v430
    %v432 = vpop.f32.mrb[0].mxu0
    %433 = vmatprep.mubr.f32.mxu0 0.0
    %434 = vmatmul.mubr.f32.gmra.mrb[0].mxu0 %v158
    %v435 = vpop.f32.mrb[0].mxu0
    %v436 = vadd.f32 %v112, %v435
    %v437 = vpop.f32.mrb[0].mxu0
    %438 = vmatprep.mubr.f32.mxu0 0.0
    %439 = vmatmul.mubr.f32.gmra.mrb[0].mxu0 %v161
    %v440 = vpop.f32.mrb[0].mxu0
    %v441 = vadd.f32 %v112, %v440
    %v442 = vpop.f32.mrb[0].mxu0
    %443 = vmatprep.mubr.f32.mxu0 0.0
    %444 = vmatmul.mubr.f32.gmra.mrb[0].mxu0 %v164
    %v445 = vpop.f32.mrb[0].mxu0
    %v446 = vadd.f32 %v112, %v445
    %v447 = vpop.f32.mrb[0].mxu0
    %448 = vmatprep.mubr.f32.mxu0 0.0
    %449 = vmatmul.mubr.f32.gmra.mrb[0].mxu0 %v167
    %v450 = vpop.f32.mrb[0].mxu0
    %v451 = vadd.f32 %v112, %v450
    %v452 = vpop.f32.mrb[0].mxu0
    %453 = vmatprep.mubr.f32.mxu0 0.0
    %454 = vmatmul.mubr.f32.gmra.mrb[0].mxu0 %v170
    %v455 = vpop.f32.mrb[0].mxu0
    %v456 = vadd.f32 %v112, %v455
    %v457 = vpop.f32.mrb[0].mxu0
    %458 = vmatprep.mubr.f32.mxu0 0.0
    %459 = vmatmul.mubr.f32.gmra.mrb[0].mxu0 %v173
    %v460 = vpop.f32.mrb[0].mxu0
    %v461 = vadd.f32 %v112, %v460
    %v462 = vpop.f32.mrb[0].mxu0
    %463 = vmatprep.mubr.f32.mxu0 0.0
    %464 = vmatmul.mubr.f32.gmra.mrb[0].mxu0 %v176
    %v465 = vpop.f32.mrb[0].mxu0
    %v466 = vadd.f32 %v112, %v465
    %v467 = vpop.f32.mrb[0].mxu0
    %468 = vmatprep.mubr.f32.mxu0 0.0
    %469 = vmatmul.mubr.f32.gmra.mrb[0].mxu0 %v179
    %v470 = vpop.f32.mrb[0].mxu0
    %v471 = vadd.f32 %v112, %v470
    %v472 = vpop.f32.mrb[0].mxu0
    %473 = vmatprep.mubr.f32.mxu0 0.0
    %474 = vmatmul.mubr.f32.gmra.mrb[0].mxu0 %v182
    %v475 = vpop.f32.mrb[0].mxu0
    %v476 = vadd.f32 %v112, %v475
    %v477 = vpop.f32.mrb[0].mxu0
    %478 = vmatprep.mubr.f32.mxu0 0.0
    %479 = vmatmul.mubr.f32.gmra.mrb[0].mxu0 %v185
    %v480 = vpop.f32.mrb[0].mxu0
    %v481 = vadd.f32 %v112, %v480
    %v482 = vpop.f32.mrb[0].mxu0
    %483 = vmatprep.mubr.f32.mxu0 0.0
    %484 = vmatmul.mubr.f32.gmra.mrb[0].mxu0 %v188
    %v485 = vpop.f32.mrb[0].mxu0
    %v486 = vadd.f32 %v112, %v485
    %v487 = vpop.f32.mrb[0].mxu0
    %488 = vmatprep.mubr.f32.mxu0 0.0
    %489 = vmatmul.mubr.f32.gmra.mrb[0].mxu0 %v191
    %v490 = vpop.f32.mrb[0].mxu0
    %v491 = vadd.f32 %v112, %v490
    %v492 = vpop.f32.mrb[0].mxu0
    %493 = vmatprep.mubr.f32.mxu0 0.0
    %494 = vmatmul.mubr.f32.gmra.mrb[0].mxu0 %v194
    %v495 = vpop.f32.mrb[0].mxu0
    %v496 = vadd.f32 %v112, %v495
    %v497 = vpop.f32.mrb[0].mxu0
    %498 = vmatprep.mubr.f32.mxu0 0.0
    %499 = vmatmul.mubr.f32.gmra.mrb[0].mxu0 %v197
    %v500 = vpop.f32.mrb[0].mxu0
    %v501 = vadd.f32 %v112, %v500
    %v502 = vpop.f32.mrb[0].mxu0
    %503 = vmatprep.mubr.f32.mxu0 0.0
    %504 = vmatmul.mubr.f32.gmra.mrb[0].mxu0 %v200
    %v505 = vpop.f32.mrb[0].mxu0
    %v506 = vadd.f32 %v112, %v505
    %v507 = vpop.f32.mrb[0].mxu0
    %508 = vmatprep.mubr.f32.mxu0 0.0
    %509 = vmatmul.mubr.f32.gmra.mrb[0].mxu0 %v203
    %v510 = vpop.f32.mrb[0].mxu0
    %v511 = vadd.f32 %v112, %v510
    %v512 = vpop.f32.mrb[0].mxu0
    %513 = vmatprep.mubr.f32.mxu0 0.0
    %514 = vmatmul.mubr.f32.gmra.mrb[0].mxu0 %v206
    %v515 = vpop.f32.mrb[0].mxu0
    %v516 = vadd.f32 %v112, %v515
    %v517 = vpop.f32.mrb[0].mxu0
    %518 = vmatprep.mubr.f32.mxu0 0.0
    %519 = vmatmul.mubr.f32.gmra.mrb[0].mxu0 %v209
    %v520 = vpop.f32.mrb[0].mxu0
    %v521 = vadd.f32 %v112, %v520
    %v522 = vpop.f32.mrb[0].mxu0
    %523 = vmatprep.mubr.f32.mxu0 0.0
    %524 = vmatmul.mubr.f32.gmra.mrb[0].mxu0 %v212
    %v525 = vpop.f32.mrb[0].mxu0
    %v526 = vadd.f32 %v112, %v525
    %v527 = vpop.f32.mrb[0].mxu0
    %528 = vmatprep.mubr.f32.mxu0 0.0
    %529 = vmatmul.mubr.f32.gmra.mrb[0].mxu0 %v215
    %v530 = vpop.f32.mrb[0].mxu0
    %v531 = vadd.f32 %v112, %v530
    %v532 = vpop.f32.mrb[0].mxu0
    %533 = vmatprep.mubr.f32.mxu0 0.0
    %534 = vmatmul.mubr.f32.gmra.mrb[0].mxu0 %v218
    %v535 = vpop.f32.mrb[0].mxu0
    %v536 = vadd.f32 %v112, %v535
    %v537 = vpop.f32.mrb[0].mxu0
    %538 = vmatprep.mubr.f32.mxu0 0.0
    %539 = vmatmul.mubr.f32.gmra.mrb[0].mxu0 %v221
    %v540 = vpop.f32.mrb[0].mxu0
    %v541 = vadd.f32 %v112, %v540
    %v542 = vpop.f32.mrb[0].mxu0
    %543 = vmatprep.mubr.f32.mxu0 0.0
    %544 = vmatmul.mubr.f32.gmra.mrb[0].mxu0 %v224
    %v545 = vpop.f32.mrb[0].mxu0
    %v546 = vadd.f32 %v112, %v545
    %v547 = vpop.f32.mrb[0].mxu0
    %548 = vmatprep.mubr.f32.mxu0 0.0
    %549 = vmatmul.mubr.f32.gmra.mrb[0].mxu0 %v227
    %v550 = vpop.f32.mrb[0].mxu0
    %v551 = vadd.f32 %v112, %v550
    %v552 = vpop.f32.mrb[0].mxu0
    %553 = vmatprep.mubr.f32.mxu0 0.0
    %554 = vmatmul.mubr.f32.gmra.mrb[0].mxu0 %v230
    %v555 = vpop.f32.mrb[0].mxu0
    %v556 = vadd.f32 %v112, %v555
    %v557 = vpop.f32.mrb[0].mxu0
    %558 = vmatprep.mubr.f32.mxu0 0.0
    %559 = vmatmul.mubr.f32.gmra.mrb[0].mxu0 %v233
    %v560 = vpop.f32.mrb[0].mxu0
    %v561 = vadd.f32 %v112, %v560
    %v562 = vpop.f32.mrb[0].mxu0
    %563 = vmatprep.mubr.f32.mxu0 0.0
    %564 = vmatmul.mubr.f32.gmra.mrb[0].mxu0 %v236
    %v565 = vpop.f32.mrb[0].mxu0
    %v566 = vadd.f32 %v112, %v565
    %v567 = vpop.f32.mrb[0].mxu0
    %568 = vmatprep.mubr.f32.mxu0 0.0
    %569 = vmatmul.mubr.f32.gmra.mrb[0].mxu0 %v239
    %v570 = vpop.f32.mrb[0].mxu0
    %v571 = vadd.f32 %v112, %v570
    %v572 = vpop.f32.mrb[0].mxu0
    %573 = vmatprep.mubr.f32.mxu0 0.0
    %574 = vmatmul.mubr.f32.gmra.mrb[0].mxu0 %v242
    %v575 = vpop.f32.mrb[0].mxu0
    %v576 = vadd.f32 %v112, %v575
    %v577 = vpop.f32.mrb[0].mxu0
    %578 = vmatprep.mubr.f32.mxu0 0.0
    %579 = vmatmul.mubr.f32.gmra.mrb[0].mxu0 %v245
    %v580 = vpop.f32.mrb[0].mxu0
    %v581 = vadd.f32 %v112, %v580
    %v582 = vpop.f32.mrb[0].mxu0
    %583 = vmatprep.mubr.f32.mxu0 0.0
    %584 = vmatmul.mubr.f32.gmra.mrb[0].mxu0 %v248
    %v585 = vpop.f32.mrb[0].mxu0
    %v586 = vadd.f32 %v112, %v585
    %v587 = vpop.f32.mrb[0].mxu0
    %588 = vmatprep.mubr.f32.mxu0 0.0
    %589 = vmatmul.mubr.f32.gmra.mrb[0].mxu0 %v251
    %v590 = vpop.f32.mrb[0].mxu0
    %v591 = vadd.f32 %v112, %v590
    %v592 = vpop.f32.mrb[0].mxu0
    %593 = vmatprep.mubr.f32.mxu0 0.0
    %594 = vmatmul.mubr.f32.gmra.mrb[0].mxu0 %v254
    %v595 = vpop.f32.mrb[0].mxu0
    %v596 = vadd.f32 %v112, %v595
    %v597 = vpop.f32.mrb[0].mxu0
    %598 = vmatprep.mubr.f32.mxu0 0.0
    %599 = vmatmul.mubr.f32.gmra.mrb[0].mxu0 %v257
    %v600 = vpop.f32.mrb[0].mxu0
    %v601 = vadd.f32 %v112, %v600
    %v602 = vpop.f32.mrb[0].mxu0
    %603 = vmatprep.mubr.f32.mxu0 0.0
    %604 = vmatmul.mubr.f32.gmra.mrb[0].mxu0 %v260
    %v605 = vpop.f32.mrb[0].mxu0
    %v606 = vadd.f32 %v112, %v605
    %v607 = vpop.f32.mrb[0].mxu0
    %608 = vmatprep.mubr.f32.mxu0 0.0
    %609 = vmatmul.mubr.f32.gmra.mrb[0].mxu0 %v263
    %v610 = vpop.f32.mrb[0].mxu0
    %v611 = vadd.f32 %v112, %v610
    %v612 = vpop.f32.mrb[0].mxu0
    %613 = vmatprep.mubr.f32.mxu0 0.0
    %614 = vmatmul.mubr.f32.gmra.mrb[0].mxu0 %v266
    %v615 = vpop.f32.mrb[0].mxu0
    %v616 = vadd.f32 %v112, %v615
    %v617 = vpop.f32.mrb[0].mxu0
    %618 = vmatprep.mubr.f32.mxu0 0.0
    %619 = vmatmul.mubr.f32.gmra.mrb[0].mxu0 %v269
    %v620 = vpop.f32.mrb[0].mxu0
    %v621 = vadd.f32 %v112, %v620
    %v622 = vpop.f32.mrb[0].mxu0
    %623 = vmatprep.mubr.f32.mxu0 0.0
    %624 = vmatmul.mubr.f32.gmra.mrb[0].mxu0 %v272
    %v625 = vpop.f32.mrb[0].mxu0
    %v626 = vadd.f32 %v112, %v625
    %v627 = vpop.f32.mrb[0].mxu0
    %628 = vmatprep.mubr.f32.mxu0 0.0
    %629 = vmatmul.mubr.f32.gmra.mrb[0].mxu0 %v275
    %v630 = vpop.f32.mrb[0].mxu0
    %v631 = vadd.f32 %v112, %v630
    %v632 = vpop.f32.mrb[0].mxu0
    %633 = vmatprep.mubr.f32.mxu0 0.0
    %634 = vmatmul.mubr.f32.gmra.mrb[0].mxu0 %v278
    %v635 = vpop.f32.mrb[0].mxu0
    %v636 = vadd.f32 %v112, %v635
    %v637 = vpop.f32.mrb[0].mxu0
    %638 = vmatprep.mubr.f32.mxu0 0.0
    %639 = vmatmul.mubr.f32.gmra.mrb[0].mxu0 %v281
    %v640 = vpop.f32.mrb[0].mxu0
    %v641 = vadd.f32 %v112, %v640
    %v642 = vpop.f32.mrb[0].mxu0
    %643 = vmatprep.mubr.f32.mxu0 0.0
    %644 = vmatmul.mubr.f32.gmra.mrb[0].mxu0 %v284
    %v645 = vpop.f32.mrb[0].mxu0
    %v646 = vadd.f32 %v112, %v645
    %v647 = vpop.f32.mrb[0].mxu0
    %648 = vmatprep.mubr.f32.mxu0 0.0
    %649 = vmatmul.mubr.f32.gmra.mrb[0].mxu0 %v287
    %v650 = vpop.f32.mrb[0].mxu0
    %v651 = vadd.f32 %v112, %v650
    %v652 = vpop.f32.mrb[0].mxu0
    %653 = vmatprep.mubr.f32.mxu0 0.0
    %654 = vmatmul.mubr.f32.gmra.mrb[0].mxu0 %v290
    %v655 = vpop.f32.mrb[0].mxu0
    %v656 = vadd.f32 %v112, %v655
    %v657 = vpop.f32.mrb[0].mxu0
    %658 = vmatprep.mubr.f32.mxu0 0.0
    %659 = vmatmul.mubr.f32.gmra.mrb[0].mxu0 %v293
    %v660 = vpop.f32.mrb[0].mxu0
    %v661 = vadd.f32 %v112, %v660
    %v662 = vpop.f32.mrb[0].mxu0
    %663 = vdwg.mxu0
    %v664 = vmax.f32 %v366, 0.0
    %v665 = vmax.f32 %v371, 0.0
    %v666 = vmax.f32 %v376, 0.0
    %v667 = vmax.f32 %v381, 0.0
    %v668 = vmax.f32 %v386, 0.0
    %v669 = vmax.f32 %v391, 0.0
    %v670 = vmax.f32 %v396, 0.0
    %v671 = vmax.f32 %v401, 0.0
    %v672 = vmax.f32 %v406, 0.0
    %v673 = vmax.f32 %v411, 0.0
    %v674 = vmax.f32 %v416, 0.0
    %v675 = vmax.f32 %v421, 0.0
    %v676 = vmax.f32 %v426, 0.0
    %v677 = vmax.f32 %v431, 0.0
    %v678 = vmax.f32 %v436, 0.0
    %v679 = vmax.f32 %v441, 0.0
    %v680 = vmax.f32 %v446, 0.0
    %v681 = vmax.f32 %v451, 0.0
    %v682 = vmax.f32 %v456, 0.0
    %v683 = vmax.f32 %v461, 0.0
    %v684 = vmax.f32 %v466, 0.0
    %v685 = vmax.f32 %v471, 0.0
    %v686 = vmax.f32 %v476, 0.0
    %v687 = vmax.f32 %v481, 0.0
    %v688 = vmax.f32 %v486, 0.0
    %v689 = vmax.f32 %v491, 0.0
    %v690 = vmax.f32 %v496, 0.0
    %v691 = vmax.f32 %v501, 0.0
    %v692 = vmax.f32 %v506, 0.0
    %v693 = vmax.f32 %v511, 0.0
    %v694 = vmax.f32 %v516, 0.0
    %v695 = vmax.f32 %v521, 0.0
    %v696 = vmax.f32 %v526, 0.0
    %v697 = vmax.f32 %v531, 0.0
    %v698 = vmax.f32 %v536, 0.0
    %v699 = vmax.f32 %v541, 0.0
    %v700 = vmax.f32 %v546, 0.0
    %v701 = vmax.f32 %v551, 0.0
    %v702 = vmax.f32 %v556, 0.0
    %v703 = vmax.f32 %v561, 0.0
    %v704 = vmax.f32 %v566, 0.0
    %v705 = vmax.f32 %v571, 0.0
    %v706 = vmax.f32 %v576, 0.0
    %v707 = vmax.f32 %v581, 0.0
    %v708 = vmax.f32 %v586, 0.0
    %v709 = vmax.f32 %v591, 0.0
    %v710 = vmax.f32 %v596, 0.0
    %v711 = vmax.f32 %v601, 0.0
    %v712 = vmax.f32 %v606, 0.0
    %v713 = vmax.f32 %v611, 0.0
    %v714 = vmax.f32 %v616, 0.0
    %v715 = vmax.f32 %v621, 0.0
    %v716 = vmax.f32 %v626, 0.0
    %v717 = vmax.f32 %v631, 0.0
    %v718 = vmax.f32 %v636, 0.0
    %v719 = vmax.f32 %v641, 0.0
    %v720 = vmax.f32 %v646, 0.0
    %v721 = vmax.f32 %v651, 0.0
    %v722 = vmax.f32 %v656, 0.0
    %v723 = vmax.f32 %v661, 0.0
    %vm724 = vcmask 785408
    %725 = vst.msk [vmem:[#allocation2] sm:$0xff] %vm724, %v664
    %726 = vst.msk [vmem:[#allocation2 + $0x8] sm:$0xff] %vm724, %v665
    %727 = vst.msk [vmem:[#allocation2 + $0x10] sm:$0xff] %vm724, %v666
    %728 = vst.msk [vmem:[#allocation2 + $0x18] sm:$0xff] %vm724, %v667
    %729 = vst.msk [vmem:[#allocation2 + $0x20] sm:$0xff] %vm724, %v668
    %730 = vst.msk [vmem:[#allocation2 + $0x28] sm:$0xff] %vm724, %v669
    %731 = vst.msk [vmem:[#allocation2 + $0x30] sm:$0xff] %vm724, %v670
    %732 = vst.msk [vmem:[#allocation2 + $0x38] sm:$0xff] %vm724, %v671
    %733 = vst.msk [vmem:[#allocation2 + $0x40] sm:$0xff] %vm724, %v672
    %734 = vst.msk [vmem:[#allocation2 + $0x48] sm:$0xff] %vm724, %v673
    %735 = vst.msk [vmem:[#allocation2 + $0x50] sm:$0xff] %vm724, %v674
    %736 = vst.msk [vmem:[#allocation2 + $0x58] sm:$0xff] %vm724, %v675
    %737 = vst.msk [vmem:[#allocation2 + $0x60] sm:$0xff] %vm724, %v676
    %738 = vst.msk [vmem:[#allocation2 + $0x68] sm:$0xff] %vm724, %v677
    %739 = vst.msk [vmem:[#allocation2 + $0x70] sm:$0xff] %vm724, %v678
    %740 = vst.msk [vmem:[#allocation2 + $0x78] sm:$0xff] %vm724, %v679
    %741 = vst.msk [vmem:[#allocation2 + $0x80] sm:$0xff] %vm724, %v680
    %742 = vst.msk [vmem:[#allocation2 + $0x88] sm:$0xff] %vm724, %v681
    %743 = vst.msk [vmem:[#allocation2 + $0x90] sm:$0xff] %vm724, %v682
    %744 = vst.msk [vmem:[#allocation2 + $0x98] sm:$0xff] %vm724, %v683
    %745 = vst.msk [vmem:[#allocation2 + $0xa0] sm:$0xff] %vm724, %v684
    %746 = vst.msk [vmem:[#allocation2 + $0xa8] sm:$0xff] %vm724, %v685
    %747 = vst.msk [vmem:[#allocation2 + $0xb0] sm:$0xff] %vm724, %v686
    %748 = vst.msk [vmem:[#allocation2 + $0xb8] sm:$0xff] %vm724, %v687
    %749 = vst.msk [vmem:[#allocation2 + $0xc0] sm:$0xff] %vm724, %v688
    %750 = vst.msk [vmem:[#allocation2 + $0xc8] sm:$0xff] %vm724, %v689
    %751 = vst.msk [vmem:[#allocation2 + $0xd0] sm:$0xff] %vm724, %v690
    %752 = vst.msk [vmem:[#allocation2 + $0xd8] sm:$0xff] %vm724, %v691
    %753 = vst.msk [vmem:[#allocation2 + $0xe0] sm:$0xff] %vm724, %v692
    %754 = vst.msk [vmem:[#allocation2 + $0xe8] sm:$0xff] %vm724, %v693
    %755 = vst.msk [vmem:[#allocation2 + $0xf0] sm:$0xff] %vm724, %v694
    %756 = vst.msk [vmem:[#allocation2 + $0xf8] sm:$0xff] %vm724, %v695
    %757 = vst.msk [vmem:[#allocation2 + $0x100] sm:$0xff] %vm724, %v696
    %758 = vst.msk [vmem:[#allocation2 + $0x108] sm:$0xff] %vm724, %v697
    %759 = vst.msk [vmem:[#allocation2 + $0x110] sm:$0xff] %vm724, %v698
    %760 = vst.msk [vmem:[#allocation2 + $0x118] sm:$0xff] %vm724, %v699
    %761 = vst.msk [vmem:[#allocation2 + $0x120] sm:$0xff] %vm724, %v700
    %762 = vst.msk [vmem:[#allocation2 + $0x128] sm:$0xff] %vm724, %v701
    %763 = vst.msk [vmem:[#allocation2 + $0x130] sm:$0xff] %vm724, %v702
    %764 = vst.msk [vmem:[#allocation2 + $0x138] sm:$0xff] %vm724, %v703
    %765 = vst.msk [vmem:[#allocation2 + $0x140] sm:$0xff] %vm724, %v704
    %766 = vst.msk [vmem:[#allocation2 + $0x148] sm:$0xff] %vm724, %v705
    %767 = vst.msk [vmem:[#allocation2 + $0x150] sm:$0xff] %vm724, %v706
    %768 = vst.msk [vmem:[#allocation2 + $0x158] sm:$0xff] %vm724, %v707
    %769 = vst.msk [vmem:[#allocation2 + $0x160] sm:$0xff] %vm724, %v708
    %770 = vst.msk [vmem:[#allocation2 + $0x168] sm:$0xff] %vm724, %v709
    %771 = vst.msk [vmem:[#allocation2 + $0x170] sm:$0xff] %vm724, %v710
    %772 = vst.msk [vmem:[#allocation2 + $0x178] sm:$0xff] %vm724, %v711
    %773 = vst.msk [vmem:[#allocation2 + $0x180] sm:$0xff] %vm724, %v712
    %774 = vst.msk [vmem:[#allocation2 + $0x188] sm:$0xff] %vm724, %v713
    %775 = vst.msk [vmem:[#allocation2 + $0x190] sm:$0xff] %vm724, %v714
    %776 = vst.msk [vmem:[#allocation2 + $0x198] sm:$0xff] %vm724, %v715
    %777 = vst.msk [vmem:[#allocation2 + $0x1a0] sm:$0xff] %vm724, %v716
    %778 = vst.msk [vmem:[#allocation2 + $0x1a8] sm:$0xff] %vm724, %v717
    %779 = vst.msk [vmem:[#allocation2 + $0x1b0] sm:$0xff] %vm724, %v718
    %780 = vst.msk [vmem:[#allocation2 + $0x1b8] sm:$0xff] %vm724, %v719
    %781 = vst.msk [vmem:[#allocation2 + $0x1c0] sm:$0xff] %vm724, %v720
    %782 = vst.msk [vmem:[#allocation2 + $0x1c8] sm:$0xff] %vm724, %v721
    %783 = vst.msk [vmem:[#allocation2 + $0x1d0] sm:$0xff] %vm724, %v722
    %vm784 = vcmask 781312
    %785 = vst.msk [vmem:[#allocation2 + $0x1d8] sm:$0xf] %vm784, %v723
    %v786 = vld [vmem:[#allocation2] sm:$0xff]
    %v787 = vld [vmem:[#allocation2 + $0x8] sm:$0xff]
    %v788 = vld [vmem:[#allocation2 + $0x10] sm:$0xff]
    %v789 = vld [vmem:[#allocation2 + $0x18] sm:$0xff]
    %v790 = vld [vmem:[#allocation2 + $0x20] sm:$0xff]
    %v791 = vld [vmem:[#allocation2 + $0x28] sm:$0xff]
    %v792 = vld [vmem:[#allocation2 + $0x30] sm:$0xff]
    %v793 = vld [vmem:[#allocation2 + $0x38] sm:$0xff]
    %v794 = vld [vmem:[#allocation2 + $0x40] sm:$0xff]
    %v795 = vld [vmem:[#allocation2 + $0x48] sm:$0xff]
    %v796 = vld [vmem:[#allocation2 + $0x50] sm:$0xff]
    %v797 = vld [vmem:[#allocation2 + $0x58] sm:$0xff]
    %v798 = vld [vmem:[#allocation2 + $0x60] sm:$0xff]
    %v799 = vld [vmem:[#allocation2 + $0x68] sm:$0xff]
    %v800 = vld [vmem:[#allocation2 + $0x70] sm:$0xff]
    %v801 = vld [vmem:[#allocation2 + $0x78] sm:$0xff]
    %v802 = vld [vmem:[#allocation2 + $0x80] sm:$0xff]
    %v803 = vld [vmem:[#allocation2 + $0x88] sm:$0xff]
    %v804 = vld [vmem:[#allocation2 + $0x90] sm:$0xff]
    %v805 = vld [vmem:[#allocation2 + $0x98] sm:$0xff]
    %v806 = vld [vmem:[#allocation2 + $0xa0] sm:$0xff]
    %v807 = vld [vmem:[#allocation2 + $0xa8] sm:$0xff]
    %v808 = vld [vmem:[#allocation2 + $0xb0] sm:$0xff]
    %v809 = vld [vmem:[#allocation2 + $0xb8] sm:$0xff]
    %v810 = vld [vmem:[#allocation2 + $0xc0] sm:$0xff]
    %v811 = vld [vmem:[#allocation2 + $0xc8] sm:$0xff]
    %v812 = vld [vmem:[#allocation2 + $0xd0] sm:$0xff]
    %v813 = vld [vmem:[#allocation2 + $0xd8] sm:$0xff]
    %v814 = vld [vmem:[#allocation2 + $0xe0] sm:$0xff]
    %v815 = vld [vmem:[#allocation2 + $0xe8] sm:$0xff]
    %v816 = vld [vmem:[#allocation2 + $0xf0] sm:$0xff]
    %v817 = vld [vmem:[#allocation2 + $0xf8] sm:$0xff]
    %v818 = vld [vmem:[#allocation2 + $0x100] sm:$0xff]
    %v819 = vld [vmem:[#allocation2 + $0x108] sm:$0xff]
    %v820 = vld [vmem:[#allocation2 + $0x110] sm:$0xff]
    %v821 = vld [vmem:[#allocation2 + $0x118] sm:$0xff]
    %v822 = vld [vmem:[#allocation2 + $0x120] sm:$0xff]
    %v823 = vld [vmem:[#allocation2 + $0x128] sm:$0xff]
    %v824 = vld [vmem:[#allocation2 + $0x130] sm:$0xff]
    %v825 = vld [vmem:[#allocation2 + $0x138] sm:$0xff]
    %v826 = vld [vmem:[#allocation2 + $0x140] sm:$0xff]
    %v827 = vld [vmem:[#allocation2 + $0x148] sm:$0xff]
    %v828 = vld [vmem:[#allocation2 + $0x150] sm:$0xff]
    %v829 = vld [vmem:[#allocation2 + $0x158] sm:$0xff]
    %v830 = vld [vmem:[#allocation2 + $0x160] sm:$0xff]
    %v831 = vld [vmem:[#allocation2 + $0x168] sm:$0xff]
    %v832 = vld [vmem:[#allocation2 + $0x170] sm:$0xff]
    %v833 = vld [vmem:[#allocation2 + $0x178] sm:$0xff]
    %v834 = vld [vmem:[#allocation2 + $0x180] sm:$0xff]
    %v835 = vld [vmem:[#allocation2 + $0x188] sm:$0xff]
    %v836 = vld [vmem:[#allocation2 + $0x190] sm:$0xff]
    %v837 = vld [vmem:[#allocation2 + $0x198] sm:$0xff]
    %v838 = vld [vmem:[#allocation2 + $0x1a0] sm:$0xff]
    %v839 = vld [vmem:[#allocation2 + $0x1a8] sm:$0xff]
    %v840 = vld [vmem:[#allocation2 + $0x1b0] sm:$0xff]
    %v841 = vld [vmem:[#allocation2 + $0x1b8] sm:$0xf]
    %v842 = vld [vmem:[%s3] sm:$0xff]
    %v843 = vld [vmem:[%s3 + $0x8] sm:$0xff]
    %v844 = vld [vmem:[%s3 + $0x10] sm:$0xff]
    %v845 = vld [vmem:[%s3 + $0x18] sm:$0xff]
    %v846 = vld [vmem:[%s3 + $0x20] sm:$0xff]
    %v847 = vld [vmem:[%s3 + $0x28] sm:$0xff]
    %v848 = vld [vmem:[%s3 + $0x30] sm:$0xff]
    %v849 = vld [vmem:[%s3 + $0x38] sm:$0xff]
    %v850 = vld [vmem:[%s3 + $0x40] sm:$0xff]
    %v851 = vld [vmem:[%s3 + $0x48] sm:$0xff]
    %v852 = vld [vmem:[%s3 + $0x50] sm:$0xff]
    %v853 = vld [vmem:[%s3 + $0x58] sm:$0xff]
    %v855 = vsel %vm724, %v786, 0
    %v858 = vsel %vm724, %v787, 0
    %v861 = vsel %vm724, %v788, 0
    %v864 = vsel %vm724, %v789, 0
    %v867 = vsel %vm724, %v790, 0
    %v870 = vsel %vm724, %v791, 0
    %v873 = vsel %vm724, %v792, 0
    %v876 = vsel %vm724, %v793, 0
    %v879 = vsel %vm724, %v794, 0
    %v882 = vsel %vm724, %v795, 0
    %v885 = vsel %vm724, %v796, 0
    %v888 = vsel %vm724, %v797, 0
    %v891 = vsel %vm724, %v798, 0
    %v894 = vsel %vm724, %v799, 0
    %v897 = vsel %vm724, %v800, 0
    %v900 = vsel %vm724, %v801, 0
    %v903 = vsel %vm724, %v802, 0
    %v906 = vsel %vm724, %v803, 0
    %v909 = vsel %vm724, %v804, 0
    %v912 = vsel %vm724, %v805, 0
    %v915 = vsel %vm724, %v806, 0
    %v918 = vsel %vm724, %v807, 0
    %v921 = vsel %vm724, %v808, 0
    %v924 = vsel %vm724, %v809, 0
    %v927 = vsel %vm724, %v810, 0
    %v930 = vsel %vm724, %v811, 0
    %v933 = vsel %vm724, %v812, 0
    %v936 = vsel %vm724, %v813, 0
    %v939 = vsel %vm724, %v814, 0
    %v942 = vsel %vm724, %v815, 0
    %v945 = vsel %vm724, %v816, 0
    %v948 = vsel %vm724, %v817, 0
    %v951 = vsel %vm724, %v818, 0
    %v954 = vsel %vm724, %v819, 0
    %v957 = vsel %vm724, %v820, 0
    %v960 = vsel %vm724, %v821, 0
    %v963 = vsel %vm724, %v822, 0
    %v966 = vsel %vm724, %v823, 0
    %v969 = vsel %vm724, %v824, 0
    %v972 = vsel %vm724, %v825, 0
    %v975 = vsel %vm724, %v826, 0
    %v978 = vsel %vm724, %v827, 0
    %v981 = vsel %vm724, %v828, 0
    %v984 = vsel %vm724, %v829, 0
    %v987 = vsel %vm724, %v830, 0
    %v990 = vsel %vm724, %v831, 0
    %v993 = vsel %vm724, %v832, 0
    %v996 = vsel %vm724, %v833, 0
    %v999 = vsel %vm724, %v834, 0
    %v1002 = vsel %vm724, %v835, 0
    %v1005 = vsel %vm724, %v836, 0
    %v1008 = vsel %vm724, %v837, 0
    %v1011 = vsel %vm724, %v838, 0
    %v1014 = vsel %vm724, %v839, 0
    %v1017 = vsel %vm724, %v840, 0
    %v1020 = vsel %vm724, %v841, 0
    %1022 = vmatprep.subr.mxu0 0.0
    %1023 = vmatpush1.msra.mxu0 %v842
    %1024 = vmatprep.subr.mxu0 0.0
    %1025 = vmatpush1.msra.mxu0 %v843
    %1026 = vmatprep.subr.mxu0 0.0
    %1027 = vmatpush1.msra.mxu0 %v844
    %1028 = vmatprep.subr.mxu0 0.0
    %1029 = vmatpush1.msra.mxu0 %v845
    %1030 = vmatprep.subr.mxu0 0.0
    %1031 = vmatpush1.msra.mxu0 %v846
    %1032 = vmatprep.subr.mxu0 0.0
    %1033 = vmatpush1.msra.mxu0 %v847
    %1034 = vmatprep.subr.mxu0 0.0
    %1035 = vmatpush1.msra.mxu0 %v848
    %1036 = vmatprep.subr.mxu0 0.0
    %1037 = vmatpush1.msra.mxu0 %v849
    %1038 = vmatprep.subr.mxu0 0.0
    %1039 = vmatpush1.msra.mxu0 %v850
    %1040 = vmatprep.subr.mxu0 0.0
    %1041 = vmatpush1.msra.mxu0 %v851
    %1042 = vmatprep.subr.mxu0 0.0
    %1043 = vmatpush1.msra.mxu0 %v852
    %1044 = vmatprep.subr.mxu0 0.0
    %1045 = vmatpush1.msra.mxu0 %v853
    %1046 = vmatprep.subr.mxu0 0.0
    %1047 = vmatpush1.msra.mxu0 0.0
    %1048 = vmatprep.subr.mxu0 0.0
    %1049 = vmatpush1.msra.mxu0 0.0
    %1050 = vmatprep.subr.mxu0 0.0
    %1051 = vmatpush1.msra.mxu0 0.0
    %1052 = vmatprep.subr.mxu0 0.0
    %1053 = vmatpush1.msra.mxu0 0.0
    %1054 = vmatprep.subr.mxu0 0.0
    %1055 = vmatpush1.msra.mxu0 0.0
    %1056 = vmatprep.subr.mxu0 0.0
    %1057 = vmatpush1.msra.mxu0 0.0
    %1058 = vmatprep.subr.mxu0 0.0
    %1059 = vmatpush1.msra.mxu0 0.0
    %1060 = vmatprep.subr.mxu0 0.0
    %1061 = vmatpush1.msra.mxu0 0.0
    %1062 = vmatprep.subr.mxu0 0.0
    %1063 = vmatpush1.msra.mxu0 0.0
    %1064 = vmatprep.subr.mxu0 0.0
    %1065 = vmatpush1.msra.mxu0 0.0
    %1066 = vmatprep.subr.mxu0 0.0
    %1067 = vmatpush1.msra.mxu0 0.0
    %1068 = vmatprep.subr.mxu0 0.0
    %1069 = vmatpush1.msra.mxu0 0.0
    %1070 = vmatprep.subr.mxu0 0.0
    %1071 = vmatpush1.msra.mxu0 0.0
    %1072 = vmatprep.subr.mxu0 0.0
    %1073 = vmatpush1.msra.mxu0 0.0
    %1074 = vmatprep.subr.mxu0 0.0
    %1075 = vmatpush1.msra.mxu0 0.0
    %1076 = vmatprep.subr.mxu0 0.0
    %1077 = vmatpush1.msra.mxu0 0.0
    %1078 = vmatprep.subr.mxu0 0.0
    %1079 = vmatpush1.msra.mxu0 0.0
    %1080 = vmatprep.subr.mxu0 0.0
    %1081 = vmatpush1.msra.mxu0 0.0
    %1082 = vmatprep.subr.mxu0 0.0
    %1083 = vmatpush1.msra.mxu0 0.0
    %1084 = vmatprep.subr.mxu0 0.0
    %1085 = vmatpush1.msra.mxu0 0.0
    %1086 = vmatprep.mubr.f32.mxu0 0.0
    %1087 = vmatmul.mubr.f32.gmra.mrb[0].mxu0 %v855
    %v1088 = vpop.f32.mrb[0].mxu0
    %v1089 = vadd.f32 0.0, %v1088
    %v1090 = vpop.f32.mrb[0].mxu0
    %1091 = vmatprep.mubr.f32.mxu0 0.0
    %1092 = vmatmul.mubr.f32.gmra.mrb[0].mxu0 %v858
    %v1093 = vpop.f32.mrb[0].mxu0
    %v1094 = vadd.f32 0.0, %v1093
    %v1095 = vpop.f32.mrb[0].mxu0
    %1096 = vmatprep.mubr.f32.mxu0 0.0
    %1097 = vmatmul.mubr.f32.gmra.mrb[0].mxu0 %v861
    %v1098 = vpop.f32.mrb[0].mxu0
    %v1099 = vadd.f32 0.0, %v1098
    %v1100 = vpop.f32.mrb[0].mxu0
    %1101 = vmatprep.mubr.f32.mxu0 0.0
    %1102 = vmatmul.mubr.f32.gmra.mrb[0].mxu0 %v864
    %v1103 = vpop.f32.mrb[0].mxu0
    %v1104 = vadd.f32 0.0, %v1103
    %v1105 = vpop.f32.mrb[0].mxu0
    %1106 = vmatprep.mubr.f32.mxu0 0.0
    %1107 = vmatmul.mubr.f32.gmra.mrb[0].mxu0 %v867
    %v1108 = vpop.f32.mrb[0].mxu0
    %v1109 = vadd.f32 0.0, %v1108
    %v1110 = vpop.f32.mrb[0].mxu0
    %1111 = vmatprep.mubr.f32.mxu0 0.0
    %1112 = vmatmul.mubr.f32.gmra.mrb[0].mxu0 %v870
    %v1113 = vpop.f32.mrb[0].mxu0
    %v1114 = vadd.f32 0.0, %v1113
    %v1115 = vpop.f32.mrb[0].mxu0
    %1116 = vmatprep.mubr.f32.mxu0 0.0
    %1117 = vmatmul.mubr.f32.gmra.mrb[0].mxu0 %v873
    %v1118 = vpop.f32.mrb[0].mxu0
    %v1119 = vadd.f32 0.0, %v1118
    %v1120 = vpop.f32.mrb[0].mxu0
    %1121 = vmatprep.mubr.f32.mxu0 0.0
    %1122 = vmatmul.mubr.f32.gmra.mrb[0].mxu0 %v876
    %v1123 = vpop.f32.mrb[0].mxu0
    %v1124 = vadd.f32 0.0, %v1123
    %v1125 = vpop.f32.mrb[0].mxu0
    %1126 = vmatprep.mubr.f32.mxu0 0.0
    %1127 = vmatmul.mubr.f32.gmra.mrb[0].mxu0 %v879
    %v1128 = vpop.f32.mrb[0].mxu0
    %v1129 = vadd.f32 0.0, %v1128
    %v1130 = vpop.f32.mrb[0].mxu0
    %1131 = vmatprep.mubr.f32.mxu0 0.0
    %1132 = vmatmul.mubr.f32.gmra.mrb[0].mxu0 %v882
    %v1133 = vpop.f32.mrb[0].mxu0
    %v1134 = vadd.f32 0.0, %v1133
    %v1135 = vpop.f32.mrb[0].mxu0
    %1136 = vmatprep.mubr.f32.mxu0 0.0
    %1137 = vmatmul.mubr.f32.gmra.mrb[0].mxu0 %v885
    %v1138 = vpop.f32.mrb[0].mxu0
    %v1139 = vadd.f32 0.0, %v1138
    %v1140 = vpop.f32.mrb[0].mxu0
    %1141 = vmatprep.mubr.f32.mxu0 0.0
    %1142 = vmatmul.mubr.f32.gmra.mrb[0].mxu0 %v888
    %v1143 = vpop.f32.mrb[0].mxu0
    %v1144 = vadd.f32 0.0, %v1143
    %v1145 = vpop.f32.mrb[0].mxu0
    %1146 = vmatprep.mubr.f32.mxu0 0.0
    %1147 = vmatmul.mubr.f32.gmra.mrb[0].mxu0 %v891
    %v1148 = vpop.f32.mrb[0].mxu0
    %v1149 = vadd.f32 0.0, %v1148
    %v1150 = vpop.f32.mrb[0].mxu0
    %1151 = vmatprep.mubr.f32.mxu0 0.0
    %1152 = vmatmul.mubr.f32.gmra.mrb[0].mxu0 %v894
    %v1153 = vpop.f32.mrb[0].mxu0
    %v1154 = vadd.f32 0.0, %v1153
    %v1155 = vpop.f32.mrb[0].mxu0
    %1156 = vmatprep.mubr.f32.mxu0 0.0
    %1157 = vmatmul.mubr.f32.gmra.mrb[0].mxu0 %v897
    %v1158 = vpop.f32.mrb[0].mxu0
    %v1159 = vadd.f32 0.0, %v1158
    %v1160 = vpop.f32.mrb[0].mxu0
    %1161 = vmatprep.mubr.f32.mxu0 0.0
    %1162 = vmatmul.mubr.f32.gmra.mrb[0].mxu0 %v900
    %v1163 = vpop.f32.mrb[0].mxu0
    %v1164 = vadd.f32 0.0, %v1163
    %v1165 = vpop.f32.mrb[0].mxu0
    %1166 = vmatprep.mubr.f32.mxu0 0.0
    %1167 = vmatmul.mubr.f32.gmra.mrb[0].mxu0 %v903
    %v1168 = vpop.f32.mrb[0].mxu0
    %v1169 = vadd.f32 0.0, %v1168
    %v1170 = vpop.f32.mrb[0].mxu0
    %1171 = vmatprep.mubr.f32.mxu0 0.0
    %1172 = vmatmul.mubr.f32.gmra.mrb[0].mxu0 %v906
    %v1173 = vpop.f32.mrb[0].mxu0
    %v1174 = vadd.f32 0.0, %v1173
    %v1175 = vpop.f32.mrb[0].mxu0
    %1176 = vmatprep.mubr.f32.mxu0 0.0
    %1177 = vmatmul.mubr.f32.gmra.mrb[0].mxu0 %v909
    %v1178 = vpop.f32.mrb[0].mxu0
    %v1179 = vadd.f32 0.0, %v1178
    %v1180 = vpop.f32.mrb[0].mxu0
    %1181 = vmatprep.mubr.f32.mxu0 0.0
    %1182 = vmatmul.mubr.f32.gmra.mrb[0].mxu0 %v912
    %v1183 = vpop.f32.mrb[0].mxu0
    %v1184 = vadd.f32 0.0, %v1183
    %v1185 = vpop.f32.mrb[0].mxu0
    %1186 = vmatprep.mubr.f32.mxu0 0.0
    %1187 = vmatmul.mubr.f32.gmra.mrb[0].mxu0 %v915
    %v1188 = vpop.f32.mrb[0].mxu0
    %v1189 = vadd.f32 0.0, %v1188
    %v1190 = vpop.f32.mrb[0].mxu0
    %1191 = vmatprep.mubr.f32.mxu0 0.0
    %1192 = vmatmul.mubr.f32.gmra.mrb[0].mxu0 %v918
    %v1193 = vpop.f32.mrb[0].mxu0
    %v1194 = vadd.f32 0.0, %v1193
    %v1195 = vpop.f32.mrb[0].mxu0
    %1196 = vmatprep.mubr.f32.mxu0 0.0
    %1197 = vmatmul.mubr.f32.gmra.mrb[0].mxu0 %v921
    %v1198 = vpop.f32.mrb[0].mxu0
    %v1199 = vadd.f32 0.0, %v1198
    %v1200 = vpop.f32.mrb[0].mxu0
    %1201 = vmatprep.mubr.f32.mxu0 0.0
    %1202 = vmatmul.mubr.f32.gmra.mrb[0].mxu0 %v924
    %v1203 = vpop.f32.mrb[0].mxu0
    %v1204 = vadd.f32 0.0, %v1203
    %v1205 = vpop.f32.mrb[0].mxu0
    %1206 = vmatprep.mubr.f32.mxu0 0.0
    %1207 = vmatmul.mubr.f32.gmra.mrb[0].mxu0 %v927
    %v1208 = vpop.f32.mrb[0].mxu0
    %v1209 = vadd.f32 0.0, %v1208
    %v1210 = vpop.f32.mrb[0].mxu0
    %1211 = vmatprep.mubr.f32.mxu0 0.0
    %1212 = vmatmul.mubr.f32.gmra.mrb[0].mxu0 %v930
    %v1213 = vpop.f32.mrb[0].mxu0
    %v1214 = vadd.f32 0.0, %v1213
    %v1215 = vpop.f32.mrb[0].mxu0
    %1216 = vmatprep.mubr.f32.mxu0 0.0
    %1217 = vmatmul.mubr.f32.gmra.mrb[0].mxu0 %v933
    %v1218 = vpop.f32.mrb[0].mxu0
    %v1219 = vadd.f32 0.0, %v1218
    %v1220 = vpop.f32.mrb[0].mxu0
    %1221 = vmatprep.mubr.f32.mxu0 0.0
    %1222 = vmatmul.mubr.f32.gmra.mrb[0].mxu0 %v936
    %v1223 = vpop.f32.mrb[0].mxu0
    %v1224 = vadd.f32 0.0, %v1223
    %v1225 = vpop.f32.mrb[0].mxu0
    %1226 = vmatprep.mubr.f32.mxu0 0.0
    %1227 = vmatmul.mubr.f32.gmra.mrb[0].mxu0 %v939
    %v1228 = vpop.f32.mrb[0].mxu0
    %v1229 = vadd.f32 0.0, %v1228
    %v1230 = vpop.f32.mrb[0].mxu0
    %1231 = vmatprep.mubr.f32.mxu0 0.0
    %1232 = vmatmul.mubr.f32.gmra.mrb[0].mxu0 %v942
    %v1233 = vpop.f32.mrb[0].mxu0
    %v1234 = vadd.f32 0.0, %v1233
    %v1235 = vpop.f32.mrb[0].mxu0
    %1236 = vmatprep.mubr.f32.mxu0 0.0
    %1237 = vmatmul.mubr.f32.gmra.mrb[0].mxu0 %v945
    %v1238 = vpop.f32.mrb[0].mxu0
    %v1239 = vadd.f32 0.0, %v1238
    %v1240 = vpop.f32.mrb[0].mxu0
    %1241 = vmatprep.mubr.f32.mxu0 0.0
    %1242 = vmatmul.mubr.f32.gmra.mrb[0].mxu0 %v948
    %v1243 = vpop.f32.mrb[0].mxu0
    %v1244 = vadd.f32 0.0, %v1243
    %v1245 = vpop.f32.mrb[0].mxu0
    %1246 = vmatprep.mubr.f32.mxu0 0.0
    %1247 = vmatmul.mubr.f32.gmra.mrb[0].mxu0 %v951
    %v1248 = vpop.f32.mrb[0].mxu0
    %v1249 = vadd.f32 0.0, %v1248
    %v1250 = vpop.f32.mrb[0].mxu0
    %1251 = vmatprep.mubr.f32.mxu0 0.0
    %1252 = vmatmul.mubr.f32.gmra.mrb[0].mxu0 %v954
    %v1253 = vpop.f32.mrb[0].mxu0
    %v1254 = vadd.f32 0.0, %v1253
    %v1255 = vpop.f32.mrb[0].mxu0
    %1256 = vmatprep.mubr.f32.mxu0 0.0
    %1257 = vmatmul.mubr.f32.gmra.mrb[0].mxu0 %v957
    %v1258 = vpop.f32.mrb[0].mxu0
    %v1259 = vadd.f32 0.0, %v1258
    %v1260 = vpop.f32.mrb[0].mxu0
    %1261 = vmatprep.mubr.f32.mxu0 0.0
    %1262 = vmatmul.mubr.f32.gmra.mrb[0].mxu0 %v960
    %v1263 = vpop.f32.mrb[0].mxu0
    %v1264 = vadd.f32 0.0, %v1263
    %v1265 = vpop.f32.mrb[0].mxu0
    %1266 = vmatprep.mubr.f32.mxu0 0.0
    %1267 = vmatmul.mubr.f32.gmra.mrb[0].mxu0 %v963
    %v1268 = vpop.f32.mrb[0].mxu0
    %v1269 = vadd.f32 0.0, %v1268
    %v1270 = vpop.f32.mrb[0].mxu0
    %1271 = vmatprep.mubr.f32.mxu0 0.0
    %1272 = vmatmul.mubr.f32.gmra.mrb[0].mxu0 %v966
    %v1273 = vpop.f32.mrb[0].mxu0
    %v1274 = vadd.f32 0.0, %v1273
    %v1275 = vpop.f32.mrb[0].mxu0
    %1276 = vmatprep.mubr.f32.mxu0 0.0
    %1277 = vmatmul.mubr.f32.gmra.mrb[0].mxu0 %v969
    %v1278 = vpop.f32.mrb[0].mxu0
    %v1279 = vadd.f32 0.0, %v1278
    %v1280 = vpop.f32.mrb[0].mxu0
    %1281 = vmatprep.mubr.f32.mxu0 0.0
    %1282 = vmatmul.mubr.f32.gmra.mrb[0].mxu0 %v972
    %v1283 = vpop.f32.mrb[0].mxu0
    %v1284 = vadd.f32 0.0, %v1283
    %v1285 = vpop.f32.mrb[0].mxu0
    %1286 = vmatprep.mubr.f32.mxu0 0.0
    %1287 = vmatmul.mubr.f32.gmra.mrb[0].mxu0 %v975
    %v1288 = vpop.f32.mrb[0].mxu0
    %v1289 = vadd.f32 0.0, %v1288
    %v1290 = vpop.f32.mrb[0].mxu0
    %1291 = vmatprep.mubr.f32.mxu0 0.0
    %1292 = vmatmul.mubr.f32.gmra.mrb[0].mxu0 %v978
    %v1293 = vpop.f32.mrb[0].mxu0
    %v1294 = vadd.f32 0.0, %v1293
    %v1295 = vpop.f32.mrb[0].mxu0
    %1296 = vmatprep.mubr.f32.mxu0 0.0
    %1297 = vmatmul.mubr.f32.gmra.mrb[0].mxu0 %v981
    %v1298 = vpop.f32.mrb[0].mxu0
    %v1299 = vadd.f32 0.0, %v1298
    %v1300 = vpop.f32.mrb[0].mxu0
    %1301 = vmatprep.mubr.f32.mxu0 0.0
    %1302 = vmatmul.mubr.f32.gmra.mrb[0].mxu0 %v984
    %v1303 = vpop.f32.mrb[0].mxu0
    %v1304 = vadd.f32 0.0, %v1303
    %v1305 = vpop.f32.mrb[0].mxu0
    %1306 = vmatprep.mubr.f32.mxu0 0.0
    %1307 = vmatmul.mubr.f32.gmra.mrb[0].mxu0 %v987
    %v1308 = vpop.f32.mrb[0].mxu0
    %v1309 = vadd.f32 0.0, %v1308
    %v1310 = vpop.f32.mrb[0].mxu0
    %1311 = vmatprep.mubr.f32.mxu0 0.0
    %1312 = vmatmul.mubr.f32.gmra.mrb[0].mxu0 %v990
    %v1313 = vpop.f32.mrb[0].mxu0
    %v1314 = vadd.f32 0.0, %v1313
    %v1315 = vpop.f32.mrb[0].mxu0
    %1316 = vmatprep.mubr.f32.mxu0 0.0
    %1317 = vmatmul.mubr.f32.gmra.mrb[0].mxu0 %v993
    %v1318 = vpop.f32.mrb[0].mxu0
    %v1319 = vadd.f32 0.0, %v1318
    %v1320 = vpop.f32.mrb[0].mxu0
    %1321 = vmatprep.mubr.f32.mxu0 0.0
    %1322 = vmatmul.mubr.f32.gmra.mrb[0].mxu0 %v996
    %v1323 = vpop.f32.mrb[0].mxu0
    %v1324 = vadd.f32 0.0, %v1323
    %v1325 = vpop.f32.mrb[0].mxu0
    %1326 = vmatprep.mubr.f32.mxu0 0.0
    %1327 = vmatmul.mubr.f32.gmra.mrb[0].mxu0 %v999
    %v1328 = vpop.f32.mrb[0].mxu0
    %v1329 = vadd.f32 0.0, %v1328
    %v1330 = vpop.f32.mrb[0].mxu0
    %1331 = vmatprep.mubr.f32.mxu0 0.0
    %1332 = vmatmul.mubr.f32.gmra.mrb[0].mxu0 %v1002
    %v1333 = vpop.f32.mrb[0].mxu0
    %v1334 = vadd.f32 0.0, %v1333
    %v1335 = vpop.f32.mrb[0].mxu0
    %1336 = vmatprep.mubr.f32.mxu0 0.0
    %1337 = vmatmul.mubr.f32.gmra.mrb[0].mxu0 %v1005
    %v1338 = vpop.f32.mrb[0].mxu0
    %v1339 = vadd.f32 0.0, %v1338
    %v1340 = vpop.f32.mrb[0].mxu0
    %1341 = vmatprep.mubr.f32.mxu0 0.0
    %1342 = vmatmul.mubr.f32.gmra.mrb[0].mxu0 %v1008
    %v1343 = vpop.f32.mrb[0].mxu0
    %v1344 = vadd.f32 0.0, %v1343
    %v1345 = vpop.f32.mrb[0].mxu0
    %1346 = vmatprep.mubr.f32.mxu0 0.0
    %1347 = vmatmul.mubr.f32.gmra.mrb[0].mxu0 %v1011
    %v1348 = vpop.f32.mrb[0].mxu0
    %v1349 = vadd.f32 0.0, %v1348
    %v1350 = vpop.f32.mrb[0].mxu0
    %1351 = vmatprep.mubr.f32.mxu0 0.0
    %1352 = vmatmul.mubr.f32.gmra.mrb[0].mxu0 %v1014
    %v1353 = vpop.f32.mrb[0].mxu0
    %v1354 = vadd.f32 0.0, %v1353
    %v1355 = vpop.f32.mrb[0].mxu0
    %1356 = vmatprep.mubr.f32.mxu0 0.0
    %1357 = vmatmul.mubr.f32.gmra.mrb[0].mxu0 %v1017
    %v1358 = vpop.f32.mrb[0].mxu0
    %v1359 = vadd.f32 0.0, %v1358
    %v1360 = vpop.f32.mrb[0].mxu0
    %1361 = vmatprep.mubr.f32.mxu0 0.0
    %1362 = vmatmul.mubr.f32.gmra.mrb[0].mxu0 %v1020
    %v1363 = vpop.f32.mrb[0].mxu0
    %v1364 = vadd.f32 0.0, %v1363
    %v1365 = vpop.f32.mrb[0].mxu0
    %1366 = vdwg.mxu0
    %vm1367 = vcmask 523264
    %1368 = vst.msk [vmem:[#allocation3] sm:$0xff] %vm1367, %v1089
    %1369 = vst.msk [vmem:[#allocation3 + $0x8] sm:$0xff] %vm1367, %v1094
    %1370 = vst.msk [vmem:[#allocation3 + $0x10] sm:$0xff] %vm1367, %v1099
    %1371 = vst.msk [vmem:[#allocation3 + $0x18] sm:$0xff] %vm1367, %v1104
    %1372 = vst.msk [vmem:[#allocation3 + $0x20] sm:$0xff] %vm1367, %v1109
    %1373 = vst.msk [vmem:[#allocation3 + $0x28] sm:$0xff] %vm1367, %v1114
    %1374 = vst.msk [vmem:[#allocation3 + $0x30] sm:$0xff] %vm1367, %v1119
    %1375 = vst.msk [vmem:[#allocation3 + $0x38] sm:$0xff] %vm1367, %v1124
    %1376 = vst.msk [vmem:[#allocation3 + $0x40] sm:$0xff] %vm1367, %v1129
    %1377 = vst.msk [vmem:[#allocation3 + $0x48] sm:$0xff] %vm1367, %v1134
    %1378 = vst.msk [vmem:[#allocation3 + $0x50] sm:$0xff] %vm1367, %v1139
    %1379 = vst.msk [vmem:[#allocation3 + $0x58] sm:$0xff] %vm1367, %v1144
    %1380 = vst.msk [vmem:[#allocation3 + $0x60] sm:$0xff] %vm1367, %v1149
    %1381 = vst.msk [vmem:[#allocation3 + $0x68] sm:$0xff] %vm1367, %v1154
    %1382 = vst.msk [vmem:[#allocation3 + $0x70] sm:$0xff] %vm1367, %v1159
    %1383 = vst.msk [vmem:[#allocation3 + $0x78] sm:$0xff] %vm1367, %v1164
    %1384 = vst.msk [vmem:[#allocation3 + $0x80] sm:$0xff] %vm1367, %v1169
    %1385 = vst.msk [vmem:[#allocation3 + $0x88] sm:$0xff] %vm1367, %v1174
    %1386 = vst.msk [vmem:[#allocation3 + $0x90] sm:$0xff] %vm1367, %v1179
    %1387 = vst.msk [vmem:[#allocation3 + $0x98] sm:$0xff] %vm1367, %v1184
    %1388 = vst.msk [vmem:[#allocation3 + $0xa0] sm:$0xff] %vm1367, %v1189
    %1389 = vst.msk [vmem:[#allocation3 + $0xa8] sm:$0xff] %vm1367, %v1194
    %1390 = vst.msk [vmem:[#allocation3 + $0xb0] sm:$0xff] %vm1367, %v1199
    %1391 = vst.msk [vmem:[#allocation3 + $0xb8] sm:$0xff] %vm1367, %v1204
    %1392 = vst.msk [vmem:[#allocation3 + $0xc0] sm:$0xff] %vm1367, %v1209
    %1393 = vst.msk [vmem:[#allocation3 + $0xc8] sm:$0xff] %vm1367, %v1214
    %1394 = vst.msk [vmem:[#allocation3 + $0xd0] sm:$0xff] %vm1367, %v1219
    %1395 = vst.msk [vmem:[#allocation3 + $0xd8] sm:$0xff] %vm1367, %v1224
    %1396 = vst.msk [vmem:[#allocation3 + $0xe0] sm:$0xff] %vm1367, %v1229
    %1397 = vst.msk [vmem:[#allocation3 + $0xe8] sm:$0xff] %vm1367, %v1234
    %1398 = vst.msk [vmem:[#allocation3 + $0xf0] sm:$0xff] %vm1367, %v1239
    %1399 = vst.msk [vmem:[#allocation3 + $0xf8] sm:$0xff] %vm1367, %v1244
    %1400 = vst.msk [vmem:[#allocation3 + $0x100] sm:$0xff] %vm1367, %v1249
    %1401 = vst.msk [vmem:[#allocation3 + $0x108] sm:$0xff] %vm1367, %v1254
    %1402 = vst.msk [vmem:[#allocation3 + $0x110] sm:$0xff] %vm1367, %v1259
    %1403 = vst.msk [vmem:[#allocation3 + $0x118] sm:$0xff] %vm1367, %v1264
    %1404 = vst.msk [vmem:[#allocation3 + $0x120] sm:$0xff] %vm1367, %v1269
    %1405 = vst.msk [vmem:[#allocation3 + $0x128] sm:$0xff] %vm1367, %v1274
    %1406 = vst.msk [vmem:[#allocation3 + $0x130] sm:$0xff] %vm1367, %v1279
    %1407 = vst.msk [vmem:[#allocation3 + $0x138] sm:$0xff] %vm1367, %v1284
    %1408 = vst.msk [vmem:[#allocation3 + $0x140] sm:$0xff] %vm1367, %v1289
    %1409 = vst.msk [vmem:[#allocation3 + $0x148] sm:$0xff] %vm1367, %v1294
    %1410 = vst.msk [vmem:[#allocation3 + $0x150] sm:$0xff] %vm1367, %v1299
    %1411 = vst.msk [vmem:[#allocation3 + $0x158] sm:$0xff] %vm1367, %v1304
    %1412 = vst.msk [vmem:[#allocation3 + $0x160] sm:$0xff] %vm1367, %v1309
    %1413 = vst.msk [vmem:[#allocation3 + $0x168] sm:$0xff] %vm1367, %v1314
    %1414 = vst.msk [vmem:[#allocation3 + $0x170] sm:$0xff] %vm1367, %v1319
    %1415 = vst.msk [vmem:[#allocation3 + $0x178] sm:$0xff] %vm1367, %v1324
    %1416 = vst.msk [vmem:[#allocation3 + $0x180] sm:$0xff] %vm1367, %v1329
    %1417 = vst.msk [vmem:[#allocation3 + $0x188] sm:$0xff] %vm1367, %v1334
    %1418 = vst.msk [vmem:[#allocation3 + $0x190] sm:$0xff] %vm1367, %v1339
    %1419 = vst.msk [vmem:[#allocation3 + $0x198] sm:$0xff] %vm1367, %v1344
    %1420 = vst.msk [vmem:[#allocation3 + $0x1a0] sm:$0xff] %vm1367, %v1349
    %1421 = vst.msk [vmem:[#allocation3 + $0x1a8] sm:$0xff] %vm1367, %v1354
    %1422 = vst.msk [vmem:[#allocation3 + $0x1b0] sm:$0xff] %vm1367, %v1359
    %vm1423 = vcmask 519168
    %1424 = vst.msk [vmem:[#allocation3 + $0x1b8] sm:$0xf] %vm1423, %v1364
    %v1425 = vld [vmem:[#allocation3] sm:$0xff]
    %v1426 = vld [vmem:[#allocation3 + $0x8] sm:$0xff]
    %v1427 = vld [vmem:[#allocation3 + $0x10] sm:$0xff]
    %v1428 = vld [vmem:[#allocation3 + $0x18] sm:$0xff]
    %v1429 = vld [vmem:[#allocation3 + $0x20] sm:$0xff]
    %v1430 = vld [vmem:[#allocation3 + $0x28] sm:$0xff]
    %v1431 = vld [vmem:[#allocation3 + $0x30] sm:$0xff]
    %v1432 = vld [vmem:[#allocation3 + $0x38] sm:$0xff]
    %v1433 = vld [vmem:[#allocation3 + $0x40] sm:$0xff]
    %v1434 = vld [vmem:[#allocation3 + $0x48] sm:$0xff]
    %v1435 = vld [vmem:[#allocation3 + $0x50] sm:$0xff]
    %v1436 = vld [vmem:[#allocation3 + $0x58] sm:$0xff]
    %v1437 = vld [vmem:[#allocation3 + $0x60] sm:$0xff]
    %v1438 = vld [vmem:[#allocation3 + $0x68] sm:$0xff]
    %v1439 = vld [vmem:[#allocation3 + $0x70] sm:$0xff]
    %v1440 = vld [vmem:[#allocation3 + $0x78] sm:$0xff]
    %v1441 = vld [vmem:[#allocation3 + $0x80] sm:$0xff]
    %v1442 = vld [vmem:[#allocation3 + $0x88] sm:$0xff]
    %v1443 = vld [vmem:[#allocation3 + $0x90] sm:$0xff]
    %v1444 = vld [vmem:[#allocation3 + $0x98] sm:$0xff]
    %v1445 = vld [vmem:[#allocation3 + $0xa0] sm:$0xff]
    %v1446 = vld [vmem:[#allocation3 + $0xa8] sm:$0xff]
    %v1447 = vld [vmem:[#allocation3 + $0xb0] sm:$0xff]
    %v1448 = vld [vmem:[#allocation3 + $0xb8] sm:$0xff]
    %v1449 = vld [vmem:[#allocation3 + $0xc0] sm:$0xff]
    %v1450 = vld [vmem:[#allocation3 + $0xc8] sm:$0xff]
    %v1451 = vld [vmem:[#allocation3 + $0xd0] sm:$0xff]
    %v1452 = vld [vmem:[#allocation3 + $0xd8] sm:$0xff]
    %v1453 = vld [vmem:[#allocation3 + $0xe0] sm:$0xff]
    %v1454 = vld [vmem:[#allocation3 + $0xe8] sm:$0xff]
    %v1455 = vld [vmem:[#allocation3 + $0xf0] sm:$0xff]
    %v1456 = vld [vmem:[#allocation3 + $0xf8] sm:$0xff]
    %v1457 = vld [vmem:[#allocation3 + $0x100] sm:$0xff]
    %v1458 = vld [vmem:[#allocation3 + $0x108] sm:$0xff]
    %v1459 = vld [vmem:[#allocation3 + $0x110] sm:$0xff]
    %v1460 = vld [vmem:[#allocation3 + $0x118] sm:$0xff]
    %v1461 = vld [vmem:[#allocation3 + $0x120] sm:$0xff]
    %v1462 = vld [vmem:[#allocation3 + $0x128] sm:$0xff]
    %v1463 = vld [vmem:[#allocation3 + $0x130] sm:$0xff]
    %v1464 = vld [vmem:[#allocation3 + $0x138] sm:$0xff]
    %v1465 = vld [vmem:[#allocation3 + $0x140] sm:$0xff]
    %v1466 = vld [vmem:[#allocation3 + $0x148] sm:$0xff]
    %v1467 = vld [vmem:[#allocation3 + $0x150] sm:$0xff]
    %v1468 = vld [vmem:[#allocation3 + $0x158] sm:$0xff]
    %v1469 = vld [vmem:[#allocation3 + $0x160] sm:$0xff]
    %v1470 = vld [vmem:[#allocation3 + $0x168] sm:$0xff]
    %v1471 = vld [vmem:[#allocation3 + $0x170] sm:$0xff]
    %v1472 = vld [vmem:[#allocation3 + $0x178] sm:$0xff]
    %v1473 = vld [vmem:[#allocation3 + $0x180] sm:$0xff]
    %v1474 = vld [vmem:[#allocation3 + $0x188] sm:$0xff]
    %v1475 = vld [vmem:[#allocation3 + $0x190] sm:$0xff]
    %v1476 = vld [vmem:[#allocation3 + $0x198] sm:$0xff]
    %v1477 = vld [vmem:[#allocation3 + $0x1a0] sm:$0xff]
    %v1478 = vld [vmem:[#allocation3 + $0x1a8] sm:$0xff]
    %v1479 = vld [vmem:[#allocation3 + $0x1b0] sm:$0xff]
    %v1480 = vld [vmem:[#allocation3 + $0x1b8] sm:$0xf]
    %v1481 = vld [vmem:[#allocation2 + $0x10] sm:$0xff]
    %v1482 = vld [vmem:[#allocation2 + $0x18] sm:$0xff]
    %v1483 = vld [vmem:[#allocation2 + $0x20] sm:$0xff]
    %v1484 = vld [vmem:[#allocation2 + $0x28] sm:$0xff]
    %v1485 = vld [vmem:[#allocation2 + $0x30] sm:$0xff]
    %v1486 = vld [vmem:[#allocation2 + $0x38] sm:$0xff]
    %v1487 = vld [vmem:[#allocation2 + $0x40] sm:$0xff]
    %v1488 = vld [vmem:[#allocation2 + $0x48] sm:$0xff]
    %v1489 = vld [vmem:[#allocation2 + $0x50] sm:$0xff]
    %v1490 = vld [vmem:[#allocation2 + $0x58] sm:$0xff]
    %v1491 = vld [vmem:[#allocation2 + $0x60] sm:$0xff]
    %v1492 = vld [vmem:[#allocation2 + $0x68] sm:$0xff]
    %v1493 = vld [vmem:[#allocation2 + $0x70] sm:$0xff]
    %v1494 = vld [vmem:[#allocation2 + $0x78] sm:$0xff]
    %v1495 = vld [vmem:[#allocation2 + $0x80] sm:$0xff]
    %v1496 = vld [vmem:[#allocation2 + $0x88] sm:$0xff]
    %v1497 = vld [vmem:[#allocation2 + $0x90] sm:$0xff]
    %v1498 = vld [vmem:[#allocation2 + $0x98] sm:$0xff]
    %v1499 = vld [vmem:[#allocation2 + $0xa0] sm:$0xff]
    %v1500 = vld [vmem:[#allocation2 + $0xa8] sm:$0xff]
    %v1501 = vld [vmem:[#allocation2 + $0xb0] sm:$0xff]
    %v1502 = vld [vmem:[#allocation2 + $0xb8] sm:$0xff]
    %v1503 = vld [vmem:[#allocation2 + $0xc0] sm:$0xff]
    %v1504 = vld [vmem:[#allocation2 + $0xc8] sm:$0xff]
    %v1505 = vld [vmem:[#allocation2 + $0xd0] sm:$0xff]
    %v1506 = vld [vmem:[#allocation2 + $0xd8] sm:$0xff]
    %v1507 = vld [vmem:[#allocation2 + $0xe0] sm:$0xff]
    %v1508 = vld [vmem:[#allocation2 + $0xe8] sm:$0xff]
    %v1509 = vld [vmem:[#allocation2 + $0xf0] sm:$0xff]
    %v1510 = vld [vmem:[#allocation2 + $0xf8] sm:$0xff]
    %v1511 = vld [vmem:[#allocation2 + $0x100] sm:$0xff]
    %v1512 = vld [vmem:[#allocation2 + $0x108] sm:$0xff]
    %v1513 = vld [vmem:[#allocation2 + $0x110] sm:$0xff]
    %v1514 = vld [vmem:[#allocation2 + $0x118] sm:$0xff]
    %v1515 = vld [vmem:[#allocation2 + $0x120] sm:$0xff]
    %v1516 = vld [vmem:[#allocation2 + $0x128] sm:$0xff]
    %v1517 = vld [vmem:[#allocation2 + $0x130] sm:$0xff]
    %v1518 = vld [vmem:[#allocation2 + $0x138] sm:$0xff]
    %v1519 = vld [vmem:[#allocation2 + $0x140] sm:$0xff]
    %v1520 = vld [vmem:[#allocation2 + $0x148] sm:$0xff]
    %v1521 = vld [vmem:[#allocation2 + $0x150] sm:$0xff]
    %v1522 = vld [vmem:[#allocation2 + $0x158] sm:$0xff]
    %v1523 = vld [vmem:[#allocation2 + $0x160] sm:$0xff]
    %v1524 = vld [vmem:[#allocation2 + $0x168] sm:$0xff]
    %v1525 = vld [vmem:[#allocation2 + $0x170] sm:$0xff]
    %v1526 = vld [vmem:[#allocation2 + $0x178] sm:$0xff]
    %v1527 = vld [vmem:[#allocation2 + $0x180] sm:$0xff]
    %v1528 = vld [vmem:[#allocation2 + $0x188] sm:$0xff]
    %v1529 = vld [vmem:[#allocation2 + $0x190] sm:$0xff]
    %v1530 = vld [vmem:[#allocation2 + $0x198] sm:$0xff]
    %v1531 = vld [vmem:[#allocation2 + $0x1a0] sm:$0xff]
    %v1532 = vld [vmem:[#allocation2 + $0x1a8] sm:$0xff]
    %v1533 = vld [vmem:[#allocation2 + $0x1b0] sm:$0xff]
    %v1534 = vld [vmem:[#allocation2 + $0x1b8] sm:$0xff]
    %v1535 = vld [vmem:[#allocation2 + $0x1c0] sm:$0xff]
    %v1536 = vld [vmem:[#allocation2 + $0x1c8] sm:$0xf]
    %s1537 = scalar_lea.vmem %s3, 96
    %v1538 = vld [vmem:[%s1537] sm:$0xff]
    %v1539 = vld [vmem:[%s1537 + $0x8] sm:$0xff]
    %v1540 = vld [vmem:[%s1537 + $0x10] sm:$0xff]
    %v1541 = vld [vmem:[%s1537 + $0x18] sm:$0xff]
    %v1542 = vld [vmem:[%s1537 + $0x20] sm:$0xff]
    %v1543 = vld [vmem:[%s1537 + $0x28] sm:$0xff]
    %v1544 = vld [vmem:[%s1537 + $0x30] sm:$0xff]
    %v1545 = vld [vmem:[%s1537 + $0x38] sm:$0xff]
    %v1546 = vld [vmem:[%s1537 + $0x40] sm:$0xff]
    %v1547 = vld [vmem:[%s1537 + $0x48] sm:$0xff]
    %v1548 = vld [vmem:[%s1537 + $0x50] sm:$0xff]
    %v1549 = vld [vmem:[%s1537 + $0x58] sm:$0xff]
    %v1551 = vsel %vm724, %v1481, 0
    %v1554 = vsel %vm724, %v1482, 0
    %v1557 = vsel %vm724, %v1483, 0
    %v1560 = vsel %vm724, %v1484, 0
    %v1563 = vsel %vm724, %v1485, 0
    %v1566 = vsel %vm724, %v1486, 0
    %v1569 = vsel %vm724, %v1487, 0
    %v1572 = vsel %vm724, %v1488, 0
    %v1575 = vsel %vm724, %v1489, 0
    %v1578 = vsel %vm724, %v1490, 0
    %v1581 = vsel %vm724, %v1491, 0
    %v1584 = vsel %vm724, %v1492, 0
    %v1587 = vsel %vm724, %v1493, 0
    %v1590 = vsel %vm724, %v1494, 0
    %v1593 = vsel %vm724, %v1495, 0
    %v1596 = vsel %vm724, %v1496, 0
    %v1599 = vsel %vm724, %v1497, 0
    %v1602 = vsel %vm724, %v1498, 0
    %v1605 = vsel %vm724, %v1499, 0
    %v1608 = vsel %vm724, %v1500, 0
    %v1611 = vsel %vm724, %v1501, 0
    %v1614 = vsel %vm724, %v1502, 0
    %v1617 = vsel %vm724, %v1503, 0
    %v1620 = vsel %vm724, %v1504, 0
    %v1623 = vsel %vm724, %v1505, 0
    %v1626 = vsel %vm724, %v1506, 0
    %v1629 = vsel %vm724, %v1507, 0
    %v1632 = vsel %vm724, %v1508, 0
    %v1635 = vsel %vm724, %v1509, 0
    %v1638 = vsel %vm724, %v1510, 0
    %v1641 = vsel %vm724, %v1511, 0
    %v1644 = vsel %vm724, %v1512, 0
    %v1647 = vsel %vm724, %v1513, 0
    %v1650 = vsel %vm724, %v1514, 0
    %v1653 = vsel %vm724, %v1515, 0
    %v1656 = vsel %vm724, %v1516, 0
    %v1659 = vsel %vm724, %v1517, 0
    %v1662 = vsel %vm724, %v1518, 0
    %v1665 = vsel %vm724, %v1519, 0
    %v1668 = vsel %vm724, %v1520, 0
    %v1671 = vsel %vm724, %v1521, 0
    %v1674 = vsel %vm724, %v1522, 0
    %v1677 = vsel %vm724, %v1523, 0
    %v1680 = vsel %vm724, %v1524, 0
    %v1683 = vsel %vm724, %v1525, 0
    %v1686 = vsel %vm724, %v1526, 0
    %v1689 = vsel %vm724, %v1527, 0
    %v1692 = vsel %vm724, %v1528, 0
    %v1695 = vsel %vm724, %v1529, 0
    %v1698 = vsel %vm724, %v1530, 0
    %v1701 = vsel %vm724, %v1531, 0
    %v1704 = vsel %vm724, %v1532, 0
    %v1707 = vsel %vm724, %v1533, 0
    %v1710 = vsel %vm724, %v1534, 0
    %v1713 = vsel %vm724, %v1535, 0
    %v1716 = vsel %vm724, %v1536, 0
    %1718 = vmatprep.subr.mxu0 0.0
    %1719 = vmatpush1.msra.mxu0 %v1538
    %1720 = vmatprep.subr.mxu0 0.0
    %1721 = vmatpush1.msra.mxu0 %v1539
    %1722 = vmatprep.subr.mxu0 0.0
    %1723 = vmatpush1.msra.mxu0 %v1540
    %1724 = vmatprep.subr.mxu0 0.0
    %1725 = vmatpush1.msra.mxu0 %v1541
    %1726 = vmatprep.subr.mxu0 0.0
    %1727 = vmatpush1.msra.mxu0 %v1542
    %1728 = vmatprep.subr.mxu0 0.0
    %1729 = vmatpush1.msra.mxu0 %v1543
    %1730 = vmatprep.subr.mxu0 0.0
    %1731 = vmatpush1.msra.mxu0 %v1544
    %1732 = vmatprep.subr.mxu0 0.0
    %1733 = vmatpush1.msra.mxu0 %v1545
    %1734 = vmatprep.subr.mxu0 0.0
    %1735 = vmatpush1.msra.mxu0 %v1546
    %1736 = vmatprep.subr.mxu0 0.0
    %1737 = vmatpush1.msra.mxu0 %v1547
    %1738 = vmatprep.subr.mxu0 0.0
    %1739 = vmatpush1.msra.mxu0 %v1548
    %1740 = vmatprep.subr.mxu0 0.0
    %1741 = vmatpush1.msra.mxu0 %v1549
    %1742 = vmatprep.subr.mxu0 0.0
    %1743 = vmatpush1.msra.mxu0 0.0
    %1744 = vmatprep.subr.mxu0 0.0
    %1745 = vmatpush1.msra.mxu0 0.0
    %1746 = vmatprep.subr.mxu0 0.0
    %1747 = vmatpush1.msra.mxu0 0.0
    %1748 = vmatprep.subr.mxu0 0.0
    %1749 = vmatpush1.msra.mxu0 0.0
    %1750 = vmatprep.subr.mxu0 0.0
    %1751 = vmatpush1.msra.mxu0 0.0
    %1752 = vmatprep.subr.mxu0 0.0
    %1753 = vmatpush1.msra.mxu0 0.0
    %1754 = vmatprep.subr.mxu0 0.0
    %1755 = vmatpush1.msra.mxu0 0.0
    %1756 = vmatprep.subr.mxu0 0.0
    %1757 = vmatpush1.msra.mxu0 0.0
    %1758 = vmatprep.subr.mxu0 0.0
    %1759 = vmatpush1.msra.mxu0 0.0
    %1760 = vmatprep.subr.mxu0 0.0
    %1761 = vmatpush1.msra.mxu0 0.0
    %1762 = vmatprep.subr.mxu0 0.0
    %1763 = vmatpush1.msra.mxu0 0.0
    %1764 = vmatprep.subr.mxu0 0.0
    %1765 = vmatpush1.msra.mxu0 0.0
    %1766 = vmatprep.subr.mxu0 0.0
    %1767 = vmatpush1.msra.mxu0 0.0
    %1768 = vmatprep.subr.mxu0 0.0
    %1769 = vmatpush1.msra.mxu0 0.0
    %1770 = vmatprep.subr.mxu0 0.0
    %1771 = vmatpush1.msra.mxu0 0.0
    %1772 = vmatprep.subr.mxu0 0.0
    %1773 = vmatpush1.msra.mxu0 0.0
    %1774 = vmatprep.subr.mxu0 0.0
    %1775 = vmatpush1.msra.mxu0 0.0
    %1776 = vmatprep.subr.mxu0 0.0
    %1777 = vmatpush1.msra.mxu0 0.0
    %1778 = vmatprep.subr.mxu0 0.0
    %1779 = vmatpush1.msra.mxu0 0.0
    %1780 = vmatprep.subr.mxu0 0.0
    %1781 = vmatpush1.msra.mxu0 0.0
    %1782 = vmatprep.mubr.f32.mxu0 0.0
    %1783 = vmatmul.mubr.f32.gmra.mrb[0].mxu0 %v1551
    %v1784 = vpop.f32.mrb[0].mxu0
    %v1785 = vadd.f32 0.0, %v1784
    %v1786 = vpop.f32.mrb[0].mxu0
    %1787 = vmatprep.mubr.f32.mxu0 0.0
    %1788 = vmatmul.mubr.f32.gmra.mrb[0].mxu0 %v1554
    %v1789 = vpop.f32.mrb[0].mxu0
    %v1790 = vadd.f32 0.0, %v1789
    %v1791 = vpop.f32.mrb[0].mxu0
    %1792 = vmatprep.mubr.f32.mxu0 0.0
    %1793 = vmatmul.mubr.f32.gmra.mrb[0].mxu0 %v1557
    %v1794 = vpop.f32.mrb[0].mxu0
    %v1795 = vadd.f32 0.0, %v1794
    %v1796 = vpop.f32.mrb[0].mxu0
    %1797 = vmatprep.mubr.f32.mxu0 0.0
    %1798 = vmatmul.mubr.f32.gmra.mrb[0].mxu0 %v1560
    %v1799 = vpop.f32.mrb[0].mxu0
    %v1800 = vadd.f32 0.0, %v1799
    %v1801 = vpop.f32.mrb[0].mxu0
    %1802 = vmatprep.mubr.f32.mxu0 0.0
    %1803 = vmatmul.mubr.f32.gmra.mrb[0].mxu0 %v1563
    %v1804 = vpop.f32.mrb[0].mxu0
    %v1805 = vadd.f32 0.0, %v1804
    %v1806 = vpop.f32.mrb[0].mxu0
    %1807 = vmatprep.mubr.f32.mxu0 0.0
    %1808 = vmatmul.mubr.f32.gmra.mrb[0].mxu0 %v1566
    %v1809 = vpop.f32.mrb[0].mxu0
    %v1810 = vadd.f32 0.0, %v1809
    %v1811 = vpop.f32.mrb[0].mxu0
    %1812 = vmatprep.mubr.f32.mxu0 0.0
    %1813 = vmatmul.mubr.f32.gmra.mrb[0].mxu0 %v1569
    %v1814 = vpop.f32.mrb[0].mxu0
    %v1815 = vadd.f32 0.0, %v1814
    %v1816 = vpop.f32.mrb[0].mxu0
    %1817 = vmatprep.mubr.f32.mxu0 0.0
    %1818 = vmatmul.mubr.f32.gmra.mrb[0].mxu0 %v1572
    %v1819 = vpop.f32.mrb[0].mxu0
    %v1820 = vadd.f32 0.0, %v1819
    %v1821 = vpop.f32.mrb[0].mxu0
    %1822 = vmatprep.mubr.f32.mxu0 0.0
    %1823 = vmatmul.mubr.f32.gmra.mrb[0].mxu0 %v1575
    %v1824 = vpop.f32.mrb[0].mxu0
    %v1825 = vadd.f32 0.0, %v1824
    %v1826 = vpop.f32.mrb[0].mxu0
    %1827 = vmatprep.mubr.f32.mxu0 0.0
    %1828 = vmatmul.mubr.f32.gmra.mrb[0].mxu0 %v1578
    %v1829 = vpop.f32.mrb[0].mxu0
    %v1830 = vadd.f32 0.0, %v1829
    %v1831 = vpop.f32.mrb[0].mxu0
    %1832 = vmatprep.mubr.f32.mxu0 0.0
    %1833 = vmatmul.mubr.f32.gmra.mrb[0].mxu0 %v1581
    %v1834 = vpop.f32.mrb[0].mxu0
    %v1835 = vadd.f32 0.0, %v1834
    %v1836 = vpop.f32.mrb[0].mxu0
    %1837 = vmatprep.mubr.f32.mxu0 0.0
    %1838 = vmatmul.mubr.f32.gmra.mrb[0].mxu0 %v1584
    %v1839 = vpop.f32.mrb[0].mxu0
    %v1840 = vadd.f32 0.0, %v1839
    %v1841 = vpop.f32.mrb[0].mxu0
    %1842 = vmatprep.mubr.f32.mxu0 0.0
    %1843 = vmatmul.mubr.f32.gmra.mrb[0].mxu0 %v1587
    %v1844 = vpop.f32.mrb[0].mxu0
    %v1845 = vadd.f32 0.0, %v1844
    %v1846 = vpop.f32.mrb[0].mxu0
    %1847 = vmatprep.mubr.f32.mxu0 0.0
    %1848 = vmatmul.mubr.f32.gmra.mrb[0].mxu0 %v1590
    %v1849 = vpop.f32.mrb[0].mxu0
    %v1850 = vadd.f32 0.0, %v1849
    %v1851 = vpop.f32.mrb[0].mxu0
    %1852 = vmatprep.mubr.f32.mxu0 0.0
    %1853 = vmatmul.mubr.f32.gmra.mrb[0].mxu0 %v1593
    %v1854 = vpop.f32.mrb[0].mxu0
    %v1855 = vadd.f32 0.0, %v1854
    %v1856 = vpop.f32.mrb[0].mxu0
    %1857 = vmatprep.mubr.f32.mxu0 0.0
    %1858 = vmatmul.mubr.f32.gmra.mrb[0].mxu0 %v1596
    %v1859 = vpop.f32.mrb[0].mxu0
    %v1860 = vadd.f32 0.0, %v1859
    %v1861 = vpop.f32.mrb[0].mxu0
    %1862 = vmatprep.mubr.f32.mxu0 0.0
    %1863 = vmatmul.mubr.f32.gmra.mrb[0].mxu0 %v1599
    %v1864 = vpop.f32.mrb[0].mxu0
    %v1865 = vadd.f32 0.0, %v1864
    %v1866 = vpop.f32.mrb[0].mxu0
    %1867 = vmatprep.mubr.f32.mxu0 0.0
    %1868 = vmatmul.mubr.f32.gmra.mrb[0].mxu0 %v1602
    %v1869 = vpop.f32.mrb[0].mxu0
    %v1870 = vadd.f32 0.0, %v1869
    %v1871 = vpop.f32.mrb[0].mxu0
    %1872 = vmatprep.mubr.f32.mxu0 0.0
    %1873 = vmatmul.mubr.f32.gmra.mrb[0].mxu0 %v1605
    %v1874 = vpop.f32.mrb[0].mxu0
    %v1875 = vadd.f32 0.0, %v1874
    %v1876 = vpop.f32.mrb[0].mxu0
    %1877 = vmatprep.mubr.f32.mxu0 0.0
    %1878 = vmatmul.mubr.f32.gmra.mrb[0].mxu0 %v1608
    %v1879 = vpop.f32.mrb[0].mxu0
    %v1880 = vadd.f32 0.0, %v1879
    %v1881 = vpop.f32.mrb[0].mxu0
    %1882 = vmatprep.mubr.f32.mxu0 0.0
    %1883 = vmatmul.mubr.f32.gmra.mrb[0].mxu0 %v1611
    %v1884 = vpop.f32.mrb[0].mxu0
    %v1885 = vadd.f32 0.0, %v1884
    %v1886 = vpop.f32.mrb[0].mxu0
    %1887 = vmatprep.mubr.f32.mxu0 0.0
    %1888 = vmatmul.mubr.f32.gmra.mrb[0].mxu0 %v1614
    %v1889 = vpop.f32.mrb[0].mxu0
    %v1890 = vadd.f32 0.0, %v1889
    %v1891 = vpop.f32.mrb[0].mxu0
    %1892 = vmatprep.mubr.f32.mxu0 0.0
    %1893 = vmatmul.mubr.f32.gmra.mrb[0].mxu0 %v1617
    %v1894 = vpop.f32.mrb[0].mxu0
    %v1895 = vadd.f32 0.0, %v1894
    %v1896 = vpop.f32.mrb[0].mxu0
    %1897 = vmatprep.mubr.f32.mxu0 0.0
    %1898 = vmatmul.mubr.f32.gmra.mrb[0].mxu0 %v1620
    %v1899 = vpop.f32.mrb[0].mxu0
    %v1900 = vadd.f32 0.0, %v1899
    %v1901 = vpop.f32.mrb[0].mxu0
    %1902 = vmatprep.mubr.f32.mxu0 0.0
    %1903 = vmatmul.mubr.f32.gmra.mrb[0].mxu0 %v1623
    %v1904 = vpop.f32.mrb[0].mxu0
    %v1905 = vadd.f32 0.0, %v1904
    %v1906 = vpop.f32.mrb[0].mxu0
    %1907 = vmatprep.mubr.f32.mxu0 0.0
    %1908 = vmatmul.mubr.f32.gmra.mrb[0].mxu0 %v1626
    %v1909 = vpop.f32.mrb[0].mxu0
    %v1910 = vadd.f32 0.0, %v1909
    %v1911 = vpop.f32.mrb[0].mxu0
    %1912 = vmatprep.mubr.f32.mxu0 0.0
    %1913 = vmatmul.mubr.f32.gmra.mrb[0].mxu0 %v1629
    %v1914 = vpop.f32.mrb[0].mxu0
    %v1915 = vadd.f32 0.0, %v1914
    %v1916 = vpop.f32.mrb[0].mxu0
    %1917 = vmatprep.mubr.f32.mxu0 0.0
    %1918 = vmatmul.mubr.f32.gmra.mrb[0].mxu0 %v1632
    %v1919 = vpop.f32.mrb[0].mxu0
    %v1920 = vadd.f32 0.0, %v1919
    %v1921 = vpop.f32.mrb[0].mxu0
    %1922 = vmatprep.mubr.f32.mxu0 0.0
    %1923 = vmatmul.mubr.f32.gmra.mrb[0].mxu0 %v1635
    %v1924 = vpop.f32.mrb[0].mxu0
    %v1925 = vadd.f32 0.0, %v1924
    %v1926 = vpop.f32.mrb[0].mxu0
    %1927 = vmatprep.mubr.f32.mxu0 0.0
    %1928 = vmatmul.mubr.f32.gmra.mrb[0].mxu0 %v1638
    %v1929 = vpop.f32.mrb[0].mxu0
    %v1930 = vadd.f32 0.0, %v1929
    %v1931 = vpop.f32.mrb[0].mxu0
    %1932 = vmatprep.mubr.f32.mxu0 0.0
    %1933 = vmatmul.mubr.f32.gmra.mrb[0].mxu0 %v1641
    %v1934 = vpop.f32.mrb[0].mxu0
    %v1935 = vadd.f32 0.0, %v1934
    %v1936 = vpop.f32.mrb[0].mxu0
    %1937 = vmatprep.mubr.f32.mxu0 0.0
    %1938 = vmatmul.mubr.f32.gmra.mrb[0].mxu0 %v1644
    %v1939 = vpop.f32.mrb[0].mxu0
    %v1940 = vadd.f32 0.0, %v1939
    %v1941 = vpop.f32.mrb[0].mxu0
    %1942 = vmatprep.mubr.f32.mxu0 0.0
    %1943 = vmatmul.mubr.f32.gmra.mrb[0].mxu0 %v1647
    %v1944 = vpop.f32.mrb[0].mxu0
    %v1945 = vadd.f32 0.0, %v1944
    %v1946 = vpop.f32.mrb[0].mxu0
    %1947 = vmatprep.mubr.f32.mxu0 0.0
    %1948 = vmatmul.mubr.f32.gmra.mrb[0].mxu0 %v1650
    %v1949 = vpop.f32.mrb[0].mxu0
    %v1950 = vadd.f32 0.0, %v1949
    %v1951 = vpop.f32.mrb[0].mxu0
    %1952 = vmatprep.mubr.f32.mxu0 0.0
    %1953 = vmatmul.mubr.f32.gmra.mrb[0].mxu0 %v1653
    %v1954 = vpop.f32.mrb[0].mxu0
    %v1955 = vadd.f32 0.0, %v1954
    %v1956 = vpop.f32.mrb[0].mxu0
    %1957 = vmatprep.mubr.f32.mxu0 0.0
    %1958 = vmatmul.mubr.f32.gmra.mrb[0].mxu0 %v1656
    %v1959 = vpop.f32.mrb[0].mxu0
    %v1960 = vadd.f32 0.0, %v1959
    %v1961 = vpop.f32.mrb[0].mxu0
    %1962 = vmatprep.mubr.f32.mxu0 0.0
    %1963 = vmatmul.mubr.f32.gmra.mrb[0].mxu0 %v1659
    %v1964 = vpop.f32.mrb[0].mxu0
    %v1965 = vadd.f32 0.0, %v1964
    %v1966 = vpop.f32.mrb[0].mxu0
    %1967 = vmatprep.mubr.f32.mxu0 0.0
    %1968 = vmatmul.mubr.f32.gmra.mrb[0].mxu0 %v1662
    %v1969 = vpop.f32.mrb[0].mxu0
    %v1970 = vadd.f32 0.0, %v1969
    %v1971 = vpop.f32.mrb[0].mxu0
    %1972 = vmatprep.mubr.f32.mxu0 0.0
    %1973 = vmatmul.mubr.f32.gmra.mrb[0].mxu0 %v1665
    %v1974 = vpop.f32.mrb[0].mxu0
    %v1975 = vadd.f32 0.0, %v1974
    %v1976 = vpop.f32.mrb[0].mxu0
    %1977 = vmatprep.mubr.f32.mxu0 0.0
    %1978 = vmatmul.mubr.f32.gmra.mrb[0].mxu0 %v1668
    %v1979 = vpop.f32.mrb[0].mxu0
    %v1980 = vadd.f32 0.0, %v1979
    %v1981 = vpop.f32.mrb[0].mxu0
    %1982 = vmatprep.mubr.f32.mxu0 0.0
    %1983 = vmatmul.mubr.f32.gmra.mrb[0].mxu0 %v1671
    %v1984 = vpop.f32.mrb[0].mxu0
    %v1985 = vadd.f32 0.0, %v1984
    %v1986 = vpop.f32.mrb[0].mxu0
    %1987 = vmatprep.mubr.f32.mxu0 0.0
    %1988 = vmatmul.mubr.f32.gmra.mrb[0].mxu0 %v1674
    %v1989 = vpop.f32.mrb[0].mxu0
    %v1990 = vadd.f32 0.0, %v1989
    %v1991 = vpop.f32.mrb[0].mxu0
    %1992 = vmatprep.mubr.f32.mxu0 0.0
    %1993 = vmatmul.mubr.f32.gmra.mrb[0].mxu0 %v1677
    %v1994 = vpop.f32.mrb[0].mxu0
    %v1995 = vadd.f32 0.0, %v1994
    %v1996 = vpop.f32.mrb[0].mxu0
    %1997 = vmatprep.mubr.f32.mxu0 0.0
    %1998 = vmatmul.mubr.f32.gmra.mrb[0].mxu0 %v1680
    %v1999 = vpop.f32.mrb[0].mxu0
    %v2000 = vadd.f32 0.0, %v1999
    %v2001 = vpop.f32.mrb[0].mxu0
    %2002 = vmatprep.mubr.f32.mxu0 0.0
    %2003 = vmatmul.mubr.f32.gmra.mrb[0].mxu0 %v1683
    %v2004 = vpop.f32.mrb[0].mxu0
    %v2005 = vadd.f32 0.0, %v2004
    %v2006 = vpop.f32.mrb[0].mxu0
    %2007 = vmatprep.mubr.f32.mxu0 0.0
    %2008 = vmatmul.mubr.f32.gmra.mrb[0].mxu0 %v1686
    %v2009 = vpop.f32.mrb[0].mxu0
    %v2010 = vadd.f32 0.0, %v2009
    %v2011 = vpop.f32.mrb[0].mxu0
    %2012 = vmatprep.mubr.f32.mxu0 0.0
    %2013 = vmatmul.mubr.f32.gmra.mrb[0].mxu0 %v1689
    %v2014 = vpop.f32.mrb[0].mxu0
    %v2015 = vadd.f32 0.0, %v2014
    %v2016 = vpop.f32.mrb[0].mxu0
    %2017 = vmatprep.mubr.f32.mxu0 0.0
    %2018 = vmatmul.mubr.f32.gmra.mrb[0].mxu0 %v1692
    %v2019 = vpop.f32.mrb[0].mxu0
    %v2020 = vadd.f32 0.0, %v2019
    %v2021 = vpop.f32.mrb[0].mxu0
    %2022 = vmatprep.mubr.f32.mxu0 0.0
    %2023 = vmatmul.mubr.f32.gmra.mrb[0].mxu0 %v1695
    %v2024 = vpop.f32.mrb[0].mxu0
    %v2025 = vadd.f32 0.0, %v2024
    %v2026 = vpop.f32.mrb[0].mxu0
    %2027 = vmatprep.mubr.f32.mxu0 0.0
    %2028 = vmatmul.mubr.f32.gmra.mrb[0].mxu0 %v1698
    %v2029 = vpop.f32.mrb[0].mxu0
    %v2030 = vadd.f32 0.0, %v2029
    %v2031 = vpop.f32.mrb[0].mxu0
    %2032 = vmatprep.mubr.f32.mxu0 0.0
    %2033 = vmatmul.mubr.f32.gmra.mrb[0].mxu0 %v1701
    %v2034 = vpop.f32.mrb[0].mxu0
    %v2035 = vadd.f32 0.0, %v2034
    %v2036 = vpop.f32.mrb[0].mxu0
    %2037 = vmatprep.mubr.f32.mxu0 0.0
    %2038 = vmatmul.mubr.f32.gmra.mrb[0].mxu0 %v1704
    %v2039 = vpop.f32.mrb[0].mxu0
    %v2040 = vadd.f32 0.0, %v2039
    %v2041 = vpop.f32.mrb[0].mxu0
    %2042 = vmatprep.mubr.f32.mxu0 0.0
    %2043 = vmatmul.mubr.f32.gmra.mrb[0].mxu0 %v1707
    %v2044 = vpop.f32.mrb[0].mxu0
    %v2045 = vadd.f32 0.0, %v2044
    %v2046 = vpop.f32.mrb[0].mxu0
    %2047 = vmatprep.mubr.f32.mxu0 0.0
    %2048 = vmatmul.mubr.f32.gmra.mrb[0].mxu0 %v1710
    %v2049 = vpop.f32.mrb[0].mxu0
    %v2050 = vadd.f32 0.0, %v2049
    %v2051 = vpop.f32.mrb[0].mxu0
    %2052 = vmatprep.mubr.f32.mxu0 0.0
    %2053 = vmatmul.mubr.f32.gmra.mrb[0].mxu0 %v1713
    %v2054 = vpop.f32.mrb[0].mxu0
    %v2055 = vadd.f32 0.0, %v2054
    %v2056 = vpop.f32.mrb[0].mxu0
    %2057 = vmatprep.mubr.f32.mxu0 0.0
    %2058 = vmatmul.mubr.f32.gmra.mrb[0].mxu0 %v1716
    %v2059 = vpop.f32.mrb[0].mxu0
    %v2060 = vadd.f32 0.0, %v2059
    %v2061 = vpop.f32.mrb[0].mxu0
    %2062 = vdwg.mxu0
    %v2063 = vadd.f32 %v1425, %v1785
    %v2064 = vadd.f32 %v1426, %v1790
    %v2065 = vadd.f32 %v1427, %v1795
    %v2066 = vadd.f32 %v1428, %v1800
    %v2067 = vadd.f32 %v1429, %v1805
    %v2068 = vadd.f32 %v1430, %v1810
    %v2069 = vadd.f32 %v1431, %v1815
    %v2070 = vadd.f32 %v1432, %v1820
    %v2071 = vadd.f32 %v1433, %v1825
    %v2072 = vadd.f32 %v1434, %v1830
    %v2073 = vadd.f32 %v1435, %v1835
    %v2074 = vadd.f32 %v1436, %v1840
    %v2075 = vadd.f32 %v1437, %v1845
    %v2076 = vadd.f32 %v1438, %v1850
    %v2077 = vadd.f32 %v1439, %v1855
    %v2078 = vadd.f32 %v1440, %v1860
    %v2079 = vadd.f32 %v1441, %v1865
    %v2080 = vadd.f32 %v1442, %v1870
    %v2081 = vadd.f32 %v1443, %v1875
    %v2082 = vadd.f32 %v1444, %v1880
    %v2083 = vadd.f32 %v1445, %v1885
    %v2084 = vadd.f32 %v1446, %v1890
    %v2085 = vadd.f32 %v1447, %v1895
    %v2086 = vadd.f32 %v1448, %v1900
    %v2087 = vadd.f32 %v1449, %v1905
    %v2088 = vadd.f32 %v1450, %v1910
    %v2089 = vadd.f32 %v1451, %v1915
    %v2090 = vadd.f32 %v1452, %v1920
    %v2091 = vadd.f32 %v1453, %v1925
    %v2092 = vadd.f32 %v1454, %v1930
    %v2093 = vadd.f32 %v1455, %v1935
    %v2094 = vadd.f32 %v1456, %v1940
    %v2095 = vadd.f32 %v1457, %v1945
    %v2096 = vadd.f32 %v1458, %v1950
    %v2097 = vadd.f32 %v1459, %v1955
    %v2098 = vadd.f32 %v1460, %v1960
    %v2099 = vadd.f32 %v1461, %v1965
    %v2100 = vadd.f32 %v1462, %v1970
    %v2101 = vadd.f32 %v1463, %v1975
    %v2102 = vadd.f32 %v1464, %v1980
    %v2103 = vadd.f32 %v1465, %v1985
    %v2104 = vadd.f32 %v1466, %v1990
    %v2105 = vadd.f32 %v1467, %v1995
    %v2106 = vadd.f32 %v1468, %v2000
    %v2107 = vadd.f32 %v1469, %v2005
    %v2108 = vadd.f32 %v1470, %v2010
    %v2109 = vadd.f32 %v1471, %v2015
    %v2110 = vadd.f32 %v1472, %v2020
    %v2111 = vadd.f32 %v1473, %v2025
    %v2112 = vadd.f32 %v1474, %v2030
    %v2113 = vadd.f32 %v1475, %v2035
    %v2114 = vadd.f32 %v1476, %v2040
    %v2115 = vadd.f32 %v1477, %v2045
    %v2116 = vadd.f32 %v1478, %v2050
    %v2117 = vadd.f32 %v1479, %v2055
    %v2118 = vadd.f32 %v1480, %v2060
    %2119 = vst.msk [vmem:[#allocation3] sm:$0xff] %vm1367, %v2063
    %2120 = vst.msk [vmem:[#allocation3 + $0x8] sm:$0xff] %vm1367, %v2064
    %2121 = vst.msk [vmem:[#allocation3 + $0x10] sm:$0xff] %vm1367, %v2065
    %2122 = vst.msk [vmem:[#allocation3 + $0x18] sm:$0xff] %vm1367, %v2066
    %2123 = vst.msk [vmem:[#allocation3 + $0x20] sm:$0xff] %vm1367, %v2067
    %2124 = vst.msk [vmem:[#allocation3 + $0x28] sm:$0xff] %vm1367, %v2068
    %2125 = vst.msk [vmem:[#allocation3 + $0x30] sm:$0xff] %vm1367, %v2069
    %2126 = vst.msk [vmem:[#allocation3 + $0x38] sm:$0xff] %vm1367, %v2070
    %2127 = vst.msk [vmem:[#allocation3 + $0x40] sm:$0xff] %vm1367, %v2071
    %2128 = vst.msk [vmem:[#allocation3 + $0x48] sm:$0xff] %vm1367, %v2072
    %2129 = vst.msk [vmem:[#allocation3 + $0x50] sm:$0xff] %vm1367, %v2073
    %2130 = vst.msk [vmem:[#allocation3 + $0x58] sm:$0xff] %vm1367, %v2074
    %2131 = vst.msk [vmem:[#allocation3 + $0x60] sm:$0xff] %vm1367, %v2075
    %2132 = vst.msk [vmem:[#allocation3 + $0x68] sm:$0xff] %vm1367, %v2076
    %2133 = vst.msk [vmem:[#allocation3 + $0x70] sm:$0xff] %vm1367, %v2077
    %2134 = vst.msk [vmem:[#allocation3 + $0x78] sm:$0xff] %vm1367, %v2078
    %2135 = vst.msk [vmem:[#allocation3 + $0x80] sm:$0xff] %vm1367, %v2079
    %2136 = vst.msk [vmem:[#allocation3 + $0x88] sm:$0xff] %vm1367, %v2080
    %2137 = vst.msk [vmem:[#allocation3 + $0x90] sm:$0xff] %vm1367, %v2081
    %2138 = vst.msk [vmem:[#allocation3 + $0x98] sm:$0xff] %vm1367, %v2082
    %2139 = vst.msk [vmem:[#allocation3 + $0xa0] sm:$0xff] %vm1367, %v2083
    %2140 = vst.msk [vmem:[#allocation3 + $0xa8] sm:$0xff] %vm1367, %v2084
    %2141 = vst.msk [vmem:[#allocation3 + $0xb0] sm:$0xff] %vm1367, %v2085
    %2142 = vst.msk [vmem:[#allocation3 + $0xb8] sm:$0xff] %vm1367, %v2086
    %2143 = vst.msk [vmem:[#allocation3 + $0xc0] sm:$0xff] %vm1367, %v2087
    %2144 = vst.msk [vmem:[#allocation3 + $0xc8] sm:$0xff] %vm1367, %v2088
    %2145 = vst.msk [vmem:[#allocation3 + $0xd0] sm:$0xff] %vm1367, %v2089
    %2146 = vst.msk [vmem:[#allocation3 + $0xd8] sm:$0xff] %vm1367, %v2090
    %2147 = vst.msk [vmem:[#allocation3 + $0xe0] sm:$0xff] %vm1367, %v2091
    %2148 = vst.msk [vmem:[#allocation3 + $0xe8] sm:$0xff] %vm1367, %v2092
    %2149 = vst.msk [vmem:[#allocation3 + $0xf0] sm:$0xff] %vm1367, %v2093
    %2150 = vst.msk [vmem:[#allocation3 + $0xf8] sm:$0xff] %vm1367, %v2094
    %2151 = vst.msk [vmem:[#allocation3 + $0x100] sm:$0xff] %vm1367, %v2095
    %2152 = vst.msk [vmem:[#allocation3 + $0x108] sm:$0xff] %vm1367, %v2096
    %2153 = vst.msk [vmem:[#allocation3 + $0x110] sm:$0xff] %vm1367, %v2097
    %2154 = vst.msk [vmem:[#allocation3 + $0x118] sm:$0xff] %vm1367, %v2098
    %2155 = vst.msk [vmem:[#allocation3 + $0x120] sm:$0xff] %vm1367, %v2099
    %2156 = vst.msk [vmem:[#allocation3 + $0x128] sm:$0xff] %vm1367, %v2100
    %2157 = vst.msk [vmem:[#allocation3 + $0x130] sm:$0xff] %vm1367, %v2101
    %2158 = vst.msk [vmem:[#allocation3 + $0x138] sm:$0xff] %vm1367, %v2102
    %2159 = vst.msk [vmem:[#allocation3 + $0x140] sm:$0xff] %vm1367, %v2103
    %2160 = vst.msk [vmem:[#allocation3 + $0x148] sm:$0xff] %vm1367, %v2104
    %2161 = vst.msk [vmem:[#allocation3 + $0x150] sm:$0xff] %vm1367, %v2105
    %2162 = vst.msk [vmem:[#allocation3 + $0x158] sm:$0xff] %vm1367, %v2106
    %2163 = vst.msk [vmem:[#allocation3 + $0x160] sm:$0xff] %vm1367, %v2107
    %2164 = vst.msk [vmem:[#allocation3 + $0x168] sm:$0xff] %vm1367, %v2108
    %2165 = vst.msk [vmem:[#allocation3 + $0x170] sm:$0xff] %vm1367, %v2109
    %2166 = vst.msk [vmem:[#allocation3 + $0x178] sm:$0xff] %vm1367, %v2110
    %2167 = vst.msk [vmem:[#allocation3 + $0x180] sm:$0xff] %vm1367, %v2111
    %2168 = vst.msk [vmem:[#allocation3 + $0x188] sm:$0xff] %vm1367, %v2112
    %2169 = vst.msk [vmem:[#allocation3 + $0x190] sm:$0xff] %vm1367, %v2113
    %2170 = vst.msk [vmem:[#allocation3 + $0x198] sm:$0xff] %vm1367, %v2114
    %2171 = vst.msk [vmem:[#allocation3 + $0x1a0] sm:$0xff] %vm1367, %v2115
    %2172 = vst.msk [vmem:[#allocation3 + $0x1a8] sm:$0xff] %vm1367, %v2116
    %2173 = vst.msk [vmem:[#allocation3 + $0x1b0] sm:$0xff] %vm1367, %v2117
    %2174 = vst.msk [vmem:[#allocation3 + $0x1b8] sm:$0xf] %vm1423, %v2118
    %v2175 = vld [vmem:[#allocation3] sm:$0xff]
    %v2176 = vld [vmem:[#allocation3 + $0x8] sm:$0xff]
    %v2177 = vld [vmem:[#allocation3 + $0x10] sm:$0xff]
    %v2178 = vld [vmem:[#allocation3 + $0x18] sm:$0xff]
    %v2179 = vld [vmem:[#allocation3 + $0x20] sm:$0xff]
    %v2180 = vld [vmem:[#allocation3 + $0x28] sm:$0xff]
    %v2181 = vld [vmem:[#allocation3 + $0x30] sm:$0xff]
    %v2182 = vld [vmem:[#allocation3 + $0x38] sm:$0xff]
    %v2183 = vld [vmem:[#allocation3 + $0x40] sm:$0xff]
    %v2184 = vld [vmem:[#allocation3 + $0x48] sm:$0xff]
    %v2185 = vld [vmem:[#allocation3 + $0x50] sm:$0xff]
    %v2186 = vld [vmem:[#allocation3 + $0x58] sm:$0xff]
    %v2187 = vld [vmem:[#allocation3 + $0x60] sm:$0xff]
    %v2188 = vld [vmem:[#allocation3 + $0x68] sm:$0xff]
    %v2189 = vld [vmem:[#allocation3 + $0x70] sm:$0xff]
    %v2190 = vld [vmem:[#allocation3 + $0x78] sm:$0xff]
    %v2191 = vld [vmem:[#allocation3 + $0x80] sm:$0xff]
    %v2192 = vld [vmem:[#allocation3 + $0x88] sm:$0xff]
    %v2193 = vld [vmem:[#allocation3 + $0x90] sm:$0xff]
    %v2194 = vld [vmem:[#allocation3 + $0x98] sm:$0xff]
    %v2195 = vld [vmem:[#allocation3 + $0xa0] sm:$0xff]
    %v2196 = vld [vmem:[#allocation3 + $0xa8] sm:$0xff]
    %v2197 = vld [vmem:[#allocation3 + $0xb0] sm:$0xff]
    %v2198 = vld [vmem:[#allocation3 + $0xb8] sm:$0xff]
    %v2199 = vld [vmem:[#allocation3 + $0xc0] sm:$0xff]
    %v2200 = vld [vmem:[#allocation3 + $0xc8] sm:$0xff]
    %v2201 = vld [vmem:[#allocation3 + $0xd0] sm:$0xff]
    %v2202 = vld [vmem:[#allocation3 + $0xd8] sm:$0xff]
    %v2203 = vld [vmem:[#allocation3 + $0xe0] sm:$0xff]
    %v2204 = vld [vmem:[#allocation3 + $0xe8] sm:$0xff]
    %v2205 = vld [vmem:[#allocation3 + $0xf0] sm:$0xff]
    %v2206 = vld [vmem:[#allocation3 + $0xf8] sm:$0xff]
    %v2207 = vld [vmem:[#allocation3 + $0x100] sm:$0xff]
    %v2208 = vld [vmem:[#allocation3 + $0x108] sm:$0xff]
    %v2209 = vld [vmem:[#allocation3 + $0x110] sm:$0xff]
    %v2210 = vld [vmem:[#allocation3 + $0x118] sm:$0xff]
    %v2211 = vld [vmem:[#allocation3 + $0x120] sm:$0xff]
    %v2212 = vld [vmem:[#allocation3 + $0x128] sm:$0xff]
    %v2213 = vld [vmem:[#allocation3 + $0x130] sm:$0xff]
    %v2214 = vld [vmem:[#allocation3 + $0x138] sm:$0xff]
    %v2215 = vld [vmem:[#allocation3 + $0x140] sm:$0xff]
    %v2216 = vld [vmem:[#allocation3 + $0x148] sm:$0xff]
    %v2217 = vld [vmem:[#allocation3 + $0x150] sm:$0xff]
    %v2218 = vld [vmem:[#allocation3 + $0x158] sm:$0xff]
    %v2219 = vld [vmem:[#allocation3 + $0x160] sm:$0xff]
    %v2220 = vld [vmem:[#allocation3 + $0x168] sm:$0xff]
    %v2221 = vld [vmem:[#allocation3 + $0x170] sm:$0xff]
    %v2222 = vld [vmem:[#allocation3 + $0x178] sm:$0xff]
    %v2223 = vld [vmem:[#allocation3 + $0x180] sm:$0xff]
    %v2224 = vld [vmem:[#allocation3 + $0x188] sm:$0xff]
    %v2225 = vld [vmem:[#allocation3 + $0x190] sm:$0xff]
    %v2226 = vld [vmem:[#allocation3 + $0x198] sm:$0xff]
    %v2227 = vld [vmem:[#allocation3 + $0x1a0] sm:$0xff]
    %v2228 = vld [vmem:[#allocation3 + $0x1a8] sm:$0xff]
    %v2229 = vld [vmem:[#allocation3 + $0x1b0] sm:$0xff]
    %v2230 = vld [vmem:[#allocation3 + $0x1b8] sm:$0xf]
    %v2231 = vld [vmem:[#allocation2 + $0x20] sm:$0xff]
    %v2232 = vld [vmem:[#allocation2 + $0x28] sm:$0xff]
    %v2233 = vld [vmem:[#allocation2 + $0x30] sm:$0xff]
    %v2234 = vld [vmem:[#allocation2 + $0x38] sm:$0xff]
    %v2235 = vld [vmem:[#allocation2 + $0x40] sm:$0xff]
    %v2236 = vld [vmem:[#allocation2 + $0x48] sm:$0xff]
    %v2237 = vld [vmem:[#allocation2 + $0x50] sm:$0xff]
    %v2238 = vld [vmem:[#allocation2 + $0x58] sm:$0xff]
    %v2239 = vld [vmem:[#allocation2 + $0x60] sm:$0xff]
    %v2240 = vld [vmem:[#allocation2 + $0x68] sm:$0xff]
    %v2241 = vld [vmem:[#allocation2 + $0x70] sm:$0xff]
    %v2242 = vld [vmem:[#allocation2 + $0x78] sm:$0xff]
    %v2243 = vld [vmem:[#allocation2 + $0x80] sm:$0xff]
    %v2244 = vld [vmem:[#allocation2 + $0x88] sm:$0xff]
    %v2245 = vld [vmem:[#allocation2 + $0x90] sm:$0xff]
    %v2246 = vld [vmem:[#allocation2 + $0x98] sm:$0xff]
    %v2247 = vld [vmem:[#allocation2 + $0xa0] sm:$0xff]
    %v2248 = vld [vmem:[#allocation2 + $0xa8] sm:$0xff]
    %v2249 = vld [vmem:[#allocation2 + $0xb0] sm:$0xff]
    %v2250 = vld [vmem:[#allocation2 + $0xb8] sm:$0xff]
    %v2251 = vld [vmem:[#allocation2 + $0xc0] sm:$0xff]
    %v2252 = vld [vmem:[#allocation2 + $0xc8] sm:$0xff]
    %v2253 = vld [vmem:[#allocation2 + $0xd0] sm:$0xff]
    %v2254 = vld [vmem:[#allocation2 + $0xd8] sm:$0xff]
    %v2255 = vld [vmem:[#allocation2 + $0xe0] sm:$0xff]
    %v2256 = vld [vmem:[#allocation2 + $0xe8] sm:$0xff]
    %v2257 = vld [vmem:[#allocation2 + $0xf0] sm:$0xff]
    %v2258 = vld [vmem:[#allocation2 + $0xf8] sm:$0xff]
    %v2259 = vld [vmem:[#allocation2 + $0x100] sm:$0xff]
    %v2260 = vld [vmem:[#allocation2 + $0x108] sm:$0xff]
    %v2261 = vld [vmem:[#allocation2 + $0x110] sm:$0xff]
    %v2262 = vld [vmem:[#allocation2 + $0x118] sm:$0xff]
    %v2263 = vld [vmem:[#allocation2 + $0x120] sm:$0xff]
    %v2264 = vld [vmem:[#allocation2 + $0x128] sm:$0xff]
    %v2265 = vld [vmem:[#allocation2 + $0x130] sm:$0xff]
    %v2266 = vld [vmem:[#allocation2 + $0x138] sm:$0xff]
    %v2267 = vld [vmem:[#allocation2 + $0x140] sm:$0xff]
    %v2268 = vld [vmem:[#allocation2 + $0x148] sm:$0xff]
    %v2269 = vld [vmem:[#allocation2 + $0x150] sm:$0xff]
    %v2270 = vld [vmem:[#allocation2 + $0x158] sm:$0xff]
    %v2271 = vld [vmem:[#allocation2 + $0x160] sm:$0xff]
    %v2272 = vld [vmem:[#allocation2 + $0x168] sm:$0xff]
    %v2273 = vld [vmem:[#allocation2 + $0x170] sm:$0xff]
    %v2274 = vld [vmem:[#allocation2 + $0x178] sm:$0xff]
    %v2275 = vld [vmem:[#allocation2 + $0x180] sm:$0xff]
    %v2276 = vld [vmem:[#allocation2 + $0x188] sm:$0xff]
    %v2277 = vld [vmem:[#allocation2 + $0x190] sm:$0xff]
    %v2278 = vld [vmem:[#allocation2 + $0x198] sm:$0xff]
    %v2279 = vld [vmem:[#allocation2 + $0x1a0] sm:$0xff]
    %v2280 = vld [vmem:[#allocation2 + $0x1a8] sm:$0xff]
    %v2281 = vld [vmem:[#allocation2 + $0x1b0] sm:$0xff]
    %v2282 = vld [vmem:[#allocation2 + $0x1b8] sm:$0xff]
    %v2283 = vld [vmem:[#allocation2 + $0x1c0] sm:$0xff]
    %v2284 = vld [vmem:[#allocation2 + $0x1c8] sm:$0xff]
    %v2285 = vld [vmem:[#allocation2 + $0x1d0] sm:$0xff]
    %v2286 = vld [vmem:[#allocation2 + $0x1d8] sm:$0xf]
    %s2287 = scalar_lea.vmem %s3, 192
    %v2288 = vld [vmem:[%s2287] sm:$0xff]
    %v2289 = vld [vmem:[%s2287 + $0x8] sm:$0xff]
    %v2290 = vld [vmem:[%s2287 + $0x10] sm:$0xff]
    %v2291 = vld [vmem:[%s2287 + $0x18] sm:$0xff]
    %v2292 = vld [vmem:[%s2287 + $0x20] sm:$0xff]
    %v2293 = vld [vmem:[%s2287 + $0x28] sm:$0xff]
    %v2294 = vld [vmem:[%s2287 + $0x30] sm:$0xff]
    %v2295 = vld [vmem:[%s2287 + $0x38] sm:$0xff]
    %v2296 = vld [vmem:[%s2287 + $0x40] sm:$0xff]
    %v2297 = vld [vmem:[%s2287 + $0x48] sm:$0xff]
    %v2298 = vld [vmem:[%s2287 + $0x50] sm:$0xff]
    %v2299 = vld [vmem:[%s2287 + $0x58] sm:$0xff]
    %v2301 = vsel %vm724, %v2231, 0
    %v2304 = vsel %vm724, %v2232, 0
    %v2307 = vsel %vm724, %v2233, 0
    %v2310 = vsel %vm724, %v2234, 0
    %v2313 = vsel %vm724, %v2235, 0
    %v2316 = vsel %vm724, %v2236, 0
    %v2319 = vsel %vm724, %v2237, 0
    %v2322 = vsel %vm724, %v2238, 0
    %v2325 = vsel %vm724, %v2239, 0
    %v2328 = vsel %vm724, %v2240, 0
    %v2331 = vsel %vm724, %v2241, 0
    %v2334 = vsel %vm724, %v2242, 0
    %v2337 = vsel %vm724, %v2243, 0
    %v2340 = vsel %vm724, %v2244, 0
    %v2343 = vsel %vm724, %v2245, 0
    %v2346 = vsel %vm724, %v2246, 0
    %v2349 = vsel %vm724, %v2247, 0
    %v2352 = vsel %vm724, %v2248, 0
    %v2355 = vsel %vm724, %v2249, 0
    %v2358 = vsel %vm724, %v2250, 0
    %v2361 = vsel %vm724, %v2251, 0
    %v2364 = vsel %vm724, %v2252, 0
    %v2367 = vsel %vm724, %v2253, 0
    %v2370 = vsel %vm724, %v2254, 0
    %v2373 = vsel %vm724, %v2255, 0
    %v2376 = vsel %vm724, %v2256, 0
    %v2379 = vsel %vm724, %v2257, 0
    %v2382 = vsel %vm724, %v2258, 0
    %v2385 = vsel %vm724, %v2259, 0
    %v2388 = vsel %vm724, %v2260, 0
    %v2391 = vsel %vm724, %v2261, 0
    %v2394 = vsel %vm724, %v2262, 0
    %v2397 = vsel %vm724, %v2263, 0
    %v2400 = vsel %vm724, %v2264, 0
    %v2403 = vsel %vm724, %v2265, 0
    %v2406 = vsel %vm724, %v2266, 0
    %v2409 = vsel %vm724, %v2267, 0
    %v2412 = vsel %vm724, %v2268, 0
    %v2415 = vsel %vm724, %v2269, 0
    %v2418 = vsel %vm724, %v2270, 0
    %v2421 = vsel %vm724, %v2271, 0
    %v2424 = vsel %vm724, %v2272, 0
    %v2427 = vsel %vm724, %v2273, 0
    %v2430 = vsel %vm724, %v2274, 0
    %v2433 = vsel %vm724, %v2275, 0
    %v2436 = vsel %vm724, %v2276, 0
    %v2439 = vsel %vm724, %v2277, 0
    %v2442 = vsel %vm724, %v2278, 0
    %v2445 = vsel %vm724, %v2279, 0
    %v2448 = vsel %vm724, %v2280, 0
    %v2451 = vsel %vm724, %v2281, 0
    %v2454 = vsel %vm724, %v2282, 0
    %v2457 = vsel %vm724, %v2283, 0
    %v2460 = vsel %vm724, %v2284, 0
    %v2463 = vsel %vm724, %v2285, 0
    %v2466 = vsel %vm724, %v2286, 0
    %2468 = vmatprep.subr.mxu0 0.0
    %2469 = vmatpush1.msra.mxu0 %v2288
    %2470 = vmatprep.subr.mxu0 0.0
    %2471 = vmatpush1.msra.mxu0 %v2289
    %2472 = vmatprep.subr.mxu0 0.0
    %2473 = vmatpush1.msra.mxu0 %v2290
    %2474 = vmatprep.subr.mxu0 0.0
    %2475 = vmatpush1.msra.mxu0 %v2291
    %2476 = vmatprep.subr.mxu0 0.0
    %2477 = vmatpush1.msra.mxu0 %v2292
    %2478 = vmatprep.subr.mxu0 0.0
    %2479 = vmatpush1.msra.mxu0 %v2293
    %2480 = vmatprep.subr.mxu0 0.0
    %2481 = vmatpush1.msra.mxu0 %v2294
    %2482 = vmatprep.subr.mxu0 0.0
    %2483 = vmatpush1.msra.mxu0 %v2295
    %2484 = vmatprep.subr.mxu0 0.0
    %2485 = vmatpush1.msra.mxu0 %v2296
    %2486 = vmatprep.subr.mxu0 0.0
    %2487 = vmatpush1.msra.mxu0 %v2297
    %2488 = vmatprep.subr.mxu0 0.0
    %2489 = vmatpush1.msra.mxu0 %v2298
    %2490 = vmatprep.subr.mxu0 0.0
    %2491 = vmatpush1.msra.mxu0 %v2299
    %2492 = vmatprep.subr.mxu0 0.0
    %2493 = vmatpush1.msra.mxu0 0.0
    %2494 = vmatprep.subr.mxu0 0.0
    %2495 = vmatpush1.msra.mxu0 0.0
    %2496 = vmatprep.subr.mxu0 0.0
    %2497 = vmatpush1.msra.mxu0 0.0
    %2498 = vmatprep.subr.mxu0 0.0
    %2499 = vmatpush1.msra.mxu0 0.0
    %2500 = vmatprep.subr.mxu0 0.0
    %2501 = vmatpush1.msra.mxu0 0.0
    %2502 = vmatprep.subr.mxu0 0.0
    %2503 = vmatpush1.msra.mxu0 0.0
    %2504 = vmatprep.subr.mxu0 0.0
    %2505 = vmatpush1.msra.mxu0 0.0
    %2506 = vmatprep.subr.mxu0 0.0
    %2507 = vmatpush1.msra.mxu0 0.0
    %2508 = vmatprep.subr.mxu0 0.0
    %2509 = vmatpush1.msra.mxu0 0.0
    %2510 = vmatprep.subr.mxu0 0.0
    %2511 = vmatpush1.msra.mxu0 0.0
    %2512 = vmatprep.subr.mxu0 0.0
    %2513 = vmatpush1.msra.mxu0 0.0
    %2514 = vmatprep.subr.mxu0 0.0
    %2515 = vmatpush1.msra.mxu0 0.0
    %2516 = vmatprep.subr.mxu0 0.0
    %2517 = vmatpush1.msra.mxu0 0.0
    %2518 = vmatprep.subr.mxu0 0.0
    %2519 = vmatpush1.msra.mxu0 0.0
    %2520 = vmatprep.subr.mxu0 0.0
    %2521 = vmatpush1.msra.mxu0 0.0
    %2522 = vmatprep.subr.mxu0 0.0
    %2523 = vmatpush1.msra.mxu0 0.0
    %2524 = vmatprep.subr.mxu0 0.0
    %2525 = vmatpush1.msra.mxu0 0.0
    %2526 = vmatprep.subr.mxu0 0.0
    %2527 = vmatpush1.msra.mxu0 0.0
    %2528 = vmatprep.subr.mxu0 0.0
    %2529 = vmatpush1.msra.mxu0 0.0
    %2530 = vmatprep.subr.mxu0 0.0
    %2531 = vmatpush1.msra.mxu0 0.0
    %2532 = vmatprep.mubr.f32.mxu0 0.0
    %2533 = vmatmul.mubr.f32.gmra.mrb[0].mxu0 %v2301
    %v2534 = vpop.f32.mrb[0].mxu0
    %v2535 = vadd.f32 0.0, %v2534
    %v2536 = vpop.f32.mrb[0].mxu0
    %2537 = vmatprep.mubr.f32.mxu0 0.0
    %2538 = vmatmul.mubr.f32.gmra.mrb[0].mxu0 %v2304
    %v2539 = vpop.f32.mrb[0].mxu0
    %v2540 = vadd.f32 0.0, %v2539
    %v2541 = vpop.f32.mrb[0].mxu0
    %2542 = vmatprep.mubr.f32.mxu0 0.0
    %2543 = vmatmul.mubr.f32.gmra.mrb[0].mxu0 %v2307
    %v2544 = vpop.f32.mrb[0].mxu0
    %v2545 = vadd.f32 0.0, %v2544
    %v2546 = vpop.f32.mrb[0].mxu0
    %2547 = vmatprep.mubr.f32.mxu0 0.0
    %2548 = vmatmul.mubr.f32.gmra.mrb[0].mxu0 %v2310
    %v2549 = vpop.f32.mrb[0].mxu0
    %v2550 = vadd.f32 0.0, %v2549
    %v2551 = vpop.f32.mrb[0].mxu0
    %2552 = vmatprep.mubr.f32.mxu0 0.0
    %2553 = vmatmul.mubr.f32.gmra.mrb[0].mxu0 %v2313
    %v2554 = vpop.f32.mrb[0].mxu0
    %v2555 = vadd.f32 0.0, %v2554
    %v2556 = vpop.f32.mrb[0].mxu0
    %2557 = vmatprep.mubr.f32.mxu0 0.0
    %2558 = vmatmul.mubr.f32.gmra.mrb[0].mxu0 %v2316
    %v2559 = vpop.f32.mrb[0].mxu0
    %v2560 = vadd.f32 0.0, %v2559
    %v2561 = vpop.f32.mrb[0].mxu0
    %2562 = vmatprep.mubr.f32.mxu0 0.0
    %2563 = vmatmul.mubr.f32.gmra.mrb[0].mxu0 %v2319
    %v2564 = vpop.f32.mrb[0].mxu0
    %v2565 = vadd.f32 0.0, %v2564
    %v2566 = vpop.f32.mrb[0].mxu0
    %2567 = vmatprep.mubr.f32.mxu0 0.0
    %2568 = vmatmul.mubr.f32.gmra.mrb[0].mxu0 %v2322
    %v2569 = vpop.f32.mrb[0].mxu0
    %v2570 = vadd.f32 0.0, %v2569
    %v2571 = vpop.f32.mrb[0].mxu0
    %2572 = vmatprep.mubr.f32.mxu0 0.0
    %2573 = vmatmul.mubr.f32.gmra.mrb[0].mxu0 %v2325
    %v2574 = vpop.f32.mrb[0].mxu0
    %v2575 = vadd.f32 0.0, %v2574
    %v2576 = vpop.f32.mrb[0].mxu0
    %2577 = vmatprep.mubr.f32.mxu0 0.0
    %2578 = vmatmul.mubr.f32.gmra.mrb[0].mxu0 %v2328
    %v2579 = vpop.f32.mrb[0].mxu0
    %v2580 = vadd.f32 0.0, %v2579
    %v2581 = vpop.f32.mrb[0].mxu0
    %2582 = vmatprep.mubr.f32.mxu0 0.0
    %2583 = vmatmul.mubr.f32.gmra.mrb[0].mxu0 %v2331
    %v2584 = vpop.f32.mrb[0].mxu0
    %v2585 = vadd.f32 0.0, %v2584
    %v2586 = vpop.f32.mrb[0].mxu0
    %2587 = vmatprep.mubr.f32.mxu0 0.0
    %2588 = vmatmul.mubr.f32.gmra.mrb[0].mxu0 %v2334
    %v2589 = vpop.f32.mrb[0].mxu0
    %v2590 = vadd.f32 0.0, %v2589
    %v2591 = vpop.f32.mrb[0].mxu0
    %2592 = vmatprep.mubr.f32.mxu0 0.0
    %2593 = vmatmul.mubr.f32.gmra.mrb[0].mxu0 %v2337
    %v2594 = vpop.f32.mrb[0].mxu0
    %v2595 = vadd.f32 0.0, %v2594
    %v2596 = vpop.f32.mrb[0].mxu0
    %2597 = vmatprep.mubr.f32.mxu0 0.0
    %2598 = vmatmul.mubr.f32.gmra.mrb[0].mxu0 %v2340
    %v2599 = vpop.f32.mrb[0].mxu0
    %v2600 = vadd.f32 0.0, %v2599
    %v2601 = vpop.f32.mrb[0].mxu0
    %2602 = vmatprep.mubr.f32.mxu0 0.0
    %2603 = vmatmul.mubr.f32.gmra.mrb[0].mxu0 %v2343
    %v2604 = vpop.f32.mrb[0].mxu0
    %v2605 = vadd.f32 0.0, %v2604
    %v2606 = vpop.f32.mrb[0].mxu0
    %2607 = vmatprep.mubr.f32.mxu0 0.0
    %2608 = vmatmul.mubr.f32.gmra.mrb[0].mxu0 %v2346
    %v2609 = vpop.f32.mrb[0].mxu0
    %v2610 = vadd.f32 0.0, %v2609
    %v2611 = vpop.f32.mrb[0].mxu0
    %2612 = vmatprep.mubr.f32.mxu0 0.0
    %2613 = vmatmul.mubr.f32.gmra.mrb[0].mxu0 %v2349
    %v2614 = vpop.f32.mrb[0].mxu0
    %v2615 = vadd.f32 0.0, %v2614
    %v2616 = vpop.f32.mrb[0].mxu0
    %2617 = vmatprep.mubr.f32.mxu0 0.0
    %2618 = vmatmul.mubr.f32.gmra.mrb[0].mxu0 %v2352
    %v2619 = vpop.f32.mrb[0].mxu0
    %v2620 = vadd.f32 0.0, %v2619
    %v2621 = vpop.f32.mrb[0].mxu0
    %2622 = vmatprep.mubr.f32.mxu0 0.0
    %2623 = vmatmul.mubr.f32.gmra.mrb[0].mxu0 %v2355
    %v2624 = vpop.f32.mrb[0].mxu0
    %v2625 = vadd.f32 0.0, %v2624
    %v2626 = vpop.f32.mrb[0].mxu0
    %2627 = vmatprep.mubr.f32.mxu0 0.0
    %2628 = vmatmul.mubr.f32.gmra.mrb[0].mxu0 %v2358
    %v2629 = vpop.f32.mrb[0].mxu0
    %v2630 = vadd.f32 0.0, %v2629
    %v2631 = vpop.f32.mrb[0].mxu0
    %2632 = vmatprep.mubr.f32.mxu0 0.0
    %2633 = vmatmul.mubr.f32.gmra.mrb[0].mxu0 %v2361
    %v2634 = vpop.f32.mrb[0].mxu0
    %v2635 = vadd.f32 0.0, %v2634
    %v2636 = vpop.f32.mrb[0].mxu0
    %2637 = vmatprep.mubr.f32.mxu0 0.0
    %2638 = vmatmul.mubr.f32.gmra.mrb[0].mxu0 %v2364
    %v2639 = vpop.f32.mrb[0].mxu0
    %v2640 = vadd.f32 0.0, %v2639
    %v2641 = vpop.f32.mrb[0].mxu0
    %2642 = vmatprep.mubr.f32.mxu0 0.0
    %2643 = vmatmul.mubr.f32.gmra.mrb[0].mxu0 %v2367
    %v2644 = vpop.f32.mrb[0].mxu0
    %v2645 = vadd.f32 0.0, %v2644
    %v2646 = vpop.f32.mrb[0].mxu0
    %2647 = vmatprep.mubr.f32.mxu0 0.0
    %2648 = vmatmul.mubr.f32.gmra.mrb[0].mxu0 %v2370
    %v2649 = vpop.f32.mrb[0].mxu0
    %v2650 = vadd.f32 0.0, %v2649
    %v2651 = vpop.f32.mrb[0].mxu0
    %2652 = vmatprep.mubr.f32.mxu0 0.0
    %2653 = vmatmul.mubr.f32.gmra.mrb[0].mxu0 %v2373
    %v2654 = vpop.f32.mrb[0].mxu0
    %v2655 = vadd.f32 0.0, %v2654
    %v2656 = vpop.f32.mrb[0].mxu0
    %2657 = vmatprep.mubr.f32.mxu0 0.0
    %2658 = vmatmul.mubr.f32.gmra.mrb[0].mxu0 %v2376
    %v2659 = vpop.f32.mrb[0].mxu0
    %v2660 = vadd.f32 0.0, %v2659
    %v2661 = vpop.f32.mrb[0].mxu0
    %2662 = vmatprep.mubr.f32.mxu0 0.0
    %2663 = vmatmul.mubr.f32.gmra.mrb[0].mxu0 %v2379
    %v2664 = vpop.f32.mrb[0].mxu0
    %v2665 = vadd.f32 0.0, %v2664
    %v2666 = vpop.f32.mrb[0].mxu0
    %2667 = vmatprep.mubr.f32.mxu0 0.0
    %2668 = vmatmul.mubr.f32.gmra.mrb[0].mxu0 %v2382
    %v2669 = vpop.f32.mrb[0].mxu0
    %v2670 = vadd.f32 0.0, %v2669
    %v2671 = vpop.f32.mrb[0].mxu0
    %2672 = vmatprep.mubr.f32.mxu0 0.0
    %2673 = vmatmul.mubr.f32.gmra.mrb[0].mxu0 %v2385
    %v2674 = vpop.f32.mrb[0].mxu0
    %v2675 = vadd.f32 0.0, %v2674
    %v2676 = vpop.f32.mrb[0].mxu0
    %2677 = vmatprep.mubr.f32.mxu0 0.0
    %2678 = vmatmul.mubr.f32.gmra.mrb[0].mxu0 %v2388
    %v2679 = vpop.f32.mrb[0].mxu0
    %v2680 = vadd.f32 0.0, %v2679
    %v2681 = vpop.f32.mrb[0].mxu0
    %2682 = vmatprep.mubr.f32.mxu0 0.0
    %2683 = vmatmul.mubr.f32.gmra.mrb[0].mxu0 %v2391
    %v2684 = vpop.f32.mrb[0].mxu0
    %v2685 = vadd.f32 0.0, %v2684
    %v2686 = vpop.f32.mrb[0].mxu0
    %2687 = vmatprep.mubr.f32.mxu0 0.0
    %2688 = vmatmul.mubr.f32.gmra.mrb[0].mxu0 %v2394
    %v2689 = vpop.f32.mrb[0].mxu0
    %v2690 = vadd.f32 0.0, %v2689
    %v2691 = vpop.f32.mrb[0].mxu0
    %2692 = vmatprep.mubr.f32.mxu0 0.0
    %2693 = vmatmul.mubr.f32.gmra.mrb[0].mxu0 %v2397
    %v2694 = vpop.f32.mrb[0].mxu0
    %v2695 = vadd.f32 0.0, %v2694
    %v2696 = vpop.f32.mrb[0].mxu0
    %2697 = vmatprep.mubr.f32.mxu0 0.0
    %2698 = vmatmul.mubr.f32.gmra.mrb[0].mxu0 %v2400
    %v2699 = vpop.f32.mrb[0].mxu0
    %v2700 = vadd.f32 0.0, %v2699
    %v2701 = vpop.f32.mrb[0].mxu0
    %2702 = vmatprep.mubr.f32.mxu0 0.0
    %2703 = vmatmul.mubr.f32.gmra.mrb[0].mxu0 %v2403
    %v2704 = vpop.f32.mrb[0].mxu0
    %v2705 = vadd.f32 0.0, %v2704
    %v2706 = vpop.f32.mrb[0].mxu0
    %2707 = vmatprep.mubr.f32.mxu0 0.0
    %2708 = vmatmul.mubr.f32.gmra.mrb[0].mxu0 %v2406
    %v2709 = vpop.f32.mrb[0].mxu0
    %v2710 = vadd.f32 0.0, %v2709
    %v2711 = vpop.f32.mrb[0].mxu0
    %2712 = vmatprep.mubr.f32.mxu0 0.0
    %2713 = vmatmul.mubr.f32.gmra.mrb[0].mxu0 %v2409
    %v2714 = vpop.f32.mrb[0].mxu0
    %v2715 = vadd.f32 0.0, %v2714
    %v2716 = vpop.f32.mrb[0].mxu0
    %2717 = vmatprep.mubr.f32.mxu0 0.0
    %2718 = vmatmul.mubr.f32.gmra.mrb[0].mxu0 %v2412
    %v2719 = vpop.f32.mrb[0].mxu0
    %v2720 = vadd.f32 0.0, %v2719
    %v2721 = vpop.f32.mrb[0].mxu0
    %2722 = vmatprep.mubr.f32.mxu0 0.0
    %2723 = vmatmul.mubr.f32.gmra.mrb[0].mxu0 %v2415
    %v2724 = vpop.f32.mrb[0].mxu0
    %v2725 = vadd.f32 0.0, %v2724
    %v2726 = vpop.f32.mrb[0].mxu0
    %2727 = vmatprep.mubr.f32.mxu0 0.0
    %2728 = vmatmul.mubr.f32.gmra.mrb[0].mxu0 %v2418
    %v2729 = vpop.f32.mrb[0].mxu0
    %v2730 = vadd.f32 0.0, %v2729
    %v2731 = vpop.f32.mrb[0].mxu0
    %2732 = vmatprep.mubr.f32.mxu0 0.0
    %2733 = vmatmul.mubr.f32.gmra.mrb[0].mxu0 %v2421
    %v2734 = vpop.f32.mrb[0].mxu0
    %v2735 = vadd.f32 0.0, %v2734
    %v2736 = vpop.f32.mrb[0].mxu0
    %2737 = vmatprep.mubr.f32.mxu0 0.0
    %2738 = vmatmul.mubr.f32.gmra.mrb[0].mxu0 %v2424
    %v2739 = vpop.f32.mrb[0].mxu0
    %v2740 = vadd.f32 0.0, %v2739
    %v2741 = vpop.f32.mrb[0].mxu0
    %2742 = vmatprep.mubr.f32.mxu0 0.0
    %2743 = vmatmul.mubr.f32.gmra.mrb[0].mxu0 %v2427
    %v2744 = vpop.f32.mrb[0].mxu0
    %v2745 = vadd.f32 0.0, %v2744
    %v2746 = vpop.f32.mrb[0].mxu0
    %2747 = vmatprep.mubr.f32.mxu0 0.0
    %2748 = vmatmul.mubr.f32.gmra.mrb[0].mxu0 %v2430
    %v2749 = vpop.f32.mrb[0].mxu0
    %v2750 = vadd.f32 0.0, %v2749
    %v2751 = vpop.f32.mrb[0].mxu0
    %2752 = vmatprep.mubr.f32.mxu0 0.0
    %2753 = vmatmul.mubr.f32.gmra.mrb[0].mxu0 %v2433
    %v2754 = vpop.f32.mrb[0].mxu0
    %v2755 = vadd.f32 0.0, %v2754
    %v2756 = vpop.f32.mrb[0].mxu0
    %2757 = vmatprep.mubr.f32.mxu0 0.0
    %2758 = vmatmul.mubr.f32.gmra.mrb[0].mxu0 %v2436
    %v2759 = vpop.f32.mrb[0].mxu0
    %v2760 = vadd.f32 0.0, %v2759
    %v2761 = vpop.f32.mrb[0].mxu0
    %2762 = vmatprep.mubr.f32.mxu0 0.0
    %2763 = vmatmul.mubr.f32.gmra.mrb[0].mxu0 %v2439
    %v2764 = vpop.f32.mrb[0].mxu0
    %v2765 = vadd.f32 0.0, %v2764
    %v2766 = vpop.f32.mrb[0].mxu0
    %2767 = vmatprep.mubr.f32.mxu0 0.0
    %2768 = vmatmul.mubr.f32.gmra.mrb[0].mxu0 %v2442
    %v2769 = vpop.f32.mrb[0].mxu0
    %v2770 = vadd.f32 0.0, %v2769
    %v2771 = vpop.f32.mrb[0].mxu0
    %2772 = vmatprep.mubr.f32.mxu0 0.0
    %2773 = vmatmul.mubr.f32.gmra.mrb[0].mxu0 %v2445
    %v2774 = vpop.f32.mrb[0].mxu0
    %v2775 = vadd.f32 0.0, %v2774
    %v2776 = vpop.f32.mrb[0].mxu0
    %2777 = vmatprep.mubr.f32.mxu0 0.0
    %2778 = vmatmul.mubr.f32.gmra.mrb[0].mxu0 %v2448
    %v2779 = vpop.f32.mrb[0].mxu0
    %v2780 = vadd.f32 0.0, %v2779
    %v2781 = vpop.f32.mrb[0].mxu0
    %2782 = vmatprep.mubr.f32.mxu0 0.0
    %2783 = vmatmul.mubr.f32.gmra.mrb[0].mxu0 %v2451
    %v2784 = vpop.f32.mrb[0].mxu0
    %v2785 = vadd.f32 0.0, %v2784
    %v2786 = vpop.f32.mrb[0].mxu0
    %2787 = vmatprep.mubr.f32.mxu0 0.0
    %2788 = vmatmul.mubr.f32.gmra.mrb[0].mxu0 %v2454
    %v2789 = vpop.f32.mrb[0].mxu0
    %v2790 = vadd.f32 0.0, %v2789
    %v2791 = vpop.f32.mrb[0].mxu0
    %2792 = vmatprep.mubr.f32.mxu0 0.0
    %2793 = vmatmul.mubr.f32.gmra.mrb[0].mxu0 %v2457
    %v2794 = vpop.f32.mrb[0].mxu0
    %v2795 = vadd.f32 0.0, %v2794
    %v2796 = vpop.f32.mrb[0].mxu0
    %2797 = vmatprep.mubr.f32.mxu0 0.0
    %2798 = vmatmul.mubr.f32.gmra.mrb[0].mxu0 %v2460
    %v2799 = vpop.f32.mrb[0].mxu0
    %v2800 = vadd.f32 0.0, %v2799
    %v2801 = vpop.f32.mrb[0].mxu0
    %2802 = vmatprep.mubr.f32.mxu0 0.0
    %2803 = vmatmul.mubr.f32.gmra.mrb[0].mxu0 %v2463
    %v2804 = vpop.f32.mrb[0].mxu0
    %v2805 = vadd.f32 0.0, %v2804
    %v2806 = vpop.f32.mrb[0].mxu0
    %2807 = vmatprep.mubr.f32.mxu0 0.0
    %2808 = vmatmul.mubr.f32.gmra.mrb[0].mxu0 %v2466
    %v2809 = vpop.f32.mrb[0].mxu0
    %v2810 = vadd.f32 0.0, %v2809
    %v2811 = vpop.f32.mrb[0].mxu0
    %2812 = vdwg.mxu0
    %v2813 = vadd.f32 %v2175, %v2535
    %v2814 = vadd.f32 %v2176, %v2540
    %v2815 = vadd.f32 %v2177, %v2545
    %v2816 = vadd.f32 %v2178, %v2550
    %v2817 = vadd.f32 %v2179, %v2555
    %v2818 = vadd.f32 %v2180, %v2560
    %v2819 = vadd.f32 %v2181, %v2565
    %v2820 = vadd.f32 %v2182, %v2570
    %v2821 = vadd.f32 %v2183, %v2575
    %v2822 = vadd.f32 %v2184, %v2580
    %v2823 = vadd.f32 %v2185, %v2585
    %v2824 = vadd.f32 %v2186, %v2590
    %v2825 = vadd.f32 %v2187, %v2595
    %v2826 = vadd.f32 %v2188, %v2600
    %v2827 = vadd.f32 %v2189, %v2605
    %v2828 = vadd.f32 %v2190, %v2610
    %v2829 = vadd.f32 %v2191, %v2615
    %v2830 = vadd.f32 %v2192, %v2620
    %v2831 = vadd.f32 %v2193, %v2625
    %v2832 = vadd.f32 %v2194, %v2630
    %v2833 = vadd.f32 %v2195, %v2635
    %v2834 = vadd.f32 %v2196, %v2640
    %v2835 = vadd.f32 %v2197, %v2645
    %v2836 = vadd.f32 %v2198, %v2650
    %v2837 = vadd.f32 %v2199, %v2655
    %v2838 = vadd.f32 %v2200, %v2660
    %v2839 = vadd.f32 %v2201, %v2665
    %v2840 = vadd.f32 %v2202, %v2670
    %v2841 = vadd.f32 %v2203, %v2675
    %v2842 = vadd.f32 %v2204, %v2680
    %v2843 = vadd.f32 %v2205, %v2685
    %v2844 = vadd.f32 %v2206, %v2690
    %v2845 = vadd.f32 %v2207, %v2695
    %v2846 = vadd.f32 %v2208, %v2700
    %v2847 = vadd.f32 %v2209, %v2705
    %v2848 = vadd.f32 %v2210, %v2710
    %v2849 = vadd.f32 %v2211, %v2715
    %v2850 = vadd.f32 %v2212, %v2720
    %v2851 = vadd.f32 %v2213, %v2725
    %v2852 = vadd.f32 %v2214, %v2730
    %v2853 = vadd.f32 %v2215, %v2735
    %v2854 = vadd.f32 %v2216, %v2740
    %v2855 = vadd.f32 %v2217, %v2745
    %v2856 = vadd.f32 %v2218, %v2750
    %v2857 = vadd.f32 %v2219, %v2755
    %v2858 = vadd.f32 %v2220, %v2760
    %v2859 = vadd.f32 %v2221, %v2765
    %v2860 = vadd.f32 %v2222, %v2770
    %v2861 = vadd.f32 %v2223, %v2775
    %v2862 = vadd.f32 %v2224, %v2780
    %v2863 = vadd.f32 %v2225, %v2785
    %v2864 = vadd.f32 %v2226, %v2790
    %v2865 = vadd.f32 %v2227, %v2795
    %v2866 = vadd.f32 %v2228, %v2800
    %v2867 = vadd.f32 %v2229, %v2805
    %v2868 = vadd.f32 %v2230, %v2810
    %2869 = vst.msk [vmem:[#allocation3] sm:$0xff] %vm1367, %v2813
    %2870 = vst.msk [vmem:[#allocation3 + $0x8] sm:$0xff] %vm1367, %v2814
    %2871 = vst.msk [vmem:[#allocation3 + $0x10] sm:$0xff] %vm1367, %v2815
    %2872 = vst.msk [vmem:[#allocation3 + $0x18] sm:$0xff] %vm1367, %v2816
    %2873 = vst.msk [vmem:[#allocation3 + $0x20] sm:$0xff] %vm1367, %v2817
    %2874 = vst.msk [vmem:[#allocation3 + $0x28] sm:$0xff] %vm1367, %v2818
    %2875 = vst.msk [vmem:[#allocation3 + $0x30] sm:$0xff] %vm1367, %v2819
    %2876 = vst.msk [vmem:[#allocation3 + $0x38] sm:$0xff] %vm1367, %v2820
    %2877 = vst.msk [vmem:[#allocation3 + $0x40] sm:$0xff] %vm1367, %v2821
    %2878 = vst.msk [vmem:[#allocation3 + $0x48] sm:$0xff] %vm1367, %v2822
    %2879 = vst.msk [vmem:[#allocation3 + $0x50] sm:$0xff] %vm1367, %v2823
    %2880 = vst.msk [vmem:[#allocation3 + $0x58] sm:$0xff] %vm1367, %v2824
    %2881 = vst.msk [vmem:[#allocation3 + $0x60] sm:$0xff] %vm1367, %v2825
    %2882 = vst.msk [vmem:[#allocation3 + $0x68] sm:$0xff] %vm1367, %v2826
    %2883 = vst.msk [vmem:[#allocation3 + $0x70] sm:$0xff] %vm1367, %v2827
    %2884 = vst.msk [vmem:[#allocation3 + $0x78] sm:$0xff] %vm1367, %v2828
    %2885 = vst.msk [vmem:[#allocation3 + $0x80] sm:$0xff] %vm1367, %v2829
    %2886 = vst.msk [vmem:[#allocation3 + $0x88] sm:$0xff] %vm1367, %v2830
    %2887 = vst.msk [vmem:[#allocation3 + $0x90] sm:$0xff] %vm1367, %v2831
    %2888 = vst.msk [vmem:[#allocation3 + $0x98] sm:$0xff] %vm1367, %v2832
    %2889 = vst.msk [vmem:[#allocation3 + $0xa0] sm:$0xff] %vm1367, %v2833
    %2890 = vst.msk [vmem:[#allocation3 + $0xa8] sm:$0xff] %vm1367, %v2834
    %2891 = vst.msk [vmem:[#allocation3 + $0xb0] sm:$0xff] %vm1367, %v2835
    %2892 = vst.msk [vmem:[#allocation3 + $0xb8] sm:$0xff] %vm1367, %v2836
    %2893 = vst.msk [vmem:[#allocation3 + $0xc0] sm:$0xff] %vm1367, %v2837
    %2894 = vst.msk [vmem:[#allocation3 + $0xc8] sm:$0xff] %vm1367, %v2838
    %2895 = vst.msk [vmem:[#allocation3 + $0xd0] sm:$0xff] %vm1367, %v2839
    %2896 = vst.msk [vmem:[#allocation3 + $0xd8] sm:$0xff] %vm1367, %v2840
    %2897 = vst.msk [vmem:[#allocation3 + $0xe0] sm:$0xff] %vm1367, %v2841
    %2898 = vst.msk [vmem:[#allocation3 + $0xe8] sm:$0xff] %vm1367, %v2842
    %2899 = vst.msk [vmem:[#allocation3 + $0xf0] sm:$0xff] %vm1367, %v2843
    %2900 = vst.msk [vmem:[#allocation3 + $0xf8] sm:$0xff] %vm1367, %v2844
    %2901 = vst.msk [vmem:[#allocation3 + $0x100] sm:$0xff] %vm1367, %v2845
    %2902 = vst.msk [vmem:[#allocation3 + $0x108] sm:$0xff] %vm1367, %v2846
    %2903 = vst.msk [vmem:[#allocation3 + $0x110] sm:$0xff] %vm1367, %v2847
    %2904 = vst.msk [vmem:[#allocation3 + $0x118] sm:$0xff] %vm1367, %v2848
    %2905 = vst.msk [vmem:[#allocation3 + $0x120] sm:$0xff] %vm1367, %v2849
    %2906 = vst.msk [vmem:[#allocation3 + $0x128] sm:$0xff] %vm1367, %v2850
    %2907 = vst.msk [vmem:[#allocation3 + $0x130] sm:$0xff] %vm1367, %v2851
    %2908 = vst.msk [vmem:[#allocation3 + $0x138] sm:$0xff] %vm1367, %v2852
    %2909 = vst.msk [vmem:[#allocation3 + $0x140] sm:$0xff] %vm1367, %v2853
    %2910 = vst.msk [vmem:[#allocation3 + $0x148] sm:$0xff] %vm1367, %v2854
    %2911 = vst.msk [vmem:[#allocation3 + $0x150] sm:$0xff] %vm1367, %v2855
    %2912 = vst.msk [vmem:[#allocation3 + $0x158] sm:$0xff] %vm1367, %v2856
    %2913 = vst.msk [vmem:[#allocation3 + $0x160] sm:$0xff] %vm1367, %v2857
    %2914 = vst.msk [vmem:[#allocation3 + $0x168] sm:$0xff] %vm1367, %v2858
    %2915 = vst.msk [vmem:[#allocation3 + $0x170] sm:$0xff] %vm1367, %v2859
    %2916 = vst.msk [vmem:[#allocation3 + $0x178] sm:$0xff] %vm1367, %v2860
    %2917 = vst.msk [vmem:[#allocation3 + $0x180] sm:$0xff] %vm1367, %v2861
    %2918 = vst.msk [vmem:[#allocation3 + $0x188] sm:$0xff] %vm1367, %v2862
    %2919 = vst.msk [vmem:[#allocation3 + $0x190] sm:$0xff] %vm1367, %v2863
    %2920 = vst.msk [vmem:[#allocation3 + $0x198] sm:$0xff] %vm1367, %v2864
    %2921 = vst.msk [vmem:[#allocation3 + $0x1a0] sm:$0xff] %vm1367, %v2865
    %2922 = vst.msk [vmem:[#allocation3 + $0x1a8] sm:$0xff] %vm1367, %v2866
    %2923 = vst.msk [vmem:[#allocation3 + $0x1b0] sm:$0xff] %vm1367, %v2867
    %2924 = vst.msk [vmem:[#allocation3 + $0x1b8] sm:$0xf] %vm1423, %v2868
    %v2925 = vld [vmem:[#allocation3] sm:$0xff]
    %v2926 = vld [vmem:[#allocation3 + $0x8] sm:$0xff]
    %v2927 = vld [vmem:[#allocation3 + $0x10] sm:$0xff]
    %v2928 = vld [vmem:[#allocation3 + $0x18] sm:$0xff]
    %v2929 = vld [vmem:[#allocation3 + $0x20] sm:$0xff]
    %v2930 = vld [vmem:[#allocation3 + $0x28] sm:$0xff]
    %v2931 = vld [vmem:[#allocation3 + $0x30] sm:$0xff]
    %v2932 = vld [vmem:[#allocation3 + $0x38] sm:$0xff]
    %v2933 = vld [vmem:[#allocation3 + $0x40] sm:$0xff]
    %v2934 = vld [vmem:[#allocation3 + $0x48] sm:$0xff]
    %v2935 = vld [vmem:[#allocation3 + $0x50] sm:$0xff]
    %v2936 = vld [vmem:[#allocation3 + $0x58] sm:$0xff]
    %v2937 = vld [vmem:[#allocation3 + $0x60] sm:$0xff]
    %v2938 = vld [vmem:[#allocation3 + $0x68] sm:$0xff]
    %v2939 = vld [vmem:[#allocation3 + $0x70] sm:$0xff]
    %v2940 = vld [vmem:[#allocation3 + $0x78] sm:$0xff]
    %v2941 = vld [vmem:[#allocation3 + $0x80] sm:$0xff]
    %v2942 = vld [vmem:[#allocation3 + $0x88] sm:$0xff]
    %v2943 = vld [vmem:[#allocation3 + $0x90] sm:$0xff]
    %v2944 = vld [vmem:[#allocation3 + $0x98] sm:$0xff]
    %v2945 = vld [vmem:[#allocation3 + $0xa0] sm:$0xff]
    %v2946 = vld [vmem:[#allocation3 + $0xa8] sm:$0xff]
    %v2947 = vld [vmem:[#allocation3 + $0xb0] sm:$0xff]
    %v2948 = vld [vmem:[#allocation3 + $0xb8] sm:$0xff]
    %v2949 = vld [vmem:[#allocation3 + $0xc0] sm:$0xff]
    %v2950 = vld [vmem:[#allocation3 + $0xc8] sm:$0xff]
    %v2951 = vld [vmem:[#allocation3 + $0xd0] sm:$0xff]
    %v2952 = vld [vmem:[#allocation3 + $0xd8] sm:$0xff]
    %v2953 = vld [vmem:[#allocation3 + $0xe0] sm:$0xff]
    %v2954 = vld [vmem:[#allocation3 + $0xe8] sm:$0xff]
    %v2955 = vld [vmem:[#allocation3 + $0xf0] sm:$0xff]
    %v2956 = vld [vmem:[#allocation3 + $0xf8] sm:$0xff]
    %v2957 = vld [vmem:[#allocation3 + $0x100] sm:$0xff]
    %v2958 = vld [vmem:[#allocation3 + $0x108] sm:$0xff]
    %v2959 = vld [vmem:[#allocation3 + $0x110] sm:$0xff]
    %v2960 = vld [vmem:[#allocation3 + $0x118] sm:$0xff]
    %v2961 = vld [vmem:[#allocation3 + $0x120] sm:$0xff]
    %v2962 = vld [vmem:[#allocation3 + $0x128] sm:$0xff]
    %v2963 = vld [vmem:[#allocation3 + $0x130] sm:$0xff]
    %v2964 = vld [vmem:[#allocation3 + $0x138] sm:$0xff]
    %v2965 = vld [vmem:[#allocation3 + $0x140] sm:$0xff]
    %v2966 = vld [vmem:[#allocation3 + $0x148] sm:$0xff]
    %v2967 = vld [vmem:[#allocation3 + $0x150] sm:$0xff]
    %v2968 = vld [vmem:[#allocation3 + $0x158] sm:$0xff]
    %v2969 = vld [vmem:[#allocation3 + $0x160] sm:$0xff]
    %v2970 = vld [vmem:[#allocation3 + $0x168] sm:$0xff]
    %v2971 = vld [vmem:[#allocation3 + $0x170] sm:$0xff]
    %v2972 = vld [vmem:[#allocation3 + $0x178] sm:$0xff]
    %v2973 = vld [vmem:[#allocation3 + $0x180] sm:$0xff]
    %v2974 = vld [vmem:[#allocation3 + $0x188] sm:$0xff]
    %v2975 = vld [vmem:[#allocation3 + $0x190] sm:$0xff]
    %v2976 = vld [vmem:[#allocation3 + $0x198] sm:$0xff]
    %v2977 = vld [vmem:[#allocation3 + $0x1a0] sm:$0xff]
    %v2978 = vld [vmem:[#allocation3 + $0x1a8] sm:$0xff]
    %v2979 = vld [vmem:[#allocation3 + $0x1b0] sm:$0xff]
    %v2980 = vld [vmem:[#allocation3 + $0x1b8] sm:$0xf]
    %v2981 = vld [vmem:[%s4] sm:$0x1]
    %v2983 = vlaneseq
    %v2984 = vshrl.u32 %v2983, 7
    %v2985 = vsub.s32 0, %v2984
    %v2986 = vrot.slane %v2981, %v2985
    %v2988 = vadd.f32 %v2925, %v2986
    %v2989 = vadd.f32 %v2926, %v2986
    %v2990 = vadd.f32 %v2927, %v2986
    %v2991 = vadd.f32 %v2928, %v2986
    %v2992 = vadd.f32 %v2929, %v2986
    %v2993 = vadd.f32 %v2930, %v2986
    %v2994 = vadd.f32 %v2931, %v2986
    %v2995 = vadd.f32 %v2932, %v2986
    %v2996 = vadd.f32 %v2933, %v2986
    %v2997 = vadd.f32 %v2934, %v2986
    %v2998 = vadd.f32 %v2935, %v2986
    %v2999 = vadd.f32 %v2936, %v2986
    %v3000 = vadd.f32 %v2937, %v2986
    %v3001 = vadd.f32 %v2938, %v2986
    %v3002 = vadd.f32 %v2939, %v2986
    %v3003 = vadd.f32 %v2940, %v2986
    %v3004 = vadd.f32 %v2941, %v2986
    %v3005 = vadd.f32 %v2942, %v2986
    %v3006 = vadd.f32 %v2943, %v2986
    %v3007 = vadd.f32 %v2944, %v2986
    %v3008 = vadd.f32 %v2945, %v2986
    %v3009 = vadd.f32 %v2946, %v2986
    %v3010 = vadd.f32 %v2947, %v2986
    %v3011 = vadd.f32 %v2948, %v2986
    %v3012 = vadd.f32 %v2949, %v2986
    %v3013 = vadd.f32 %v2950, %v2986
    %v3014 = vadd.f32 %v2951, %v2986
    %v3015 = vadd.f32 %v2952, %v2986
    %v3016 = vadd.f32 %v2953, %v2986
    %v3017 = vadd.f32 %v2954, %v2986
    %v3018 = vadd.f32 %v2955, %v2986
    %v3019 = vadd.f32 %v2956, %v2986
    %v3020 = vadd.f32 %v2957, %v2986
    %v3021 = vadd.f32 %v2958, %v2986
    %v3022 = vadd.f32 %v2959, %v2986
    %v3023 = vadd.f32 %v2960, %v2986
    %v3024 = vadd.f32 %v2961, %v2986
    %v3025 = vadd.f32 %v2962, %v2986
    %v3026 = vadd.f32 %v2963, %v2986
    %v3027 = vadd.f32 %v2964, %v2986
    %v3028 = vadd.f32 %v2965, %v2986
    %v3029 = vadd.f32 %v2966, %v2986
    %v3030 = vadd.f32 %v2967, %v2986
    %v3031 = vadd.f32 %v2968, %v2986
    %v3032 = vadd.f32 %v2969, %v2986
    %v3033 = vadd.f32 %v2970, %v2986
    %v3034 = vadd.f32 %v2971, %v2986
    %v3035 = vadd.f32 %v2972, %v2986
    %v3036 = vadd.f32 %v2973, %v2986
    %v3037 = vadd.f32 %v2974, %v2986
    %v3038 = vadd.f32 %v2975, %v2986
    %v3039 = vadd.f32 %v2976, %v2986
    %v3040 = vadd.f32 %v2977, %v2986
    %v3041 = vadd.f32 %v2978, %v2986
    %v3042 = vadd.f32 %v2979, %v2986
    %v3043 = vadd.f32 %v2980, %v2986
    %v3044 = vmax.f32 %v2988, 0.0
    %v3045 = vmax.f32 %v2989, 0.0
    %v3046 = vmax.f32 %v2990, 0.0
    %v3047 = vmax.f32 %v2991, 0.0
    %v3048 = vmax.f32 %v2992, 0.0
    %v3049 = vmax.f32 %v2993, 0.0
    %v3050 = vmax.f32 %v2994, 0.0
    %v3051 = vmax.f32 %v2995, 0.0
    %v3052 = vmax.f32 %v2996, 0.0
    %v3053 = vmax.f32 %v2997, 0.0
    %v3054 = vmax.f32 %v2998, 0.0
    %v3055 = vmax.f32 %v2999, 0.0
    %v3056 = vmax.f32 %v3000, 0.0
    %v3057 = vmax.f32 %v3001, 0.0
    %v3058 = vmax.f32 %v3002, 0.0
    %v3059 = vmax.f32 %v3003, 0.0
    %v3060 = vmax.f32 %v3004, 0.0
    %v3061 = vmax.f32 %v3005, 0.0
    %v3062 = vmax.f32 %v3006, 0.0
    %v3063 = vmax.f32 %v3007, 0.0
    %v3064 = vmax.f32 %v3008, 0.0
    %v3065 = vmax.f32 %v3009, 0.0
    %v3066 = vmax.f32 %v3010, 0.0
    %v3067 = vmax.f32 %v3011, 0.0
    %v3068 = vmax.f32 %v3012, 0.0
    %v3069 = vmax.f32 %v3013, 0.0
    %v3070 = vmax.f32 %v3014, 0.0
    %v3071 = vmax.f32 %v3015, 0.0
    %v3072 = vmax.f32 %v3016, 0.0
    %v3073 = vmax.f32 %v3017, 0.0
    %v3074 = vmax.f32 %v3018, 0.0
    %v3075 = vmax.f32 %v3019, 0.0
    %v3076 = vmax.f32 %v3020, 0.0
    %v3077 = vmax.f32 %v3021, 0.0
    %v3078 = vmax.f32 %v3022, 0.0
    %v3079 = vmax.f32 %v3023, 0.0
    %v3080 = vmax.f32 %v3024, 0.0
    %v3081 = vmax.f32 %v3025, 0.0
    %v3082 = vmax.f32 %v3026, 0.0
    %v3083 = vmax.f32 %v3027, 0.0
    %v3084 = vmax.f32 %v3028, 0.0
    %v3085 = vmax.f32 %v3029, 0.0
    %v3086 = vmax.f32 %v3030, 0.0
    %v3087 = vmax.f32 %v3031, 0.0
    %v3088 = vmax.f32 %v3032, 0.0
    %v3089 = vmax.f32 %v3033, 0.0
    %v3090 = vmax.f32 %v3034, 0.0
    %v3091 = vmax.f32 %v3035, 0.0
    %v3092 = vmax.f32 %v3036, 0.0
    %v3093 = vmax.f32 %v3037, 0.0
    %v3094 = vmax.f32 %v3038, 0.0
    %v3095 = vmax.f32 %v3039, 0.0
    %v3096 = vmax.f32 %v3040, 0.0
    %v3097 = vmax.f32 %v3041, 0.0
    %v3098 = vmax.f32 %v3042, 0.0
    %v3099 = vmax.f32 %v3043, 0.0
    %3100 = vst.msk [vmem:[#allocation3] sm:$0xff] %vm1367, %v3044
    %3101 = vst.msk [vmem:[#allocation3 + $0x8] sm:$0xff] %vm1367, %v3045
    %3102 = vst.msk [vmem:[#allocation3 + $0x10] sm:$0xff] %vm1367, %v3046
    %3103 = vst.msk [vmem:[#allocation3 + $0x18] sm:$0xff] %vm1367, %v3047
    %3104 = vst.msk [vmem:[#allocation3 + $0x20] sm:$0xff] %vm1367, %v3048
    %3105 = vst.msk [vmem:[#allocation3 + $0x28] sm:$0xff] %vm1367, %v3049
    %3106 = vst.msk [vmem:[#allocation3 + $0x30] sm:$0xff] %vm1367, %v3050
    %3107 = vst.msk [vmem:[#allocation3 + $0x38] sm:$0xff] %vm1367, %v3051
    %3108 = vst.msk [vmem:[#allocation3 + $0x40] sm:$0xff] %vm1367, %v3052
    %3109 = vst.msk [vmem:[#allocation3 + $0x48] sm:$0xff] %vm1367, %v3053
    %3110 = vst.msk [vmem:[#allocation3 + $0x50] sm:$0xff] %vm1367, %v3054
    %3111 = vst.msk [vmem:[#allocation3 + $0x58] sm:$0xff] %vm1367, %v3055
    %3112 = vst.msk [vmem:[#allocation3 + $0x60] sm:$0xff] %vm1367, %v3056
    %3113 = vst.msk [vmem:[#allocation3 + $0x68] sm:$0xff] %vm1367, %v3057
    %3114 = vst.msk [vmem:[#allocation3 + $0x70] sm:$0xff] %vm1367, %v3058
    %3115 = vst.msk [vmem:[#allocation3 + $0x78] sm:$0xff] %vm1367, %v3059
    %3116 = vst.msk [vmem:[#allocation3 + $0x80] sm:$0xff] %vm1367, %v3060
    %3117 = vst.msk [vmem:[#allocation3 + $0x88] sm:$0xff] %vm1367, %v3061
    %3118 = vst.msk [vmem:[#allocation3 + $0x90] sm:$0xff] %vm1367, %v3062
    %3119 = vst.msk [vmem:[#allocation3 + $0x98] sm:$0xff] %vm1367, %v3063
    %3120 = vst.msk [vmem:[#allocation3 + $0xa0] sm:$0xff] %vm1367, %v3064
    %3121 = vst.msk [vmem:[#allocation3 + $0xa8] sm:$0xff] %vm1367, %v3065
    %3122 = vst.msk [vmem:[#allocation3 + $0xb0] sm:$0xff] %vm1367, %v3066
    %3123 = vst.msk [vmem:[#allocation3 + $0xb8] sm:$0xff] %vm1367, %v3067
    %3124 = vst.msk [vmem:[#allocation3 + $0xc0] sm:$0xff] %vm1367, %v3068
    %3125 = vst.msk [vmem:[#allocation3 + $0xc8] sm:$0xff] %vm1367, %v3069
    %3126 = vst.msk [vmem:[#allocation3 + $0xd0] sm:$0xff] %vm1367, %v3070
    %3127 = vst.msk [vmem:[#allocation3 + $0xd8] sm:$0xff] %vm1367, %v3071
    %3128 = vst.msk [vmem:[#allocation3 + $0xe0] sm:$0xff] %vm1367, %v3072
    %3129 = vst.msk [vmem:[#allocation3 + $0xe8] sm:$0xff] %vm1367, %v3073
    %3130 = vst.msk [vmem:[#allocation3 + $0xf0] sm:$0xff] %vm1367, %v3074
    %3131 = vst.msk [vmem:[#allocation3 + $0xf8] sm:$0xff] %vm1367, %v3075
    %3132 = vst.msk [vmem:[#allocation3 + $0x100] sm:$0xff] %vm1367, %v3076
    %3133 = vst.msk [vmem:[#allocation3 + $0x108] sm:$0xff] %vm1367, %v3077
    %3134 = vst.msk [vmem:[#allocation3 + $0x110] sm:$0xff] %vm1367, %v3078
    %3135 = vst.msk [vmem:[#allocation3 + $0x118] sm:$0xff] %vm1367, %v3079
    %3136 = vst.msk [vmem:[#allocation3 + $0x120] sm:$0xff] %vm1367, %v3080
    %3137 = vst.msk [vmem:[#allocation3 + $0x128] sm:$0xff] %vm1367, %v3081
    %3138 = vst.msk [vmem:[#allocation3 + $0x130] sm:$0xff] %vm1367, %v3082
    %3139 = vst.msk [vmem:[#allocation3 + $0x138] sm:$0xff] %vm1367, %v3083
    %3140 = vst.msk [vmem:[#allocation3 + $0x140] sm:$0xff] %vm1367, %v3084
    %3141 = vst.msk [vmem:[#allocation3 + $0x148] sm:$0xff] %vm1367, %v3085
    %3142 = vst.msk [vmem:[#allocation3 + $0x150] sm:$0xff] %vm1367, %v3086
    %3143 = vst.msk [vmem:[#allocation3 + $0x158] sm:$0xff] %vm1367, %v3087
    %3144 = vst.msk [vmem:[#allocation3 + $0x160] sm:$0xff] %vm1367, %v3088
    %3145 = vst.msk [vmem:[#allocation3 + $0x168] sm:$0xff] %vm1367, %v3089
    %3146 = vst.msk [vmem:[#allocation3 + $0x170] sm:$0xff] %vm1367, %v3090
    %3147 = vst.msk [vmem:[#allocation3 + $0x178] sm:$0xff] %vm1367, %v3091
    %3148 = vst.msk [vmem:[#allocation3 + $0x180] sm:$0xff] %vm1367, %v3092
    %3149 = vst.msk [vmem:[#allocation3 + $0x188] sm:$0xff] %vm1367, %v3093
    %3150 = vst.msk [vmem:[#allocation3 + $0x190] sm:$0xff] %vm1367, %v3094
    %3151 = vst.msk [vmem:[#allocation3 + $0x198] sm:$0xff] %vm1367, %v3095
    %3152 = vst.msk [vmem:[#allocation3 + $0x1a0] sm:$0xff] %vm1367, %v3096
    %3153 = vst.msk [vmem:[#allocation3 + $0x1a8] sm:$0xff] %vm1367, %v3097
    %3154 = vst.msk [vmem:[#allocation3 + $0x1b0] sm:$0xff] %vm1367, %v3098
    %3155 = vst.msk [vmem:[#allocation3 + $0x1b8] sm:$0xf] %vm1423, %v3099
    %v3156 = vld [vmem:[#allocation3] sm:$0xff]
    %v3157 = vld [vmem:[#allocation3 + $0x8] sm:$0xff]
    %v3158 = vld [vmem:[#allocation3 + $0x20] sm:$0xff]
    %v3159 = vld [vmem:[#allocation3 + $0x28] sm:$0xff]
    %v3160 = vld [vmem:[#allocation3 + $0x40] sm:$0xff]
    %v3161 = vld [vmem:[#allocation3 + $0x48] sm:$0xff]
    %v3162 = vld [vmem:[#allocation3 + $0x60] sm:$0xff]
    %v3163 = vld [vmem:[#allocation3 + $0x68] sm:$0xff]
    %v3164 = vld [vmem:[#allocation3 + $0x80] sm:$0xff]
    %v3165 = vld [vmem:[#allocation3 + $0x88] sm:$0xff]
    %v3166 = vld [vmem:[#allocation3 + $0xa0] sm:$0xff]
    %v3167 = vld [vmem:[#allocation3 + $0xa8] sm:$0x7]
    %v3168 = vld [vmem:[#allocation3 + $0x1] sm:$0xff]
    %v3169 = vld [vmem:[#allocation3 + $0x9] sm:$0xff]
    %v3170 = vld [vmem:[#allocation3 + $0x21] sm:$0xff]
    %v3171 = vld [vmem:[#allocation3 + $0x29] sm:$0xff]
    %v3172 = vld [vmem:[#allocation3 + $0x41] sm:$0xff]
    %v3173 = vld [vmem:[#allocation3 + $0x49] sm:$0xff]
    %v3174 = vld [vmem:[#allocation3 + $0x61] sm:$0xff]
    %v3175 = vld [vmem:[#allocation3 + $0x69] sm:$0xff]
    %v3176 = vld [vmem:[#allocation3 + $0x81] sm:$0xff]
    %v3177 = vld [vmem:[#allocation3 + $0x89] sm:$0xff]
    %v3178 = vld [vmem:[#allocation3 + $0xa1] sm:$0xff]
    %v3179 = vld [vmem:[#allocation3 + $0xa9] sm:$0x7]
    %v3180 = vmax.f32 %v3156, %v3168
    %v3181 = vmax.f32 %v3157, %v3169
    %v3182 = vmax.f32 %v3158, %v3170
    %v3183 = vmax.f32 %v3159, %v3171
    %v3184 = vmax.f32 %v3160, %v3172
    %v3185 = vmax.f32 %v3161, %v3173
    %v3186 = vmax.f32 %v3162, %v3174
    %v3187 = vmax.f32 %v3163, %v3175
    %v3188 = vmax.f32 %v3164, %v3176
    %v3189 = vmax.f32 %v3165, %v3177
    %v3190 = vmax.f32 %v3166, %v3178
    %v3191 = vmax.f32 %v3167, %v3179
    %v3192 = vld [vmem:[#allocation3 + $0x10] sm:$0xff]
    %v3193 = vld [vmem:[#allocation3 + $0x18] sm:$0xff]
    %v3194 = vld [vmem:[#allocation3 + $0x30] sm:$0xff]
    %v3195 = vld [vmem:[#allocation3 + $0x38] sm:$0xff]
    %v3196 = vld [vmem:[#allocation3 + $0x50] sm:$0xff]
    %v3197 = vld [vmem:[#allocation3 + $0x58] sm:$0xff]
    %v3198 = vld [vmem:[#allocation3 + $0x70] sm:$0xff]
    %v3199 = vld [vmem:[#allocation3 + $0x78] sm:$0xff]
    %v3200 = vld [vmem:[#allocation3 + $0x90] sm:$0xff]
    %v3201 = vld [vmem:[#allocation3 + $0x98] sm:$0xff]
    %v3202 = vld [vmem:[#allocation3 + $0xb0] sm:$0xff]
    %v3203 = vld [vmem:[#allocation3 + $0xb8] sm:$0x7]
    %v3204 = vld [vmem:[#allocation3 + $0x11] sm:$0xff]
    %v3205 = vld [vmem:[#allocation3 + $0x19] sm:$0xff]
    %v3206 = vld [vmem:[#allocation3 + $0x31] sm:$0xff]
    %v3207 = vld [vmem:[#allocation3 + $0x39] sm:$0xff]
    %v3208 = vld [vmem:[#allocation3 + $0x51] sm:$0xff]
    %v3209 = vld [vmem:[#allocation3 + $0x59] sm:$0xff]
    %v3210 = vld [vmem:[#allocation3 + $0x71] sm:$0xff]
    %v3211 = vld [vmem:[#allocation3 + $0x79] sm:$0xff]
    %v3212 = vld [vmem:[#allocation3 + $0x91] sm:$0xff]
    %v3213 = vld [vmem:[#allocation3 + $0x99] sm:$0xff]
    %v3214 = vld [vmem:[#allocation3 + $0xb1] sm:$0xff]
    %v3215 = vld [vmem:[#allocation3 + $0xb9] sm:$0x7]
    %v3216 = vmax.f32 %v3192, %v3204
    %v3217 = vmax.f32 %v3193, %v3205
    %v3218 = vmax.f32 %v3194, %v3206
    %v3219 = vmax.f32 %v3195, %v3207
    %v3220 = vmax.f32 %v3196, %v3208
    %v3221 = vmax.f32 %v3197, %v3209
    %v3222 = vmax.f32 %v3198, %v3210
    %v3223 = vmax.f32 %v3199, %v3211
    %v3224 = vmax.f32 %v3200, %v3212
    %v3225 = vmax.f32 %v3201, %v3213
    %v3226 = vmax.f32 %v3202, %v3214
    %v3227 = vmax.f32 %v3203, %v3215
    %v3228 = vmax.f32 %v3180, %v3216
    %v3229 = vmax.f32 %v3181, %v3217
    %v3230 = vmax.f32 %v3182, %v3218
    %v3231 = vmax.f32 %v3183, %v3219
    %v3232 = vmax.f32 %v3184, %v3220
    %v3233 = vmax.f32 %v3185, %v3221
    %v3234 = vmax.f32 %v3186, %v3222
    %v3235 = vmax.f32 %v3187, %v3223
    %v3236 = vmax.f32 %v3188, %v3224
    %v3237 = vmax.f32 %v3189, %v3225
    %v3238 = vmax.f32 %v3190, %v3226
    %v3239 = vmax.f32 %v3191, %v3227
    %v3241 = vrot.slane %v3228, 2
    %3242 = vrot.lane.b32.xlu0 %v3241, 64
    %v3243 = vpop.permute.xlu0 %3242
    %v3245 = vrot.slane %v3228, 4
    %v3247 = vrot.slane %v3228, 6
    %3248 = vrot.lane.b32.xlu0 %v3247, 64
    %v3249 = vpop.permute.xlu0 %3248
    %v3252 = vrot.slane %v3229, 2
    %3253 = vrot.lane.b32.xlu0 %v3252, 64
    %v3254 = vpop.permute.xlu0 %3253
    %v3256 = vsel %vm1367, %v3228, %v3243
    %v3257 = vsel %vm1367, %v3245, %v3249
    %v3258 = vsel %vm1367, %v3229, %v3254
    %v3262 = vcombine.low %v3256, %v3257
    %v3264 = vunpack.c.l.s4 1966171168
    %v3265 = vunpack.c.0.s8 %v3264
    %v3266 = vlaneseq
    %v3267 = vshrl.u32 %v3266, 7
    %v3268 = vsub.s32 %v3265, %v3267
    %v3269 = vrot.slane %v3262, %v3268
    %v3271 = vunpack.c.l.s4 1966171168
    %v3272 = vunpack.c.0.s8 %v3271
    %v3273 = vlaneseq
    %v3274 = vshrl.u32 %v3273, 7
    %v3275 = vsub.s32 %v3272, %v3274
    %v3276 = vrot.slane %v3258, %v3275
    %v3277 = vcombine.low %v3269, %v3276
    %v3279 = vunpack.c.l.s4 1966171168
    %v3280 = vunpack.c.0.s8 %v3279
    %v3281 = vlaneseq
    %v3282 = vshrl.u32 %v3281, 7
    %v3283 = vsub.s32 %v3280, %v3282
    %v3284 = vrot.slane %v3277, %v3283
    %v3286 = vlaneseq
    %vm3287 = vcmp.ge.s32.totalorder %v3286, 0
    %vm3288 = vcmp.lt.s32.totalorder %v3286, 384
    %vm3289 = vmand %vm3287, %vm3288
    %3290 = vst.msk [vmem:[#allocation4] ss:$2 sm:$0x7] %vm3289, %v3284
    %v3292 = vrot.slane %v3230, 2
    %3293 = vrot.lane.b32.xlu0 %v3292, 64
    %v3294 = vpop.permute.xlu0 %3293
    %v3296 = vrot.slane %v3230, 4
    %v3298 = vrot.slane %v3230, 6
    %3299 = vrot.lane.b32.xlu0 %v3298, 64
    %v3300 = vpop.permute.xlu0 %3299
    %v3303 = vrot.slane %v3231, 2
    %3304 = vrot.lane.b32.xlu0 %v3303, 64
    %v3305 = vpop.permute.xlu0 %3304
    %v3307 = vsel %vm1367, %v3230, %v3294
    %v3308 = vsel %vm1367, %v3296, %v3300
    %v3309 = vsel %vm1367, %v3231, %v3305
    %v3313 = vcombine.low %v3307, %v3308
    %v3315 = vunpack.c.l.s4 1966171168
    %v3316 = vunpack.c.0.s8 %v3315
    %v3317 = vlaneseq
    %v3318 = vshrl.u32 %v3317, 7
    %v3319 = vsub.s32 %v3316, %v3318
    %v3320 = vrot.slane %v3313, %v3319
    %v3322 = vunpack.c.l.s4 1966171168
    %v3323 = vunpack.c.0.s8 %v3322
    %v3324 = vlaneseq
    %v3325 = vshrl.u32 %v3324, 7
    %v3326 = vsub.s32 %v3323, %v3325
    %v3327 = vrot.slane %v3309, %v3326
    %v3328 = vcombine.low %v3320, %v3327
    %v3330 = vunpack.c.l.s4 1966171168
    %v3331 = vunpack.c.0.s8 %v3330
    %v3332 = vlaneseq
    %v3333 = vshrl.u32 %v3332, 7
    %v3334 = vsub.s32 %v3331, %v3333
    %v3335 = vrot.slane %v3328, %v3334
    %s3337 = scalar_lea.vmem [#allocation4], 6
    %3338 = vst.msk [vmem:[%s3337] ss:$2 sm:$0x7] %vm3289, %v3335
    %v3340 = vrot.slane %v3232, 2
    %3341 = vrot.lane.b32.xlu0 %v3340, 64
    %v3342 = vpop.permute.xlu0 %3341
    %v3344 = vrot.slane %v3232, 4
    %v3346 = vrot.slane %v3232, 6
    %3347 = vrot.lane.b32.xlu0 %v3346, 64
    %v3348 = vpop.permute.xlu0 %3347
    %v3351 = vrot.slane %v3233, 2
    %3352 = vrot.lane.b32.xlu0 %v3351, 64
    %v3353 = vpop.permute.xlu0 %3352
    %v3355 = vsel %vm1367, %v3232, %v3342
    %v3356 = vsel %vm1367, %v3344, %v3348
    %v3357 = vsel %vm1367, %v3233, %v3353
    %v3361 = vcombine.low %v3355, %v3356
    %v3363 = vunpack.c.l.s4 1966171168
    %v3364 = vunpack.c.0.s8 %v3363
    %v3365 = vlaneseq
    %v3366 = vshrl.u32 %v3365, 7
    %v3367 = vsub.s32 %v3364, %v3366
    %v3368 = vrot.slane %v3361, %v3367
    %v3370 = vunpack.c.l.s4 1966171168
    %v3371 = vunpack.c.0.s8 %v3370
    %v3372 = vlaneseq
    %v3373 = vshrl.u32 %v3372, 7
    %v3374 = vsub.s32 %v3371, %v3373
    %v3375 = vrot.slane %v3357, %v3374
    %v3376 = vcombine.low %v3368, %v3375
    %v3378 = vunpack.c.l.s4 1966171168
    %v3379 = vunpack.c.0.s8 %v3378
    %v3380 = vlaneseq
    %v3381 = vshrl.u32 %v3380, 7
    %v3382 = vsub.s32 %v3379, %v3381
    %v3383 = vrot.slane %v3376, %v3382
    %s3385 = scalar_lea.vmem [#allocation4], 12
    %3386 = vst.msk [vmem:[%s3385] ss:$2 sm:$0x7] %vm3289, %v3383
    %v3388 = vrot.slane %v3234, 2
    %3389 = vrot.lane.b32.xlu0 %v3388, 64
    %v3390 = vpop.permute.xlu0 %3389
    %v3392 = vrot.slane %v3234, 4
    %v3394 = vrot.slane %v3234, 6
    %3395 = vrot.lane.b32.xlu0 %v3394, 64
    %v3396 = vpop.permute.xlu0 %3395
    %v3399 = vrot.slane %v3235, 2
    %3400 = vrot.lane.b32.xlu0 %v3399, 64
    %v3401 = vpop.permute.xlu0 %3400
    %v3403 = vsel %vm1367, %v3234, %v3390
    %v3404 = vsel %vm1367, %v3392, %v3396
    %v3405 = vsel %vm1367, %v3235, %v3401
    %v3409 = vcombine.low %v3403, %v3404
    %v3411 = vunpack.c.l.s4 1966171168
    %v3412 = vunpack.c.0.s8 %v3411
    %v3413 = vlaneseq
    %v3414 = vshrl.u32 %v3413, 7
    %v3415 = vsub.s32 %v3412, %v3414
    %v3416 = vrot.slane %v3409, %v3415
    %v3418 = vunpack.c.l.s4 1966171168
    %v3419 = vunpack.c.0.s8 %v3418
    %v3420 = vlaneseq
    %v3421 = vshrl.u32 %v3420, 7
    %v3422 = vsub.s32 %v3419, %v3421
    %v3423 = vrot.slane %v3405, %v3422
    %v3424 = vcombine.low %v3416, %v3423
    %v3426 = vunpack.c.l.s4 1966171168
    %v3427 = vunpack.c.0.s8 %v3426
    %v3428 = vlaneseq
    %v3429 = vshrl.u32 %v3428, 7
    %v3430 = vsub.s32 %v3427, %v3429
    %v3431 = vrot.slane %v3424, %v3430
    %s3433 = scalar_lea.vmem [#allocation4], 18
    %3434 = vst.msk [vmem:[%s3433] ss:$2 sm:$0x7] %vm3289, %v3431
    %v3436 = vrot.slane %v3236, 2
    %3437 = vrot.lane.b32.xlu0 %v3436, 64
    %v3438 = vpop.permute.xlu0 %3437
    %v3440 = vrot.slane %v3236, 4
    %v3442 = vrot.slane %v3236, 6
    %3443 = vrot.lane.b32.xlu0 %v3442, 64
    %v3444 = vpop.permute.xlu0 %3443
    %v3447 = vrot.slane %v3237, 2
    %3448 = vrot.lane.b32.xlu0 %v3447, 64
    %v3449 = vpop.permute.xlu0 %3448
    %v3451 = vsel %vm1367, %v3236, %v3438
    %v3452 = vsel %vm1367, %v3440, %v3444
    %v3453 = vsel %vm1367, %v3237, %v3449
    %v3457 = vcombine.low %v3451, %v3452
    %v3459 = vunpack.c.l.s4 1966171168
    %v3460 = vunpack.c.0.s8 %v3459
    %v3461 = vlaneseq
    %v3462 = vshrl.u32 %v3461, 7
    %v3463 = vsub.s32 %v3460, %v3462
    %v3464 = vrot.slane %v3457, %v3463
    %v3466 = vunpack.c.l.s4 1966171168
    %v3467 = vunpack.c.0.s8 %v3466
    %v3468 = vlaneseq
    %v3469 = vshrl.u32 %v3468, 7
    %v3470 = vsub.s32 %v3467, %v3469
    %v3471 = vrot.slane %v3453, %v3470
    %v3472 = vcombine.low %v3464, %v3471
    %v3474 = vunpack.c.l.s4 1966171168
    %v3475 = vunpack.c.0.s8 %v3474
    %v3476 = vlaneseq
    %v3477 = vshrl.u32 %v3476, 7
    %v3478 = vsub.s32 %v3475, %v3477
    %v3479 = vrot.slane %v3472, %v3478
    %s3481 = scalar_lea.vmem [#allocation4], 24
    %3482 = vst.msk [vmem:[%s3481] ss:$2 sm:$0x7] %vm3289, %v3479
    %v3484 = vrot.slane %v3238, 2
    %3485 = vrot.lane.b32.xlu0 %v3484, 64
    %v3486 = vpop.permute.xlu0 %3485
    %v3488 = vrot.slane %v3238, 4
    %v3490 = vrot.slane %v3238, 6
    %3491 = vrot.lane.b32.xlu0 %v3490, 64
    %v3492 = vpop.permute.xlu0 %3491
    %v3495 = vrot.slane %v3239, 2
    %3496 = vrot.lane.b32.xlu0 %v3495, 64
    %v3497 = vpop.permute.xlu0 %3496
    %v3499 = vsel %vm1367, %v3238, %v3486
    %v3500 = vsel %vm1367, %v3488, %v3492
    %v3501 = vsel %vm1367, %v3239, %v3497
    %v3505 = vcombine.low %v3499, %v3500
    %v3507 = vunpack.c.l.s4 1966171168
    %v3508 = vunpack.c.0.s8 %v3507
    %v3509 = vlaneseq
    %v3510 = vshrl.u32 %v3509, 7
    %v3511 = vsub.s32 %v3508, %v3510
    %v3512 = vrot.slane %v3505, %v3511
    %v3514 = vunpack.c.l.s4 1966171168
    %v3515 = vunpack.c.0.s8 %v3514
    %v3516 = vlaneseq
    %v3517 = vshrl.u32 %v3516, 7
    %v3518 = vsub.s32 %v3515, %v3517
    %v3519 = vrot.slane %v3501, %v3518
    %v3520 = vcombine.low %v3512, %v3519
    %v3522 = vunpack.c.l.s4 1966171168
    %v3523 = vunpack.c.0.s8 %v3522
    %v3524 = vlaneseq
    %v3525 = vshrl.u32 %v3524, 7
    %v3526 = vsub.s32 %v3523, %v3525
    %v3527 = vrot.slane %v3520, %v3526
    %s3529 = scalar_lea.vmem [#allocation4], 30
    %3530 = vst.msk [vmem:[%s3529] ss:$2 sm:$0x7] %vm3289, %v3527
    %v3531 = vld [vmem:[#allocation3 + $0x100] sm:$0xff]
    %v3532 = vld [vmem:[#allocation3 + $0x108] sm:$0xff]
    %v3533 = vld [vmem:[#allocation3 + $0x120] sm:$0xff]
    %v3534 = vld [vmem:[#allocation3 + $0x128] sm:$0xff]
    %v3535 = vld [vmem:[#allocation3 + $0x140] sm:$0xff]
    %v3536 = vld [vmem:[#allocation3 + $0x148] sm:$0xff]
    %v3537 = vld [vmem:[#allocation3 + $0x160] sm:$0xff]
    %v3538 = vld [vmem:[#allocation3 + $0x168] sm:$0xff]
    %v3539 = vld [vmem:[#allocation3 + $0x180] sm:$0xff]
    %v3540 = vld [vmem:[#allocation3 + $0x188] sm:$0xff]
    %v3541 = vld [vmem:[#allocation3 + $0x1a0] sm:$0xff]
    %v3542 = vld [vmem:[#allocation3 + $0x1a8] sm:$0x7]
    %v3543 = vld [vmem:[#allocation3 + $0x101] sm:$0xff]
    %v3544 = vld [vmem:[#allocation3 + $0x109] sm:$0xff]
    %v3545 = vld [vmem:[#allocation3 + $0x121] sm:$0xff]
    %v3546 = vld [vmem:[#allocation3 + $0x129] sm:$0xff]
    %v3547 = vld [vmem:[#allocation3 + $0x141] sm:$0xff]
    %v3548 = vld [vmem:[#allocation3 + $0x149] sm:$0xff]
    %v3549 = vld [vmem:[#allocation3 + $0x161] sm:$0xff]
    %v3550 = vld [vmem:[#allocation3 + $0x169] sm:$0xff]
    %v3551 = vld [vmem:[#allocation3 + $0x181] sm:$0xff]
    %v3552 = vld [vmem:[#allocation3 + $0x189] sm:$0xff]
    %v3553 = vld [vmem:[#allocation3 + $0x1a1] sm:$0xff]
    %v3554 = vld [vmem:[#allocation3 + $0x1a9] sm:$0x7]
    %v3555 = vmax.f32 %v3531, %v3543
    %v3556 = vmax.f32 %v3532, %v3544
    %v3557 = vmax.f32 %v3533, %v3545
    %v3558 = vmax.f32 %v3534, %v3546
    %v3559 = vmax.f32 %v3535, %v3547
    %v3560 = vmax.f32 %v3536, %v3548
    %v3561 = vmax.f32 %v3537, %v3549
    %v3562 = vmax.f32 %v3538, %v3550
    %v3563 = vmax.f32 %v3539, %v3551
    %v3564 = vmax.f32 %v3540, %v3552
    %v3565 = vmax.f32 %v3541, %v3553
    %v3566 = vmax.f32 %v3542, %v3554
    %v3567 = vld [vmem:[#allocation3 + $0x110] sm:$0xff]
    %v3568 = vld [vmem:[#allocation3 + $0x118] sm:$0xff]
    %v3569 = vld [vmem:[#allocation3 + $0x130] sm:$0xff]
    %v3570 = vld [vmem:[#allocation3 + $0x138] sm:$0xff]
    %v3571 = vld [vmem:[#allocation3 + $0x150] sm:$0xff]
    %v3572 = vld [vmem:[#allocation3 + $0x158] sm:$0xff]
    %v3573 = vld [vmem:[#allocation3 + $0x170] sm:$0xff]
    %v3574 = vld [vmem:[#allocation3 + $0x178] sm:$0xff]
    %v3575 = vld [vmem:[#allocation3 + $0x190] sm:$0xff]
    %v3576 = vld [vmem:[#allocation3 + $0x198] sm:$0xff]
    %v3577 = vld [vmem:[#allocation3 + $0x1b0] sm:$0xff]
    %v3578 = vld [vmem:[#allocation3 + $0x1b8] sm:$0x7]
    %v3579 = vld [vmem:[#allocation3 + $0x111] sm:$0xff]
    %v3580 = vld [vmem:[#allocation3 + $0x119] sm:$0xff]
    %v3581 = vld [vmem:[#allocation3 + $0x131] sm:$0xff]
    %v3582 = vld [vmem:[#allocation3 + $0x139] sm:$0xff]
    %v3583 = vld [vmem:[#allocation3 + $0x151] sm:$0xff]
    %v3584 = vld [vmem:[#allocation3 + $0x159] sm:$0xff]
    %v3585 = vld [vmem:[#allocation3 + $0x171] sm:$0xff]
    %v3586 = vld [vmem:[#allocation3 + $0x179] sm:$0xff]
    %v3587 = vld [vmem:[#allocation3 + $0x191] sm:$0xff]
    %v3588 = vld [vmem:[#allocation3 + $0x199] sm:$0xff]
    %v3589 = vld [vmem:[#allocation3 + $0x1b1] sm:$0xff]
    %v3590 = vld [vmem:[#allocation3 + $0x1b9] sm:$0x7]
    %v3591 = vmax.f32 %v3567, %v3579
    %v3592 = vmax.f32 %v3568, %v3580
    %v3593 = vmax.f32 %v3569, %v3581
    %v3594 = vmax.f32 %v3570, %v3582
    %v3595 = vmax.f32 %v3571, %v3583
    %v3596 = vmax.f32 %v3572, %v3584
    %v3597 = vmax.f32 %v3573, %v3585
    %v3598 = vmax.f32 %v3574, %v3586
    %v3599 = vmax.f32 %v3575, %v3587
    %v3600 = vmax.f32 %v3576, %v3588
    %v3601 = vmax.f32 %v3577, %v3589
    %v3602 = vmax.f32 %v3578, %v3590
    %v3603 = vmax.f32 %v3555, %v3591
    %v3604 = vmax.f32 %v3556, %v3592
    %v3605 = vmax.f32 %v3557, %v3593
    %v3606 = vmax.f32 %v3558, %v3594
    %v3607 = vmax.f32 %v3559, %v3595
    %v3608 = vmax.f32 %v3560, %v3596
    %v3609 = vmax.f32 %v3561, %v3597
    %v3610 = vmax.f32 %v3562, %v3598
    %v3611 = vmax.f32 %v3563, %v3599
    %v3612 = vmax.f32 %v3564, %v3600
    %v3613 = vmax.f32 %v3565, %v3601
    %v3614 = vmax.f32 %v3566, %v3602
    %v3616 = vrot.slane %v3603, 2
    %3617 = vrot.lane.b32.xlu0 %v3616, 64
    %v3618 = vpop.permute.xlu0 %3617
    %v3620 = vrot.slane %v3603, 4
    %v3622 = vrot.slane %v3603, 6
    %3623 = vrot.lane.b32.xlu0 %v3622, 64
    %v3624 = vpop.permute.xlu0 %3623
    %v3627 = vrot.slane %v3604, 2
    %3628 = vrot.lane.b32.xlu0 %v3627, 64
    %v3629 = vpop.permute.xlu0 %3628
    %v3631 = vsel %vm1367, %v3603, %v3618
    %v3632 = vsel %vm1367, %v3620, %v3624
    %v3633 = vsel %vm1367, %v3604, %v3629
    %v3637 = vcombine.low %v3631, %v3632
    %v3639 = vunpack.c.l.s4 1966171168
    %v3640 = vunpack.c.0.s8 %v3639
    %v3641 = vlaneseq
    %v3642 = vshrl.u32 %v3641, 7
    %v3643 = vsub.s32 %v3640, %v3642
    %v3644 = vrot.slane %v3637, %v3643
    %v3646 = vunpack.c.l.s4 1966171168
    %v3647 = vunpack.c.0.s8 %v3646
    %v3648 = vlaneseq
    %v3649 = vshrl.u32 %v3648, 7
    %v3650 = vsub.s32 %v3647, %v3649
    %v3651 = vrot.slane %v3633, %v3650
    %v3652 = vcombine.low %v3644, %v3651
    %v3654 = vunpack.c.l.s4 1966171168
    %v3655 = vunpack.c.0.s8 %v3654
    %v3656 = vlaneseq
    %v3657 = vshrl.u32 %v3656, 7
    %v3658 = vsub.s32 %v3655, %v3657
    %v3659 = vrot.slane %v3652, %v3658
    %s3661 = scalar_lea.vmem [#allocation4], 1
    %3662 = vst.msk [vmem:[%s3661] ss:$2 sm:$0x7] %vm3289, %v3659
    %v3664 = vrot.slane %v3605, 2
    %3665 = vrot.lane.b32.xlu0 %v3664, 64
    %v3666 = vpop.permute.xlu0 %3665
    %v3668 = vrot.slane %v3605, 4
    %v3670 = vrot.slane %v3605, 6
    %3671 = vrot.lane.b32.xlu0 %v3670, 64
    %v3672 = vpop.permute.xlu0 %3671
    %v3675 = vrot.slane %v3606, 2
    %3676 = vrot.lane.b32.xlu0 %v3675, 64
    %v3677 = vpop.permute.xlu0 %3676
    %v3679 = vsel %vm1367, %v3605, %v3666
    %v3680 = vsel %vm1367, %v3668, %v3672
    %v3681 = vsel %vm1367, %v3606, %v3677
    %v3685 = vcombine.low %v3679, %v3680
    %v3687 = vunpack.c.l.s4 1966171168
    %v3688 = vunpack.c.0.s8 %v3687
    %v3689 = vlaneseq
    %v3690 = vshrl.u32 %v3689, 7
    %v3691 = vsub.s32 %v3688, %v3690
    %v3692 = vrot.slane %v3685, %v3691
    %v3694 = vunpack.c.l.s4 1966171168
    %v3695 = vunpack.c.0.s8 %v3694
    %v3696 = vlaneseq
    %v3697 = vshrl.u32 %v3696, 7
    %v3698 = vsub.s32 %v3695, %v3697
    %v3699 = vrot.slane %v3681, %v3698
    %v3700 = vcombine.low %v3692, %v3699
    %v3702 = vunpack.c.l.s4 1966171168
    %v3703 = vunpack.c.0.s8 %v3702
    %v3704 = vlaneseq
    %v3705 = vshrl.u32 %v3704, 7
    %v3706 = vsub.s32 %v3703, %v3705
    %v3707 = vrot.slane %v3700, %v3706
    %s3709 = scalar_lea.vmem [#allocation4], 7
    %3710 = vst.msk [vmem:[%s3709] ss:$2 sm:$0x7] %vm3289, %v3707
    %v3712 = vrot.slane %v3607, 2
    %3713 = vrot.lane.b32.xlu0 %v3712, 64
    %v3714 = vpop.permute.xlu0 %3713
    %v3716 = vrot.slane %v3607, 4
    %v3718 = vrot.slane %v3607, 6
    %3719 = vrot.lane.b32.xlu0 %v3718, 64
    %v3720 = vpop.permute.xlu0 %3719
    %v3723 = vrot.slane %v3608, 2
    %3724 = vrot.lane.b32.xlu0 %v3723, 64
    %v3725 = vpop.permute.xlu0 %3724
    %v3727 = vsel %vm1367, %v3607, %v3714
    %v3728 = vsel %vm1367, %v3716, %v3720
    %v3729 = vsel %vm1367, %v3608, %v3725
    %v3733 = vcombine.low %v3727, %v3728
    %v3735 = vunpack.c.l.s4 1966171168
    %v3736 = vunpack.c.0.s8 %v3735
    %v3737 = vlaneseq
    %v3738 = vshrl.u32 %v3737, 7
    %v3739 = vsub.s32 %v3736, %v3738
    %v3740 = vrot.slane %v3733, %v3739
    %v3742 = vunpack.c.l.s4 1966171168
    %v3743 = vunpack.c.0.s8 %v3742
    %v3744 = vlaneseq
    %v3745 = vshrl.u32 %v3744, 7
    %v3746 = vsub.s32 %v3743, %v3745
    %v3747 = vrot.slane %v3729, %v3746
    %v3748 = vcombine.low %v3740, %v3747
    %v3750 = vunpack.c.l.s4 1966171168
    %v3751 = vunpack.c.0.s8 %v3750
    %v3752 = vlaneseq
    %v3753 = vshrl.u32 %v3752, 7
    %v3754 = vsub.s32 %v3751, %v3753
    %v3755 = vrot.slane %v3748, %v3754
    %s3757 = scalar_lea.vmem [#allocation4], 13
    %3758 = vst.msk [vmem:[%s3757] ss:$2 sm:$0x7] %vm3289, %v3755
    %v3760 = vrot.slane %v3609, 2
    %3761 = vrot.lane.b32.xlu0 %v3760, 64
    %v3762 = vpop.permute.xlu0 %3761
    %v3764 = vrot.slane %v3609, 4
    %v3766 = vrot.slane %v3609, 6
    %3767 = vrot.lane.b32.xlu0 %v3766, 64
    %v3768 = vpop.permute.xlu0 %3767
    %v3771 = vrot.slane %v3610, 2
    %3772 = vrot.lane.b32.xlu0 %v3771, 64
    %v3773 = vpop.permute.xlu0 %3772
    %v3775 = vsel %vm1367, %v3609, %v3762
    %v3776 = vsel %vm1367, %v3764, %v3768
    %v3777 = vsel %vm1367, %v3610, %v3773
    %v3781 = vcombine.low %v3775, %v3776
    %v3783 = vunpack.c.l.s4 1966171168
    %v3784 = vunpack.c.0.s8 %v3783
    %v3785 = vlaneseq
    %v3786 = vshrl.u32 %v3785, 7
    %v3787 = vsub.s32 %v3784, %v3786
    %v3788 = vrot.slane %v3781, %v3787
    %v3790 = vunpack.c.l.s4 1966171168
    %v3791 = vunpack.c.0.s8 %v3790
    %v3792 = vlaneseq
    %v3793 = vshrl.u32 %v3792, 7
    %v3794 = vsub.s32 %v3791, %v3793
    %v3795 = vrot.slane %v3777, %v3794
    %v3796 = vcombine.low %v3788, %v3795
    %v3798 = vunpack.c.l.s4 1966171168
    %v3799 = vunpack.c.0.s8 %v3798
    %v3800 = vlaneseq
    %v3801 = vshrl.u32 %v3800, 7
    %v3802 = vsub.s32 %v3799, %v3801
    %v3803 = vrot.slane %v3796, %v3802
    %s3805 = scalar_lea.vmem [#allocation4], 19
    %3806 = vst.msk [vmem:[%s3805] ss:$2 sm:$0x7] %vm3289, %v3803
    %v3808 = vrot.slane %v3611, 2
    %3809 = vrot.lane.b32.xlu0 %v3808, 64
    %v3810 = vpop.permute.xlu0 %3809
    %v3812 = vrot.slane %v3611, 4
    %v3814 = vrot.slane %v3611, 6
    %3815 = vrot.lane.b32.xlu0 %v3814, 64
    %v3816 = vpop.permute.xlu0 %3815
    %v3819 = vrot.slane %v3612, 2
    %3820 = vrot.lane.b32.xlu0 %v3819, 64
    %v3821 = vpop.permute.xlu0 %3820
    %v3823 = vsel %vm1367, %v3611, %v3810
    %v3824 = vsel %vm1367, %v3812, %v3816
    %v3825 = vsel %vm1367, %v3612, %v3821
    %v3829 = vcombine.low %v3823, %v3824
    %v3831 = vunpack.c.l.s4 1966171168
    %v3832 = vunpack.c.0.s8 %v3831
    %v3833 = vlaneseq
    %v3834 = vshrl.u32 %v3833, 7
    %v3835 = vsub.s32 %v3832, %v3834
    %v3836 = vrot.slane %v3829, %v3835
    %v3838 = vunpack.c.l.s4 1966171168
    %v3839 = vunpack.c.0.s8 %v3838
    %v3840 = vlaneseq
    %v3841 = vshrl.u32 %v3840, 7
    %v3842 = vsub.s32 %v3839, %v3841
    %v3843 = vrot.slane %v3825, %v3842
    %v3844 = vcombine.low %v3836, %v3843
    %v3846 = vunpack.c.l.s4 1966171168
    %v3847 = vunpack.c.0.s8 %v3846
    %v3848 = vlaneseq
    %v3849 = vshrl.u32 %v3848, 7
    %v3850 = vsub.s32 %v3847, %v3849
    %v3851 = vrot.slane %v3844, %v3850
    %s3853 = scalar_lea.vmem [#allocation4], 25
    %3854 = vst.msk [vmem:[%s3853] ss:$2 sm:$0x7] %vm3289, %v3851
    %v3856 = vrot.slane %v3613, 2
    %3857 = vrot.lane.b32.xlu0 %v3856, 64
    %v3858 = vpop.permute.xlu0 %3857
    %v3860 = vrot.slane %v3613, 4
    %v3862 = vrot.slane %v3613, 6
    %3863 = vrot.lane.b32.xlu0 %v3862, 64
    %v3864 = vpop.permute.xlu0 %3863
    %v3867 = vrot.slane %v3614, 2
    %3868 = vrot.lane.b32.xlu0 %v3867, 64
    %v3869 = vpop.permute.xlu0 %3868
    %v3871 = vsel %vm1367, %v3613, %v3858
    %v3872 = vsel %vm1367, %v3860, %v3864
    %v3873 = vsel %vm1367, %v3614, %v3869
    %v3877 = vcombine.low %v3871, %v3872
    %v3879 = vunpack.c.l.s4 1966171168
    %v3880 = vunpack.c.0.s8 %v3879
    %v3881 = vlaneseq
    %v3882 = vshrl.u32 %v3881, 7
    %v3883 = vsub.s32 %v3880, %v3882
    %v3884 = vrot.slane %v3877, %v3883
    %v3886 = vunpack.c.l.s4 1966171168
    %v3887 = vunpack.c.0.s8 %v3886
    %v3888 = vlaneseq
    %v3889 = vshrl.u32 %v3888, 7
    %v3890 = vsub.s32 %v3887, %v3889
    %v3891 = vrot.slane %v3873, %v3890
    %v3892 = vcombine.low %v3884, %v3891
    %v3894 = vunpack.c.l.s4 1966171168
    %v3895 = vunpack.c.0.s8 %v3894
    %v3896 = vlaneseq
    %v3897 = vshrl.u32 %v3896, 7
    %v3898 = vsub.s32 %v3895, %v3897
    %v3899 = vrot.slane %v3892, %v3898
    %s3901 = scalar_lea.vmem [#allocation4], 31
    %3902 = vst.msk [vmem:[%s3901] ss:$2 sm:$0x7] %vm3289, %v3899
    %v3903 = vld [vmem:[#allocation4] sm:$0xff]
    %v3904 = vld [vmem:[#allocation4 + $0x8] sm:$0xff]
    %v3905 = vld [vmem:[#allocation4 + $0x10] sm:$0xff]
    %v3906 = vld [vmem:[#allocation4 + $0x18] sm:$0xff]
    %v3907 = vld [vmem:[#allocation4 + $0x20] sm:$0xf]
    %v3908 = vld [vmem:[%s5] sm:$0xff]
    %v3909 = vld [vmem:[%s5 + $0x8] sm:$0xff]
    %v3910 = vld [vmem:[%s5 + $0x10] sm:$0xff]
    %v3911 = vld [vmem:[%s5 + $0x18] sm:$0xff]
    %v3912 = vld [vmem:[%s5 + $0x20] sm:$0xff]
    %v3913 = vld [vmem:[%s5 + $0x28] sm:$0xff]
    %v3914 = vld [vmem:[%s5 + $0x30] sm:$0xff]
    %v3915 = vld [vmem:[%s5 + $0x38] sm:$0xff]
    %v3916 = vld [vmem:[%s5 + $0x40] sm:$0xff]
    %v3917 = vld [vmem:[%s5 + $0x48] sm:$0xff]
    %v3918 = vld [vmem:[%s5 + $0x50] sm:$0xff]
    %v3919 = vld [vmem:[%s5 + $0x58] sm:$0xff]
    %v3920 = vld [vmem:[%s5 + $0x60] sm:$0xff]
    %v3921 = vld [vmem:[%s5 + $0x68] sm:$0xff]
    %v3922 = vld [vmem:[%s5 + $0x70] sm:$0xff]
    %v3923 = vld [vmem:[%s5 + $0x78] sm:$0xff]
    %v3924 = vld [vmem:[%s5 + $0x80] sm:$0xff]
    %v3925 = vld [vmem:[%s5 + $0x88] sm:$0xff]
    %v3926 = vld [vmem:[%s5 + $0x90] sm:$0xff]
    %v3927 = vld [vmem:[%s5 + $0x98] sm:$0xff]
    %v3928 = vld [vmem:[%s5 + $0xa0] sm:$0xff]
    %v3929 = vld [vmem:[%s5 + $0xa8] sm:$0xff]
    %v3930 = vld [vmem:[%s5 + $0xb0] sm:$0xff]
    %v3931 = vld [vmem:[%s5 + $0xb8] sm:$0xff]
    %v3932 = vld [vmem:[%s5 + $0xc0] sm:$0xff]
    %v3933 = vld [vmem:[%s5 + $0xc8] sm:$0xff]
    %v3934 = vld [vmem:[%s5 + $0xd0] sm:$0xff]
    %v3935 = vld [vmem:[%s5 + $0xd8] sm:$0xff]
    %v3936 = vld [vmem:[%s5 + $0xe0] sm:$0xff]
    %v3937 = vld [vmem:[%s5 + $0xe8] sm:$0xff]
    %v3938 = vld [vmem:[%s5 + $0xf0] sm:$0xff]
    %v3939 = vld [vmem:[%s5 + $0xf8] sm:$0xff]
    %v3940 = vld [vmem:[%s5 + $0x100] sm:$0xff]
    %v3941 = vld [vmem:[%s5 + $0x108] sm:$0xff]
    %v3942 = vld [vmem:[%s5 + $0x110] sm:$0xff]
    %v3943 = vld [vmem:[%s5 + $0x118] sm:$0xff]
    %v3944 = vld [vmem:[%s5 + $0x120] sm:$0xff]
    %v3945 = vld [vmem:[%s5 + $0x128] sm:$0xff]
    %v3946 = vld [vmem:[%s5 + $0x130] sm:$0xff]
    %v3947 = vld [vmem:[%s5 + $0x138] sm:$0xff]
    %v3948 = vld [vmem:[%s5 + $0x140] sm:$0xff]
    %v3949 = vld [vmem:[%s5 + $0x148] sm:$0xff]
    %v3950 = vld [vmem:[%s5 + $0x150] sm:$0xff]
    %v3951 = vld [vmem:[%s5 + $0x158] sm:$0xff]
    %v3952 = vld [vmem:[%s5 + $0x160] sm:$0xff]
    %v3953 = vld [vmem:[%s5 + $0x168] sm:$0xff]
    %v3954 = vld [vmem:[%s5 + $0x170] sm:$0xff]
    %v3955 = vld [vmem:[%s5 + $0x178] sm:$0xff]
    %v3956 = vld [vmem:[%s5 + $0x180] sm:$0xff]
    %v3957 = vld [vmem:[%s5 + $0x188] sm:$0xff]
    %v3958 = vld [vmem:[%s5 + $0x190] sm:$0xff]
    %v3959 = vld [vmem:[%s5 + $0x198] sm:$0xff]
    %v3960 = vld [vmem:[%s5 + $0x1a0] sm:$0xff]
    %v3961 = vld [vmem:[%s5 + $0x1a8] sm:$0xff]
    %v3962 = vld [vmem:[%s5 + $0x1b0] sm:$0xff]
    %v3963 = vld [vmem:[%s5 + $0x1b8] sm:$0xff]
    %v3964 = vld [vmem:[%s5 + $0x1c0] sm:$0xff]
    %v3965 = vld [vmem:[%s5 + $0x1c8] sm:$0xff]
    %v3966 = vld [vmem:[%s5 + $0x1d0] sm:$0xff]
    %v3967 = vld [vmem:[%s5 + $0x1d8] sm:$0xff]
    %v3968 = vld [vmem:[%s5 + $0x1e0] sm:$0xff]
    %v3969 = vld [vmem:[%s5 + $0x1e8] sm:$0xff]
    %v3970 = vld [vmem:[%s5 + $0x1f0] sm:$0xff]
    %v3971 = vld [vmem:[%s5 + $0x1f8] sm:$0xff]
    %v3972 = vld [vmem:[%s5 + $0x200] sm:$0xff]
    %v3973 = vld [vmem:[%s5 + $0x208] sm:$0xff]
    %v3974 = vld [vmem:[%s5 + $0x210] sm:$0xff]
    %v3975 = vld [vmem:[%s5 + $0x218] sm:$0xff]
    %v3976 = vld [vmem:[%s5 + $0x220] sm:$0xff]
    %v3977 = vld [vmem:[%s5 + $0x228] sm:$0xff]
    %v3978 = vld [vmem:[%s5 + $0x230] sm:$0xff]
    %v3979 = vld [vmem:[%s5 + $0x238] sm:$0xff]
    %v3980 = vld [vmem:[%s5 + $0x240] sm:$0xff]
    %v3981 = vld [vmem:[%s5 + $0x248] sm:$0xff]
    %v3982 = vld [vmem:[%s5 + $0x250] sm:$0xff]
    %v3983 = vld [vmem:[%s5 + $0x258] sm:$0xff]
    %v3984 = vld [vmem:[%s5 + $0x260] sm:$0xff]
    %v3985 = vld [vmem:[%s5 + $0x268] sm:$0xff]
    %v3986 = vld [vmem:[%s5 + $0x270] sm:$0xff]
    %v3987 = vld [vmem:[%s5 + $0x278] sm:$0xff]
    %v3988 = vld [vmem:[%s5 + $0x280] sm:$0xff]
    %v3989 = vld [vmem:[%s5 + $0x288] sm:$0xff]
    %v3990 = vld [vmem:[%s5 + $0x290] sm:$0xff]
    %v3991 = vld [vmem:[%s5 + $0x298] sm:$0xff]
    %v3992 = vld [vmem:[%s5 + $0x2a0] sm:$0xff]
    %v3993 = vld [vmem:[%s5 + $0x2a8] sm:$0xff]
    %v3994 = vld [vmem:[%s5 + $0x2b0] sm:$0xff]
    %v3995 = vld [vmem:[%s5 + $0x2b8] sm:$0xff]
    %v3996 = vld [vmem:[%s5 + $0x2c0] sm:$0xff]
    %v3997 = vld [vmem:[%s5 + $0x2c8] sm:$0xff]
    %v3998 = vld [vmem:[%s5 + $0x2d0] sm:$0xff]
    %v3999 = vld [vmem:[%s5 + $0x2d8] sm:$0xff]
    %v4000 = vld [vmem:[%s5 + $0x2e0] sm:$0xff]
    %v4001 = vld [vmem:[%s5 + $0x2e8] sm:$0xff]
    %v4002 = vld [vmem:[%s5 + $0x2f0] sm:$0xff]
    %v4003 = vld [vmem:[%s5 + $0x2f8] sm:$0xff]
    %v4004 = vld [vmem:[%s5 + $0x300] sm:$0xff]
    %v4005 = vld [vmem:[%s5 + $0x308] sm:$0xff]
    %v4006 = vld [vmem:[%s5 + $0x310] sm:$0xff]
    %v4007 = vld [vmem:[%s5 + $0x318] sm:$0xff]
    %v4008 = vld [vmem:[%s5 + $0x320] sm:$0xff]
    %v4009 = vld [vmem:[%s5 + $0x328] sm:$0xff]
    %v4010 = vld [vmem:[%s5 + $0x330] sm:$0xff]
    %v4011 = vld [vmem:[%s5 + $0x338] sm:$0xff]
    %v4012 = vld [vmem:[%s5 + $0x340] sm:$0xff]
    %v4013 = vld [vmem:[%s5 + $0x348] sm:$0xff]
    %v4014 = vld [vmem:[%s5 + $0x350] sm:$0xff]
    %v4015 = vld [vmem:[%s5 + $0x358] sm:$0xff]
    %v4016 = vld [vmem:[%s5 + $0x360] sm:$0xff]
    %v4017 = vld [vmem:[%s5 + $0x368] sm:$0xff]
    %v4018 = vld [vmem:[%s5 + $0x370] sm:$0xff]
    %v4019 = vld [vmem:[%s5 + $0x378] sm:$0xff]
    %v4020 = vld [vmem:[%s5 + $0x380] sm:$0xff]
    %v4021 = vld [vmem:[%s5 + $0x388] sm:$0xff]
    %v4022 = vld [vmem:[%s5 + $0x390] sm:$0xff]
    %v4023 = vld [vmem:[%s5 + $0x398] sm:$0xff]
    %v4024 = vld [vmem:[%s5 + $0x3a0] sm:$0xff]
    %v4025 = vld [vmem:[%s5 + $0x3a8] sm:$0xff]
    %v4026 = vld [vmem:[%s5 + $0x3b0] sm:$0xff]
    %v4027 = vld [vmem:[%s5 + $0x3b8] sm:$0xff]
    %v4028 = vld [vmem:[%s5 + $0x3c0] sm:$0xff]
    %v4029 = vld [vmem:[%s5 + $0x3c8] sm:$0xff]
    %v4030 = vld [vmem:[%s5 + $0x3d0] sm:$0xff]
    %v4031 = vld [vmem:[%s5 + $0x3d8] sm:$0xff]
    %v4032 = vld [vmem:[%s5 + $0x3e0] sm:$0xff]
    %v4033 = vld [vmem:[%s5 + $0x3e8] sm:$0xff]
    %v4034 = vld [vmem:[%s5 + $0x3f0] sm:$0xff]
    %v4035 = vld [vmem:[%s5 + $0x3f8] sm:$0xff]
    %v4036 = vld [vmem:[%s5 + $0x400] sm:$0xff]
    %v4037 = vld [vmem:[%s5 + $0x408] sm:$0xff]
    %v4038 = vld [vmem:[%s5 + $0x410] sm:$0xff]
    %v4039 = vld [vmem:[%s5 + $0x418] sm:$0xff]
    %v4040 = vld [vmem:[%s5 + $0x420] sm:$0xff]
    %v4041 = vld [vmem:[%s5 + $0x428] sm:$0xff]
    %v4042 = vld [vmem:[%s5 + $0x430] sm:$0xff]
    %v4043 = vld [vmem:[%s5 + $0x438] sm:$0xff]
    %v4044 = vld [vmem:[%s5 + $0x440] sm:$0xff]
    %v4045 = vld [vmem:[%s5 + $0x448] sm:$0xff]
    %v4046 = vld [vmem:[%s5 + $0x450] sm:$0xff]
    %v4047 = vld [vmem:[%s5 + $0x458] sm:$0xff]
    %v4048 = vld [vmem:[%s5 + $0x460] sm:$0xff]
    %v4049 = vld [vmem:[%s5 + $0x468] sm:$0xff]
    %v4050 = vld [vmem:[%s5 + $0x470] sm:$0xff]
    %v4051 = vld [vmem:[%s5 + $0x478] sm:$0xff]
    %v4052 = vld [vmem:[%s5 + $0x480] sm:$0xff]
    %v4053 = vld [vmem:[%s5 + $0x488] sm:$0xff]
    %v4054 = vld [vmem:[%s5 + $0x490] sm:$0xff]
    %v4055 = vld [vmem:[%s5 + $0x498] sm:$0xff]
    %v4056 = vld [vmem:[%s5 + $0x4a0] sm:$0xff]
    %v4057 = vld [vmem:[%s5 + $0x4a8] sm:$0xff]
    %v4058 = vld [vmem:[%s5 + $0x4b0] sm:$0xff]
    %v4059 = vld [vmem:[%s5 + $0x4b8] sm:$0xff]
    %v4060 = vld [vmem:[%s5 + $0x4c0] sm:$0xff]
    %v4061 = vld [vmem:[%s5 + $0x4c8] sm:$0xff]
    %v4062 = vld [vmem:[%s5 + $0x4d0] sm:$0xff]
    %v4063 = vld [vmem:[%s5 + $0x4d8] sm:$0xff]
    %v4064 = vld [vmem:[%s5 + $0x4e0] sm:$0xff]
    %v4065 = vld [vmem:[%s5 + $0x4e8] sm:$0xff]
    %v4066 = vld [vmem:[%s5 + $0x4f0] sm:$0xff]
    %v4067 = vld [vmem:[%s5 + $0x4f8] sm:$0xff]
    %v4068 = vld [vmem:[%s5 + $0x500] sm:$0xff]
    %v4069 = vld [vmem:[%s5 + $0x508] sm:$0xff]
    %v4070 = vld [vmem:[%s5 + $0x510] sm:$0xff]
    %v4071 = vld [vmem:[%s5 + $0x518] sm:$0xff]
    %v4072 = vld [vmem:[%s5 + $0x520] sm:$0xff]
    %v4073 = vld [vmem:[%s5 + $0x528] sm:$0xff]
    %v4074 = vld [vmem:[%s5 + $0x530] sm:$0xff]
    %v4075 = vld [vmem:[%s5 + $0x538] sm:$0xff]
    %v4076 = vld [vmem:[%s5 + $0x540] sm:$0xff]
    %v4077 = vld [vmem:[%s5 + $0x548] sm:$0xff]
    %v4078 = vld [vmem:[%s5 + $0x550] sm:$0xff]
    %v4079 = vld [vmem:[%s5 + $0x558] sm:$0xff]
    %v4080 = vld [vmem:[%s5 + $0x560] sm:$0xff]
    %v4081 = vld [vmem:[%s5 + $0x568] sm:$0xff]
    %v4082 = vld [vmem:[%s5 + $0x570] sm:$0xff]
    %v4083 = vld [vmem:[%s5 + $0x578] sm:$0xff]
    %v4084 = vld [vmem:[%s5 + $0x580] sm:$0xff]
    %v4085 = vld [vmem:[%s5 + $0x588] sm:$0xff]
    %v4086 = vld [vmem:[%s5 + $0x590] sm:$0xff]
    %v4087 = vld [vmem:[%s5 + $0x598] sm:$0xff]
    %v4088 = vld [vmem:[%s5 + $0x5a0] sm:$0xff]
    %v4089 = vld [vmem:[%s5 + $0x5a8] sm:$0xff]
    %v4090 = vld [vmem:[%s5 + $0x5b0] sm:$0xff]
    %v4091 = vld [vmem:[%s5 + $0x5b8] sm:$0xff]
    %v4092 = vld [vmem:[%s5 + $0x5c0] sm:$0xff]
    %v4093 = vld [vmem:[%s5 + $0x5c8] sm:$0xff]
    %v4094 = vld [vmem:[%s5 + $0x5d0] sm:$0xff]
    %v4095 = vld [vmem:[%s5 + $0x5d8] sm:$0xff]
    %v4096 = vld [vmem:[%s5 + $0x5e0] sm:$0xff]
    %v4097 = vld [vmem:[%s5 + $0x5e8] sm:$0xff]
    %v4098 = vld [vmem:[%s5 + $0x5f0] sm:$0xff]
    %v4099 = vld [vmem:[%s5 + $0x5f8] sm:$0xff]
    %v4100 = vld [vmem:[%s5 + $0x600] sm:$0xff]
    %v4101 = vld [vmem:[%s5 + $0x608] sm:$0xff]
    %v4102 = vld [vmem:[%s5 + $0x610] sm:$0xff]
    %v4103 = vld [vmem:[%s5 + $0x618] sm:$0xff]
    %v4104 = vld [vmem:[%s5 + $0x620] sm:$0xff]
    %v4105 = vld [vmem:[%s5 + $0x628] sm:$0xff]
    %v4106 = vld [vmem:[%s5 + $0x630] sm:$0xff]
    %v4107 = vld [vmem:[%s5 + $0x638] sm:$0xff]
    %v4108 = vld [vmem:[%s5 + $0x640] sm:$0xff]
    %v4109 = vld [vmem:[%s5 + $0x648] sm:$0xff]
    %v4110 = vld [vmem:[%s5 + $0x650] sm:$0xff]
    %v4111 = vld [vmem:[%s5 + $0x658] sm:$0xff]
    %v4112 = vld [vmem:[%s5 + $0x660] sm:$0xff]
    %v4113 = vld [vmem:[%s5 + $0x668] sm:$0xff]
    %v4114 = vld [vmem:[%s5 + $0x670] sm:$0xff]
    %v4115 = vld [vmem:[%s5 + $0x678] sm:$0xff]
    %v4116 = vld [vmem:[%s5 + $0x680] sm:$0xff]
    %v4117 = vld [vmem:[%s5 + $0x688] sm:$0xff]
    %v4118 = vld [vmem:[%s5 + $0x690] sm:$0xff]
    %v4119 = vld [vmem:[%s5 + $0x698] sm:$0xff]
    %v4120 = vld [vmem:[%s5 + $0x6a0] sm:$0xff]
    %v4121 = vld [vmem:[%s5 + $0x6a8] sm:$0xff]
    %v4122 = vld [vmem:[%s5 + $0x6b0] sm:$0xff]
    %v4123 = vld [vmem:[%s5 + $0x6b8] sm:$0xff]
    %v4124 = vld [vmem:[%s5 + $0x6c0] sm:$0xff]
    %v4125 = vld [vmem:[%s5 + $0x6c8] sm:$0xff]
    %v4126 = vld [vmem:[%s5 + $0x6d0] sm:$0xff]
    %v4127 = vld [vmem:[%s5 + $0x6d8] sm:$0xff]
    %v4128 = vld [vmem:[%s5 + $0x6e0] sm:$0xff]
    %v4129 = vld [vmem:[%s5 + $0x6e8] sm:$0xff]
    %v4130 = vld [vmem:[%s5 + $0x6f0] sm:$0xff]
    %v4131 = vld [vmem:[%s5 + $0x6f8] sm:$0xff]
    %v4132 = vld [vmem:[%s5 + $0x700] sm:$0xff]
    %v4133 = vld [vmem:[%s5 + $0x708] sm:$0xff]
    %v4134 = vld [vmem:[%s5 + $0x710] sm:$0xff]
    %v4135 = vld [vmem:[%s5 + $0x718] sm:$0xff]
    %v4136 = vld [vmem:[%s5 + $0x720] sm:$0xff]
    %v4137 = vld [vmem:[%s5 + $0x728] sm:$0xff]
    %v4138 = vld [vmem:[%s5 + $0x730] sm:$0xff]
    %v4139 = vld [vmem:[%s5 + $0x738] sm:$0xff]
    %v4140 = vld [vmem:[%s5 + $0x740] sm:$0xff]
    %v4141 = vld [vmem:[%s5 + $0x748] sm:$0xff]
    %v4142 = vld [vmem:[%s5 + $0x750] sm:$0xff]
    %v4143 = vld [vmem:[%s5 + $0x758] sm:$0xff]
    %v4144 = vld [vmem:[%s5 + $0x760] sm:$0xff]
    %v4145 = vld [vmem:[%s5 + $0x768] sm:$0xff]
    %v4146 = vld [vmem:[%s5 + $0x770] sm:$0xff]
    %v4147 = vld [vmem:[%s5 + $0x778] sm:$0xff]
    %v4148 = vld [vmem:[%s5 + $0x780] sm:$0xff]
    %v4149 = vld [vmem:[%s5 + $0x788] sm:$0xff]
    %v4150 = vld [vmem:[%s5 + $0x790] sm:$0xff]
    %v4151 = vld [vmem:[%s5 + $0x798] sm:$0xff]
    %v4152 = vld [vmem:[%s5 + $0x7a0] sm:$0xff]
    %v4153 = vld [vmem:[%s5 + $0x7a8] sm:$0xff]
    %v4154 = vld [vmem:[%s5 + $0x7b0] sm:$0xff]
    %v4155 = vld [vmem:[%s5 + $0x7b8] sm:$0xff]
    %v4156 = vld [vmem:[%s5 + $0x7c0] sm:$0xff]
    %v4157 = vld [vmem:[%s5 + $0x7c8] sm:$0xff]
    %v4158 = vld [vmem:[%s5 + $0x7d0] sm:$0xff]
    %v4159 = vld [vmem:[%s5 + $0x7d8] sm:$0xff]
    %v4160 = vld [vmem:[%s5 + $0x7e0] sm:$0xff]
    %v4161 = vld [vmem:[%s5 + $0x7e8] sm:$0xff]
    %v4162 = vld [vmem:[%s5 + $0x7f0] sm:$0xff]
    %v4163 = vld [vmem:[%s5 + $0x7f8] sm:$0xff]
    %v4164 = vld [vmem:[%s5 + $0x800] sm:$0xff]
    %v4165 = vld [vmem:[%s5 + $0x808] sm:$0xff]
    %v4166 = vld [vmem:[%s5 + $0x810] sm:$0xff]
    %v4167 = vld [vmem:[%s5 + $0x818] sm:$0xff]
    %v4168 = vld [vmem:[%s5 + $0x820] sm:$0xff]
    %v4169 = vld [vmem:[%s5 + $0x828] sm:$0xff]
    %v4170 = vld [vmem:[%s5 + $0x830] sm:$0xff]
    %v4171 = vld [vmem:[%s5 + $0x838] sm:$0xff]
    %v4172 = vld [vmem:[%s5 + $0x840] sm:$0xff]
    %v4173 = vld [vmem:[%s5 + $0x848] sm:$0xff]
    %v4174 = vld [vmem:[%s5 + $0x850] sm:$0xff]
    %v4175 = vld [vmem:[%s5 + $0x858] sm:$0xff]
    %v4176 = vld [vmem:[%s5 + $0x860] sm:$0xff]
    %v4177 = vld [vmem:[%s5 + $0x868] sm:$0xff]
    %v4178 = vld [vmem:[%s5 + $0x870] sm:$0xff]
    %v4179 = vld [vmem:[%s5 + $0x878] sm:$0xff]
    %v4180 = vld [vmem:[%s5 + $0x880] sm:$0xff]
    %v4181 = vld [vmem:[%s5 + $0x888] sm:$0xff]
    %v4182 = vld [vmem:[%s5 + $0x890] sm:$0xff]
    %v4183 = vld [vmem:[%s5 + $0x898] sm:$0xff]
    %v4184 = vld [vmem:[%s5 + $0x8a0] sm:$0xff]
    %v4185 = vld [vmem:[%s5 + $0x8a8] sm:$0xff]
    %v4186 = vld [vmem:[%s5 + $0x8b0] sm:$0xff]
    %v4187 = vld [vmem:[%s5 + $0x8b8] sm:$0xff]
    %v4188 = vld [vmem:[%s5 + $0x8c0] sm:$0xff]
    %v4189 = vld [vmem:[%s5 + $0x8c8] sm:$0xff]
    %v4190 = vld [vmem:[%s5 + $0x8d0] sm:$0xff]
    %v4191 = vld [vmem:[%s5 + $0x8d8] sm:$0xff]
    %v4192 = vld [vmem:[%s5 + $0x8e0] sm:$0xff]
    %v4193 = vld [vmem:[%s5 + $0x8e8] sm:$0xff]
    %v4194 = vld [vmem:[%s5 + $0x8f0] sm:$0xff]
    %v4195 = vld [vmem:[%s5 + $0x8f8] sm:$0xff]
    %v4196 = vld [vmem:[%s6] sm:$0x1]
    %v4198 = vlaneseq
    %v4199 = vshrl.u32 %v4198, 7
    %v4200 = vsub.s32 0, %v4199
    %v4201 = vrot.slane %v4196, %v4200
    %v4208 = vcombine.high %v3903, %v3903
    %v4210 = vunpack.c.l.s4 1983009808
    %v4211 = vunpack.c.0.s8 %v4210
    %v4212 = vlaneseq
    %v4213 = vshrl.u32 %v4212, 7
    %v4214 = vsub.s32 %v4211, %v4213
    %v4215 = vrot.slane %v3903, %v4214
    %v4217 = vunpack.c.l.s4 1983009808
    %v4218 = vunpack.c.0.s8 %v4217
    %v4219 = vlaneseq
    %v4220 = vshrl.u32 %v4219, 7
    %v4221 = vsub.s32 %v4218, %v4220
    %v4222 = vrot.slane %v4208, %v4221
    %v4223 = vcombine.high %v4215, %v4215
    %v4224 = vcombine.high %v4222, %v4222
    %v4225 = vcombine.high %v3904, %v3904
    %v4227 = vunpack.c.l.s4 1983009808
    %v4228 = vunpack.c.0.s8 %v4227
    %v4229 = vlaneseq
    %v4230 = vshrl.u32 %v4229, 7
    %v4231 = vsub.s32 %v4228, %v4230
    %v4232 = vrot.slane %v3904, %v4231
    %v4234 = vunpack.c.l.s4 1983009808
    %v4235 = vunpack.c.0.s8 %v4234
    %v4236 = vlaneseq
    %v4237 = vshrl.u32 %v4236, 7
    %v4238 = vsub.s32 %v4235, %v4237
    %v4239 = vrot.slane %v4225, %v4238
    %v4240 = vcombine.high %v4232, %v4232
    %v4241 = vcombine.high %v4239, %v4239
    %v4242 = vcombine.high %v3905, %v3905
    %v4244 = vunpack.c.l.s4 1983009808
    %v4245 = vunpack.c.0.s8 %v4244
    %v4246 = vlaneseq
    %v4247 = vshrl.u32 %v4246, 7
    %v4248 = vsub.s32 %v4245, %v4247
    %v4249 = vrot.slane %v3905, %v4248
    %v4251 = vunpack.c.l.s4 1983009808
    %v4252 = vunpack.c.0.s8 %v4251
    %v4253 = vlaneseq
    %v4254 = vshrl.u32 %v4253, 7
    %v4255 = vsub.s32 %v4252, %v4254
    %v4256 = vrot.slane %v4242, %v4255
    %v4257 = vcombine.high %v4249, %v4249
    %v4258 = vcombine.high %v4256, %v4256
    %v4259 = vcombine.high %v3906, %v3906
    %v4261 = vunpack.c.l.s4 1983009808
    %v4262 = vunpack.c.0.s8 %v4261
    %v4263 = vlaneseq
    %v4264 = vshrl.u32 %v4263, 7
    %v4265 = vsub.s32 %v4262, %v4264
    %v4266 = vrot.slane %v3906, %v4265
    %v4268 = vunpack.c.l.s4 1983009808
    %v4269 = vunpack.c.0.s8 %v4268
    %v4270 = vlaneseq
    %v4271 = vshrl.u32 %v4270, 7
    %v4272 = vsub.s32 %v4269, %v4271
    %v4273 = vrot.slane %v4259, %v4272
    %v4274 = vcombine.high %v4266, %v4266
    %v4275 = vcombine.high %v4273, %v4273
    %v4277 = vunpack.c.l.s4 1983009808
    %v4278 = vunpack.c.0.s8 %v4277
    %v4279 = vlaneseq
    %v4280 = vshrl.u32 %v4279, 7
    %v4281 = vsub.s32 %v4278, %v4280
    %v4282 = vrot.slane %v3907, %v4281
    %v4283 = vcombine.high %v4282, %v4282
    %4302 = vmatprep.subr.mxu0 0.0
    %4303 = vmatpush1.msra.mxu0 %v3908
    %4304 = vmatprep.subr.mxu0 0.0
    %4305 = vmatpush1.msra.mxu0 %v3909
    %4306 = vmatprep.subr.mxu0 0.0
    %4307 = vmatpush1.msra.mxu0 %v3910
    %4308 = vmatprep.subr.mxu0 0.0
    %4309 = vmatpush1.msra.mxu0 %v3911
    %4310 = vmatprep.subr.mxu0 0.0
    %4311 = vmatpush1.msra.mxu0 %v3912
    %4312 = vmatprep.subr.mxu0 0.0
    %4313 = vmatpush1.msra.mxu0 %v3913
    %4314 = vmatprep.subr.mxu0 0.0
    %4315 = vmatpush1.msra.mxu0 %v3914
    %4316 = vmatprep.subr.mxu0 0.0
    %4317 = vmatpush1.msra.mxu0 %v3915
    %4318 = vmatprep.subr.mxu0 0.0
    %4319 = vmatpush1.msra.mxu0 %v3916
    %4320 = vmatprep.subr.mxu0 0.0
    %4321 = vmatpush1.msra.mxu0 %v3917
    %4322 = vmatprep.subr.mxu0 0.0
    %4323 = vmatpush1.msra.mxu0 %v3918
    %4324 = vmatprep.subr.mxu0 0.0
    %4325 = vmatpush1.msra.mxu0 %v3919
    %4326 = vmatprep.subr.mxu0 0.0
    %4327 = vmatpush1.msra.mxu0 %v3920
    %4328 = vmatprep.subr.mxu0 0.0
    %4329 = vmatpush1.msra.mxu0 %v3921
    %4330 = vmatprep.subr.mxu0 0.0
    %4331 = vmatpush1.msra.mxu0 %v3922
    %4332 = vmatprep.subr.mxu0 0.0
    %4333 = vmatpush1.msra.mxu0 %v3923
    %4334 = vmatprep.subr.mxu0 0.0
    %4335 = vmatpush1.msra.mxu0 %v3924
    %4336 = vmatprep.subr.mxu0 0.0
    %4337 = vmatpush1.msra.mxu0 %v3925
    %4338 = vmatprep.subr.mxu0 0.0
    %4339 = vmatpush1.msra.mxu0 %v3926
    %4340 = vmatprep.subr.mxu0 0.0
    %4341 = vmatpush1.msra.mxu0 %v3927
    %4342 = vmatprep.subr.mxu0 0.0
    %4343 = vmatpush1.msra.mxu0 %v3928
    %4344 = vmatprep.subr.mxu0 0.0
    %4345 = vmatpush1.msra.mxu0 %v3929
    %4346 = vmatprep.subr.mxu0 0.0
    %4347 = vmatpush1.msra.mxu0 %v3930
    %4348 = vmatprep.subr.mxu0 0.0
    %4349 = vmatpush1.msra.mxu0 %v3931
    %4350 = vmatprep.subr.mxu0 0.0
    %4351 = vmatpush1.msra.mxu0 %v3932
    %4352 = vmatprep.subr.mxu0 0.0
    %4353 = vmatpush1.msra.mxu0 %v3933
    %4354 = vmatprep.subr.mxu0 0.0
    %4355 = vmatpush1.msra.mxu0 %v3934
    %4356 = vmatprep.subr.mxu0 0.0
    %4357 = vmatpush1.msra.mxu0 %v3935
    %4358 = vmatprep.subr.mxu0 0.0
    %4359 = vmatpush1.msra.mxu0 %v3936
    %4360 = vmatprep.subr.mxu0 0.0
    %4361 = vmatpush1.msra.mxu0 %v3937
    %4362 = vmatprep.subr.mxu0 0.0
    %4363 = vmatpush1.msra.mxu0 %v3938
    %4364 = vmatprep.subr.mxu0 0.0
    %4365 = vmatpush1.msra.mxu0 %v3939
    %4366 = vmatprep.mubr.f32.mxu0 %v4223
    %4367 = vmatmul.mubr.f32.gmra.mrb[0].mxu0 %v4215
    %v4368 = vpop.f32.mrb[0].mxu0
    %v4369 = vadd.f32 %v4201, %v4368
    %v4370 = vpop.f32.mrb[0].mxu0
    %4371 = vdwg.mxu0
    %4372 = vmatprep.subr.mxu0 0.0
    %4373 = vmatpush1.msra.mxu0 %v3940
    %4374 = vmatprep.subr.mxu0 0.0
    %4375 = vmatpush1.msra.mxu0 %v3941
    %4376 = vmatprep.subr.mxu0 0.0
    %4377 = vmatpush1.msra.mxu0 %v3942
    %4378 = vmatprep.subr.mxu0 0.0
    %4379 = vmatpush1.msra.mxu0 %v3943
    %4380 = vmatprep.subr.mxu0 0.0
    %4381 = vmatpush1.msra.mxu0 %v3944
    %4382 = vmatprep.subr.mxu0 0.0
    %4383 = vmatpush1.msra.mxu0 %v3945
    %4384 = vmatprep.subr.mxu0 0.0
    %4385 = vmatpush1.msra.mxu0 %v3946
    %4386 = vmatprep.subr.mxu0 0.0
    %4387 = vmatpush1.msra.mxu0 %v3947
    %4388 = vmatprep.subr.mxu0 0.0
    %4389 = vmatpush1.msra.mxu0 %v3948
    %4390 = vmatprep.subr.mxu0 0.0
    %4391 = vmatpush1.msra.mxu0 %v3949
    %4392 = vmatprep.subr.mxu0 0.0
    %4393 = vmatpush1.msra.mxu0 %v3950
    %4394 = vmatprep.subr.mxu0 0.0
    %4395 = vmatpush1.msra.mxu0 %v3951
    %4396 = vmatprep.subr.mxu0 0.0
    %4397 = vmatpush1.msra.mxu0 %v3952
    %4398 = vmatprep.subr.mxu0 0.0
    %4399 = vmatpush1.msra.mxu0 %v3953
    %4400 = vmatprep.subr.mxu0 0.0
    %4401 = vmatpush1.msra.mxu0 %v3954
    %4402 = vmatprep.subr.mxu0 0.0
    %4403 = vmatpush1.msra.mxu0 %v3955
    %4404 = vmatprep.subr.mxu0 0.0
    %4405 = vmatpush1.msra.mxu0 %v3956
    %4406 = vmatprep.subr.mxu0 0.0
    %4407 = vmatpush1.msra.mxu0 %v3957
    %4408 = vmatprep.subr.mxu0 0.0
    %4409 = vmatpush1.msra.mxu0 %v3958
    %4410 = vmatprep.subr.mxu0 0.0
    %4411 = vmatpush1.msra.mxu0 %v3959
    %4412 = vmatprep.subr.mxu0 0.0
    %4413 = vmatpush1.msra.mxu0 %v3960
    %4414 = vmatprep.subr.mxu0 0.0
    %4415 = vmatpush1.msra.mxu0 %v3961
    %4416 = vmatprep.subr.mxu0 0.0
    %4417 = vmatpush1.msra.mxu0 %v3962
    %4418 = vmatprep.subr.mxu0 0.0
    %4419 = vmatpush1.msra.mxu0 %v3963
    %4420 = vmatprep.subr.mxu0 0.0
    %4421 = vmatpush1.msra.mxu0 %v3964
    %4422 = vmatprep.subr.mxu0 0.0
    %4423 = vmatpush1.msra.mxu0 %v3965
    %4424 = vmatprep.subr.mxu0 0.0
    %4425 = vmatpush1.msra.mxu0 %v3966
    %4426 = vmatprep.subr.mxu0 0.0
    %4427 = vmatpush1.msra.mxu0 %v3967
    %4428 = vmatprep.subr.mxu0 0.0
    %4429 = vmatpush1.msra.mxu0 %v3968
    %4430 = vmatprep.subr.mxu0 0.0
    %4431 = vmatpush1.msra.mxu0 %v3969
    %4432 = vmatprep.subr.mxu0 0.0
    %4433 = vmatpush1.msra.mxu0 %v3970
    %4434 = vmatprep.subr.mxu0 0.0
    %4435 = vmatpush1.msra.mxu0 %v3971
    %4436 = vmatprep.mubr.f32.mxu0 %v4224
    %4437 = vmatmul.mubr.f32.gmra.mrb[0].mxu0 %v4222
    %v4438 = vpop.f32.mrb[0].mxu0
    %v4439 = vadd.f32 %v4369, %v4438
    %v4440 = vpop.f32.mrb[0].mxu0
    %4441 = vdwg.mxu0
    %4442 = vmatprep.subr.mxu0 0.0
    %4443 = vmatpush1.msra.mxu0 %v3972
    %4444 = vmatprep.subr.mxu0 0.0
    %4445 = vmatpush1.msra.mxu0 %v3973
    %4446 = vmatprep.subr.mxu0 0.0
    %4447 = vmatpush1.msra.mxu0 %v3974
    %4448 = vmatprep.subr.mxu0 0.0
    %4449 = vmatpush1.msra.mxu0 %v3975
    %4450 = vmatprep.subr.mxu0 0.0
    %4451 = vmatpush1.msra.mxu0 %v3976
    %4452 = vmatprep.subr.mxu0 0.0
    %4453 = vmatpush1.msra.mxu0 %v3977
    %4454 = vmatprep.subr.mxu0 0.0
    %4455 = vmatpush1.msra.mxu0 %v3978
    %4456 = vmatprep.subr.mxu0 0.0
    %4457 = vmatpush1.msra.mxu0 %v3979
    %4458 = vmatprep.subr.mxu0 0.0
    %4459 = vmatpush1.msra.mxu0 %v3980
    %4460 = vmatprep.subr.mxu0 0.0
    %4461 = vmatpush1.msra.mxu0 %v3981
    %4462 = vmatprep.subr.mxu0 0.0
    %4463 = vmatpush1.msra.mxu0 %v3982
    %4464 = vmatprep.subr.mxu0 0.0
    %4465 = vmatpush1.msra.mxu0 %v3983
    %4466 = vmatprep.subr.mxu0 0.0
    %4467 = vmatpush1.msra.mxu0 %v3984
    %4468 = vmatprep.subr.mxu0 0.0
    %4469 = vmatpush1.msra.mxu0 %v3985
    %4470 = vmatprep.subr.mxu0 0.0
    %4471 = vmatpush1.msra.mxu0 %v3986
    %4472 = vmatprep.subr.mxu0 0.0
    %4473 = vmatpush1.msra.mxu0 %v3987
    %4474 = vmatprep.subr.mxu0 0.0
    %4475 = vmatpush1.msra.mxu0 %v3988
    %4476 = vmatprep.subr.mxu0 0.0
    %4477 = vmatpush1.msra.mxu0 %v3989
    %4478 = vmatprep.subr.mxu0 0.0
    %4479 = vmatpush1.msra.mxu0 %v3990
    %4480 = vmatprep.subr.mxu0 0.0
    %4481 = vmatpush1.msra.mxu0 %v3991
    %4482 = vmatprep.subr.mxu0 0.0
    %4483 = vmatpush1.msra.mxu0 %v3992
    %4484 = vmatprep.subr.mxu0 0.0
    %4485 = vmatpush1.msra.mxu0 %v3993
    %4486 = vmatprep.subr.mxu0 0.0
    %4487 = vmatpush1.msra.mxu0 %v3994
    %4488 = vmatprep.subr.mxu0 0.0
    %4489 = vmatpush1.msra.mxu0 %v3995
    %4490 = vmatprep.subr.mxu0 0.0
    %4491 = vmatpush1.msra.mxu0 %v3996
    %4492 = vmatprep.subr.mxu0 0.0
    %4493 = vmatpush1.msra.mxu0 %v3997
    %4494 = vmatprep.subr.mxu0 0.0
    %4495 = vmatpush1.msra.mxu0 %v3998
    %4496 = vmatprep.subr.mxu0 0.0
    %4497 = vmatpush1.msra.mxu0 %v3999
    %4498 = vmatprep.subr.mxu0 0.0
    %4499 = vmatpush1.msra.mxu0 %v4000
    %4500 = vmatprep.subr.mxu0 0.0
    %4501 = vmatpush1.msra.mxu0 %v4001
    %4502 = vmatprep.subr.mxu0 0.0
    %4503 = vmatpush1.msra.mxu0 %v4002
    %4504 = vmatprep.subr.mxu0 0.0
    %4505 = vmatpush1.msra.mxu0 %v4003
    %4506 = vmatprep.mubr.f32.mxu0 %v4240
    %4507 = vmatmul.mubr.f32.gmra.mrb[0].mxu0 %v4232
    %v4508 = vpop.f32.mrb[0].mxu0
    %v4509 = vadd.f32 %v4439, %v4508
    %v4510 = vpop.f32.mrb[0].mxu0
    %4511 = vdwg.mxu0
    %4512 = vmatprep.subr.mxu0 0.0
    %4513 = vmatpush1.msra.mxu0 %v4004
    %4514 = vmatprep.subr.mxu0 0.0
    %4515 = vmatpush1.msra.mxu0 %v4005
    %4516 = vmatprep.subr.mxu0 0.0
    %4517 = vmatpush1.msra.mxu0 %v4006
    %4518 = vmatprep.subr.mxu0 0.0
    %4519 = vmatpush1.msra.mxu0 %v4007
    %4520 = vmatprep.subr.mxu0 0.0
    %4521 = vmatpush1.msra.mxu0 %v4008
    %4522 = vmatprep.subr.mxu0 0.0
    %4523 = vmatpush1.msra.mxu0 %v4009
    %4524 = vmatprep.subr.mxu0 0.0
    %4525 = vmatpush1.msra.mxu0 %v4010
    %4526 = vmatprep.subr.mxu0 0.0
    %4527 = vmatpush1.msra.mxu0 %v4011
    %4528 = vmatprep.subr.mxu0 0.0
    %4529 = vmatpush1.msra.mxu0 %v4012
    %4530 = vmatprep.subr.mxu0 0.0
    %4531 = vmatpush1.msra.mxu0 %v4013
    %4532 = vmatprep.subr.mxu0 0.0
    %4533 = vmatpush1.msra.mxu0 %v4014
    %4534 = vmatprep.subr.mxu0 0.0
    %4535 = vmatpush1.msra.mxu0 %v4015
    %4536 = vmatprep.subr.mxu0 0.0
    %4537 = vmatpush1.msra.mxu0 %v4016
    %4538 = vmatprep.subr.mxu0 0.0
    %4539 = vmatpush1.msra.mxu0 %v4017
    %4540 = vmatprep.subr.mxu0 0.0
    %4541 = vmatpush1.msra.mxu0 %v4018
    %4542 = vmatprep.subr.mxu0 0.0
    %4543 = vmatpush1.msra.mxu0 %v4019
    %4544 = vmatprep.subr.mxu0 0.0
    %4545 = vmatpush1.msra.mxu0 %v4020
    %4546 = vmatprep.subr.mxu0 0.0
    %4547 = vmatpush1.msra.mxu0 %v4021
    %4548 = vmatprep.subr.mxu0 0.0
    %4549 = vmatpush1.msra.mxu0 %v4022
    %4550 = vmatprep.subr.mxu0 0.0
    %4551 = vmatpush1.msra.mxu0 %v4023
    %4552 = vmatprep.subr.mxu0 0.0
    %4553 = vmatpush1.msra.mxu0 %v4024
    %4554 = vmatprep.subr.mxu0 0.0
    %4555 = vmatpush1.msra.mxu0 %v4025
    %4556 = vmatprep.subr.mxu0 0.0
    %4557 = vmatpush1.msra.mxu0 %v4026
    %4558 = vmatprep.subr.mxu0 0.0
    %4559 = vmatpush1.msra.mxu0 %v4027
    %4560 = vmatprep.subr.mxu0 0.0
    %4561 = vmatpush1.msra.mxu0 %v4028
    %4562 = vmatprep.subr.mxu0 0.0
    %4563 = vmatpush1.msra.mxu0 %v4029
    %4564 = vmatprep.subr.mxu0 0.0
    %4565 = vmatpush1.msra.mxu0 %v4030
    %4566 = vmatprep.subr.mxu0 0.0
    %4567 = vmatpush1.msra.mxu0 %v4031
    %4568 = vmatprep.subr.mxu0 0.0
    %4569 = vmatpush1.msra.mxu0 %v4032
    %4570 = vmatprep.subr.mxu0 0.0
    %4571 = vmatpush1.msra.mxu0 %v4033
    %4572 = vmatprep.subr.mxu0 0.0
    %4573 = vmatpush1.msra.mxu0 %v4034
    %4574 = vmatprep.subr.mxu0 0.0
    %4575 = vmatpush1.msra.mxu0 %v4035
    %4576 = vmatprep.mubr.f32.mxu0 %v4241
    %4577 = vmatmul.mubr.f32.gmra.mrb[0].mxu0 %v4239
    %v4578 = vpop.f32.mrb[0].mxu0
    %v4579 = vadd.f32 %v4509, %v4578
    %v4580 = vpop.f32.mrb[0].mxu0
    %4581 = vdwg.mxu0
    %4582 = vmatprep.subr.mxu0 0.0
    %4583 = vmatpush1.msra.mxu0 %v4036
    %4584 = vmatprep.subr.mxu0 0.0
    %4585 = vmatpush1.msra.mxu0 %v4037
    %4586 = vmatprep.subr.mxu0 0.0
    %4587 = vmatpush1.msra.mxu0 %v4038
    %4588 = vmatprep.subr.mxu0 0.0
    %4589 = vmatpush1.msra.mxu0 %v4039
    %4590 = vmatprep.subr.mxu0 0.0
    %4591 = vmatpush1.msra.mxu0 %v4040
    %4592 = vmatprep.subr.mxu0 0.0
    %4593 = vmatpush1.msra.mxu0 %v4041
    %4594 = vmatprep.subr.mxu0 0.0
    %4595 = vmatpush1.msra.mxu0 %v4042
    %4596 = vmatprep.subr.mxu0 0.0
    %4597 = vmatpush1.msra.mxu0 %v4043
    %4598 = vmatprep.subr.mxu0 0.0
    %4599 = vmatpush1.msra.mxu0 %v4044
    %4600 = vmatprep.subr.mxu0 0.0
    %4601 = vmatpush1.msra.mxu0 %v4045
    %4602 = vmatprep.subr.mxu0 0.0
    %4603 = vmatpush1.msra.mxu0 %v4046
    %4604 = vmatprep.subr.mxu0 0.0
    %4605 = vmatpush1.msra.mxu0 %v4047
    %4606 = vmatprep.subr.mxu0 0.0
    %4607 = vmatpush1.msra.mxu0 %v4048
    %4608 = vmatprep.subr.mxu0 0.0
    %4609 = vmatpush1.msra.mxu0 %v4049
    %4610 = vmatprep.subr.mxu0 0.0
    %4611 = vmatpush1.msra.mxu0 %v4050
    %4612 = vmatprep.subr.mxu0 0.0
    %4613 = vmatpush1.msra.mxu0 %v4051
    %4614 = vmatprep.subr.mxu0 0.0
    %4615 = vmatpush1.msra.mxu0 %v4052
    %4616 = vmatprep.subr.mxu0 0.0
    %4617 = vmatpush1.msra.mxu0 %v4053
    %4618 = vmatprep.subr.mxu0 0.0
    %4619 = vmatpush1.msra.mxu0 %v4054
    %4620 = vmatprep.subr.mxu0 0.0
    %4621 = vmatpush1.msra.mxu0 %v4055
    %4622 = vmatprep.subr.mxu0 0.0
    %4623 = vmatpush1.msra.mxu0 %v4056
    %4624 = vmatprep.subr.mxu0 0.0
    %4625 = vmatpush1.msra.mxu0 %v4057
    %4626 = vmatprep.subr.mxu0 0.0
    %4627 = vmatpush1.msra.mxu0 %v4058
    %4628 = vmatprep.subr.mxu0 0.0
    %4629 = vmatpush1.msra.mxu0 %v4059
    %4630 = vmatprep.subr.mxu0 0.0
    %4631 = vmatpush1.msra.mxu0 %v4060
    %4632 = vmatprep.subr.mxu0 0.0
    %4633 = vmatpush1.msra.mxu0 %v4061
    %4634 = vmatprep.subr.mxu0 0.0
    %4635 = vmatpush1.msra.mxu0 %v4062
    %4636 = vmatprep.subr.mxu0 0.0
    %4637 = vmatpush1.msra.mxu0 %v4063
    %4638 = vmatprep.subr.mxu0 0.0
    %4639 = vmatpush1.msra.mxu0 %v4064
    %4640 = vmatprep.subr.mxu0 0.0
    %4641 = vmatpush1.msra.mxu0 %v4065
    %4642 = vmatprep.subr.mxu0 0.0
    %4643 = vmatpush1.msra.mxu0 %v4066
    %4644 = vmatprep.subr.mxu0 0.0
    %4645 = vmatpush1.msra.mxu0 %v4067
    %4646 = vmatprep.mubr.f32.mxu0 %v4257
    %4647 = vmatmul.mubr.f32.gmra.mrb[0].mxu0 %v4249
    %v4648 = vpop.f32.mrb[0].mxu0
    %v4649 = vadd.f32 %v4579, %v4648
    %v4650 = vpop.f32.mrb[0].mxu0
    %4651 = vdwg.mxu0
    %4652 = vmatprep.subr.mxu0 0.0
    %4653 = vmatpush1.msra.mxu0 %v4068
    %4654 = vmatprep.subr.mxu0 0.0
    %4655 = vmatpush1.msra.mxu0 %v4069
    %4656 = vmatprep.subr.mxu0 0.0
    %4657 = vmatpush1.msra.mxu0 %v4070
    %4658 = vmatprep.subr.mxu0 0.0
    %4659 = vmatpush1.msra.mxu0 %v4071
    %4660 = vmatprep.subr.mxu0 0.0
    %4661 = vmatpush1.msra.mxu0 %v4072
    %4662 = vmatprep.subr.mxu0 0.0
    %4663 = vmatpush1.msra.mxu0 %v4073
    %4664 = vmatprep.subr.mxu0 0.0
    %4665 = vmatpush1.msra.mxu0 %v4074
    %4666 = vmatprep.subr.mxu0 0.0
    %4667 = vmatpush1.msra.mxu0 %v4075
    %4668 = vmatprep.subr.mxu0 0.0
    %4669 = vmatpush1.msra.mxu0 %v4076
    %4670 = vmatprep.subr.mxu0 0.0
    %4671 = vmatpush1.msra.mxu0 %v4077
    %4672 = vmatprep.subr.mxu0 0.0
    %4673 = vmatpush1.msra.mxu0 %v4078
    %4674 = vmatprep.subr.mxu0 0.0
    %4675 = vmatpush1.msra.mxu0 %v4079
    %4676 = vmatprep.subr.mxu0 0.0
    %4677 = vmatpush1.msra.mxu0 %v4080
    %4678 = vmatprep.subr.mxu0 0.0
    %4679 = vmatpush1.msra.mxu0 %v4081
    %4680 = vmatprep.subr.mxu0 0.0
    %4681 = vmatpush1.msra.mxu0 %v4082
    %4682 = vmatprep.subr.mxu0 0.0
    %4683 = vmatpush1.msra.mxu0 %v4083
    %4684 = vmatprep.subr.mxu0 0.0
    %4685 = vmatpush1.msra.mxu0 %v4084
    %4686 = vmatprep.subr.mxu0 0.0
    %4687 = vmatpush1.msra.mxu0 %v4085
    %4688 = vmatprep.subr.mxu0 0.0
    %4689 = vmatpush1.msra.mxu0 %v4086
    %4690 = vmatprep.subr.mxu0 0.0
    %4691 = vmatpush1.msra.mxu0 %v4087
    %4692 = vmatprep.subr.mxu0 0.0
    %4693 = vmatpush1.msra.mxu0 %v4088
    %4694 = vmatprep.subr.mxu0 0.0
    %4695 = vmatpush1.msra.mxu0 %v4089
    %4696 = vmatprep.subr.mxu0 0.0
    %4697 = vmatpush1.msra.mxu0 %v4090
    %4698 = vmatprep.subr.mxu0 0.0
    %4699 = vmatpush1.msra.mxu0 %v4091
    %4700 = vmatprep.subr.mxu0 0.0
    %4701 = vmatpush1.msra.mxu0 %v4092
    %4702 = vmatprep.subr.mxu0 0.0
    %4703 = vmatpush1.msra.mxu0 %v4093
    %4704 = vmatprep.subr.mxu0 0.0
    %4705 = vmatpush1.msra.mxu0 %v4094
    %4706 = vmatprep.subr.mxu0 0.0
    %4707 = vmatpush1.msra.mxu0 %v4095
    %4708 = vmatprep.subr.mxu0 0.0
    %4709 = vmatpush1.msra.mxu0 %v4096
    %4710 = vmatprep.subr.mxu0 0.0
    %4711 = vmatpush1.msra.mxu0 %v4097
    %4712 = vmatprep.subr.mxu0 0.0
    %4713 = vmatpush1.msra.mxu0 %v4098
    %4714 = vmatprep.subr.mxu0 0.0
    %4715 = vmatpush1.msra.mxu0 %v4099
    %4716 = vmatprep.mubr.f32.mxu0 %v4258
    %4717 = vmatmul.mubr.f32.gmra.mrb[0].mxu0 %v4256
    %v4718 = vpop.f32.mrb[0].mxu0
    %v4719 = vadd.f32 %v4649, %v4718
    %v4720 = vpop.f32.mrb[0].mxu0
    %4721 = vdwg.mxu0
    %4722 = vmatprep.subr.mxu0 0.0
    %4723 = vmatpush1.msra.mxu0 %v4100
    %4724 = vmatprep.subr.mxu0 0.0
    %4725 = vmatpush1.msra.mxu0 %v4101
    %4726 = vmatprep.subr.mxu0 0.0
    %4727 = vmatpush1.msra.mxu0 %v4102
    %4728 = vmatprep.subr.mxu0 0.0
    %4729 = vmatpush1.msra.mxu0 %v4103
    %4730 = vmatprep.subr.mxu0 0.0
    %4731 = vmatpush1.msra.mxu0 %v4104
    %4732 = vmatprep.subr.mxu0 0.0
    %4733 = vmatpush1.msra.mxu0 %v4105
    %4734 = vmatprep.subr.mxu0 0.0
    %4735 = vmatpush1.msra.mxu0 %v4106
    %4736 = vmatprep.subr.mxu0 0.0
    %4737 = vmatpush1.msra.mxu0 %v4107
    %4738 = vmatprep.subr.mxu0 0.0
    %4739 = vmatpush1.msra.mxu0 %v4108
    %4740 = vmatprep.subr.mxu0 0.0
    %4741 = vmatpush1.msra.mxu0 %v4109
    %4742 = vmatprep.subr.mxu0 0.0
    %4743 = vmatpush1.msra.mxu0 %v4110
    %4744 = vmatprep.subr.mxu0 0.0
    %4745 = vmatpush1.msra.mxu0 %v4111
    %4746 = vmatprep.subr.mxu0 0.0
    %4747 = vmatpush1.msra.mxu0 %v4112
    %4748 = vmatprep.subr.mxu0 0.0
    %4749 = vmatpush1.msra.mxu0 %v4113
    %4750 = vmatprep.subr.mxu0 0.0
    %4751 = vmatpush1.msra.mxu0 %v4114
    %4752 = vmatprep.subr.mxu0 0.0
    %4753 = vmatpush1.msra.mxu0 %v4115
    %4754 = vmatprep.subr.mxu0 0.0
    %4755 = vmatpush1.msra.mxu0 %v4116
    %4756 = vmatprep.subr.mxu0 0.0
    %4757 = vmatpush1.msra.mxu0 %v4117
    %4758 = vmatprep.subr.mxu0 0.0
    %4759 = vmatpush1.msra.mxu0 %v4118
    %4760 = vmatprep.subr.mxu0 0.0
    %4761 = vmatpush1.msra.mxu0 %v4119
    %4762 = vmatprep.subr.mxu0 0.0
    %4763 = vmatpush1.msra.mxu0 %v4120
    %4764 = vmatprep.subr.mxu0 0.0
    %4765 = vmatpush1.msra.mxu0 %v4121
    %4766 = vmatprep.subr.mxu0 0.0
    %4767 = vmatpush1.msra.mxu0 %v4122
    %4768 = vmatprep.subr.mxu0 0.0
    %4769 = vmatpush1.msra.mxu0 %v4123
    %4770 = vmatprep.subr.mxu0 0.0
    %4771 = vmatpush1.msra.mxu0 %v4124
    %4772 = vmatprep.subr.mxu0 0.0
    %4773 = vmatpush1.msra.mxu0 %v4125
    %4774 = vmatprep.subr.mxu0 0.0
    %4775 = vmatpush1.msra.mxu0 %v4126
    %4776 = vmatprep.subr.mxu0 0.0
    %4777 = vmatpush1.msra.mxu0 %v4127
    %4778 = vmatprep.subr.mxu0 0.0
    %4779 = vmatpush1.msra.mxu0 %v4128
    %4780 = vmatprep.subr.mxu0 0.0
    %4781 = vmatpush1.msra.mxu0 %v4129
    %4782 = vmatprep.subr.mxu0 0.0
    %4783 = vmatpush1.msra.mxu0 %v4130
    %4784 = vmatprep.subr.mxu0 0.0
    %4785 = vmatpush1.msra.mxu0 %v4131
    %4786 = vmatprep.mubr.f32.mxu0 %v4274
    %4787 = vmatmul.mubr.f32.gmra.mrb[0].mxu0 %v4266
    %v4788 = vpop.f32.mrb[0].mxu0
    %v4789 = vadd.f32 %v4719, %v4788
    %v4790 = vpop.f32.mrb[0].mxu0
    %4791 = vdwg.mxu0
    %4792 = vmatprep.subr.mxu0 0.0
    %4793 = vmatpush1.msra.mxu0 %v4132
    %4794 = vmatprep.subr.mxu0 0.0
    %4795 = vmatpush1.msra.mxu0 %v4133
    %4796 = vmatprep.subr.mxu0 0.0
    %4797 = vmatpush1.msra.mxu0 %v4134
    %4798 = vmatprep.subr.mxu0 0.0
    %4799 = vmatpush1.msra.mxu0 %v4135
    %4800 = vmatprep.subr.mxu0 0.0
    %4801 = vmatpush1.msra.mxu0 %v4136
    %4802 = vmatprep.subr.mxu0 0.0
    %4803 = vmatpush1.msra.mxu0 %v4137
    %4804 = vmatprep.subr.mxu0 0.0
    %4805 = vmatpush1.msra.mxu0 %v4138
    %4806 = vmatprep.subr.mxu0 0.0
    %4807 = vmatpush1.msra.mxu0 %v4139
    %4808 = vmatprep.subr.mxu0 0.0
    %4809 = vmatpush1.msra.mxu0 %v4140
    %4810 = vmatprep.subr.mxu0 0.0
    %4811 = vmatpush1.msra.mxu0 %v4141
    %4812 = vmatprep.subr.mxu0 0.0
    %4813 = vmatpush1.msra.mxu0 %v4142
    %4814 = vmatprep.subr.mxu0 0.0
    %4815 = vmatpush1.msra.mxu0 %v4143
    %4816 = vmatprep.subr.mxu0 0.0
    %4817 = vmatpush1.msra.mxu0 %v4144
    %4818 = vmatprep.subr.mxu0 0.0
    %4819 = vmatpush1.msra.mxu0 %v4145
    %4820 = vmatprep.subr.mxu0 0.0
    %4821 = vmatpush1.msra.mxu0 %v4146
    %4822 = vmatprep.subr.mxu0 0.0
    %4823 = vmatpush1.msra.mxu0 %v4147
    %4824 = vmatprep.subr.mxu0 0.0
    %4825 = vmatpush1.msra.mxu0 %v4148
    %4826 = vmatprep.subr.mxu0 0.0
    %4827 = vmatpush1.msra.mxu0 %v4149
    %4828 = vmatprep.subr.mxu0 0.0
    %4829 = vmatpush1.msra.mxu0 %v4150
    %4830 = vmatprep.subr.mxu0 0.0
    %4831 = vmatpush1.msra.mxu0 %v4151
    %4832 = vmatprep.subr.mxu0 0.0
    %4833 = vmatpush1.msra.mxu0 %v4152
    %4834 = vmatprep.subr.mxu0 0.0
    %4835 = vmatpush1.msra.mxu0 %v4153
    %4836 = vmatprep.subr.mxu0 0.0
    %4837 = vmatpush1.msra.mxu0 %v4154
    %4838 = vmatprep.subr.mxu0 0.0
    %4839 = vmatpush1.msra.mxu0 %v4155
    %4840 = vmatprep.subr.mxu0 0.0
    %4841 = vmatpush1.msra.mxu0 %v4156
    %4842 = vmatprep.subr.mxu0 0.0
    %4843 = vmatpush1.msra.mxu0 %v4157
    %4844 = vmatprep.subr.mxu0 0.0
    %4845 = vmatpush1.msra.mxu0 %v4158
    %4846 = vmatprep.subr.mxu0 0.0
    %4847 = vmatpush1.msra.mxu0 %v4159
    %4848 = vmatprep.subr.mxu0 0.0
    %4849 = vmatpush1.msra.mxu0 %v4160
    %4850 = vmatprep.subr.mxu0 0.0
    %4851 = vmatpush1.msra.mxu0 %v4161
    %4852 = vmatprep.subr.mxu0 0.0
    %4853 = vmatpush1.msra.mxu0 %v4162
    %4854 = vmatprep.subr.mxu0 0.0
    %4855 = vmatpush1.msra.mxu0 %v4163
    %4856 = vmatprep.mubr.f32.mxu0 %v4275
    %4857 = vmatmul.mubr.f32.gmra.mrb[0].mxu0 %v4273
    %v4858 = vpop.f32.mrb[0].mxu0
    %v4859 = vadd.f32 %v4789, %v4858
    %v4860 = vpop.f32.mrb[0].mxu0
    %4861 = vdwg.mxu0
    %4862 = vmatprep.subr.mxu0 0.0
    %4863 = vmatpush1.msra.mxu0 %v4164
    %4864 = vmatprep.subr.mxu0 0.0
    %4865 = vmatpush1.msra.mxu0 %v4165
    %4866 = vmatprep.subr.mxu0 0.0
    %4867 = vmatpush1.msra.mxu0 %v4166
    %4868 = vmatprep.subr.mxu0 0.0
    %4869 = vmatpush1.msra.mxu0 %v4167
    %4870 = vmatprep.subr.mxu0 0.0
    %4871 = vmatpush1.msra.mxu0 %v4168
    %4872 = vmatprep.subr.mxu0 0.0
    %4873 = vmatpush1.msra.mxu0 %v4169
    %4874 = vmatprep.subr.mxu0 0.0
    %4875 = vmatpush1.msra.mxu0 %v4170
    %4876 = vmatprep.subr.mxu0 0.0
    %4877 = vmatpush1.msra.mxu0 %v4171
    %4878 = vmatprep.subr.mxu0 0.0
    %4879 = vmatpush1.msra.mxu0 %v4172
    %4880 = vmatprep.subr.mxu0 0.0
    %4881 = vmatpush1.msra.mxu0 %v4173
    %4882 = vmatprep.subr.mxu0 0.0
    %4883 = vmatpush1.msra.mxu0 %v4174
    %4884 = vmatprep.subr.mxu0 0.0
    %4885 = vmatpush1.msra.mxu0 %v4175
    %4886 = vmatprep.subr.mxu0 0.0
    %4887 = vmatpush1.msra.mxu0 %v4176
    %4888 = vmatprep.subr.mxu0 0.0
    %4889 = vmatpush1.msra.mxu0 %v4177
    %4890 = vmatprep.subr.mxu0 0.0
    %4891 = vmatpush1.msra.mxu0 %v4178
    %4892 = vmatprep.subr.mxu0 0.0
    %4893 = vmatpush1.msra.mxu0 %v4179
    %4894 = vmatprep.subr.mxu0 0.0
    %4895 = vmatpush1.msra.mxu0 %v4180
    %4896 = vmatprep.subr.mxu0 0.0
    %4897 = vmatpush1.msra.mxu0 %v4181
    %4898 = vmatprep.subr.mxu0 0.0
    %4899 = vmatpush1.msra.mxu0 %v4182
    %4900 = vmatprep.subr.mxu0 0.0
    %4901 = vmatpush1.msra.mxu0 %v4183
    %4902 = vmatprep.subr.mxu0 0.0
    %4903 = vmatpush1.msra.mxu0 %v4184
    %4904 = vmatprep.subr.mxu0 0.0
    %4905 = vmatpush1.msra.mxu0 %v4185
    %4906 = vmatprep.subr.mxu0 0.0
    %4907 = vmatpush1.msra.mxu0 %v4186
    %4908 = vmatprep.subr.mxu0 0.0
    %4909 = vmatpush1.msra.mxu0 %v4187
    %4910 = vmatprep.subr.mxu0 0.0
    %4911 = vmatpush1.msra.mxu0 %v4188
    %4912 = vmatprep.subr.mxu0 0.0
    %4913 = vmatpush1.msra.mxu0 %v4189
    %4914 = vmatprep.subr.mxu0 0.0
    %4915 = vmatpush1.msra.mxu0 %v4190
    %4916 = vmatprep.subr.mxu0 0.0
    %4917 = vmatpush1.msra.mxu0 %v4191
    %4918 = vmatprep.subr.mxu0 0.0
    %4919 = vmatpush1.msra.mxu0 %v4192
    %4920 = vmatprep.subr.mxu0 0.0
    %4921 = vmatpush1.msra.mxu0 %v4193
    %4922 = vmatprep.subr.mxu0 0.0
    %4923 = vmatpush1.msra.mxu0 %v4194
    %4924 = vmatprep.subr.mxu0 0.0
    %4925 = vmatpush1.msra.mxu0 %v4195
    %4926 = vmatprep.mubr.f32.mxu0 %v4283
    %4927 = vmatmul.mubr.f32.gmra.mrb[0].mxu0 %v4282
    %v4928 = vpop.f32.mrb[0].mxu0
    %v4929 = vadd.f32 %v4859, %v4928
    %v4930 = vpop.f32.mrb[0].mxu0
    %4931 = vdwg.mxu0
    %v4932 = vmax.f32 %v4929, 0.0
    %v4933 = vld [vmem:[%s7] sm:$0xff]
    %v4934 = vld [vmem:[%s7 + $0x8] sm:$0xff]
    %v4935 = vld [vmem:[%s7 + $0x10] sm:$0xff]
    %v4936 = vld [vmem:[%s7 + $0x18] sm:$0xff]
    %v4937 = vld [vmem:[%s7 + $0x20] sm:$0xff]
    %v4938 = vld [vmem:[%s7 + $0x28] sm:$0xff]
    %v4939 = vld [vmem:[%s7 + $0x30] sm:$0xff]
    %v4940 = vld [vmem:[%s7 + $0x38] sm:$0xff]
    %v4941 = vld [vmem:[%s7 + $0x40] sm:$0xff]
    %v4942 = vld [vmem:[%s7 + $0x48] sm:$0xff]
    %v4943 = vld [vmem:[%s7 + $0x50] sm:$0xff]
    %v4944 = vld [vmem:[%s7 + $0x58] sm:$0xff]
    %v4945 = vld [vmem:[%s7 + $0x60] sm:$0xff]
    %v4946 = vld [vmem:[%s7 + $0x68] sm:$0xff]
    %v4947 = vld [vmem:[%s7 + $0x70] sm:$0xff]
    %v4948 = vld [vmem:[%s7 + $0x78] sm:$0xff]
    %v4949 = vld [vmem:[%s8] sm:$0x1]
    %v4951 = vlaneseq
    %v4952 = vshrl.u32 %v4951, 7
    %v4953 = vsub.s32 0, %v4952
    %v4954 = vrot.slane %v4949, %v4953
    %4956 = vmatprep.subr.mxu0 0.0
    %4957 = vmatpush1.msra.mxu0 %v4933
    %4958 = vmatprep.subr.mxu0 0.0
    %4959 = vmatpush1.msra.mxu0 %v4934
    %4960 = vmatprep.subr.mxu0 0.0
    %4961 = vmatpush1.msra.mxu0 %v4935
    %4962 = vmatprep.subr.mxu0 0.0
    %4963 = vmatpush1.msra.mxu0 %v4936
    %4964 = vmatprep.subr.mxu0 0.0
    %4965 = vmatpush1.msra.mxu0 %v4937
    %4966 = vmatprep.subr.mxu0 0.0
    %4967 = vmatpush1.msra.mxu0 %v4938
    %4968 = vmatprep.subr.mxu0 0.0
    %4969 = vmatpush1.msra.mxu0 %v4939
    %4970 = vmatprep.subr.mxu0 0.0
    %4971 = vmatpush1.msra.mxu0 %v4940
    %4972 = vmatprep.subr.mxu0 0.0
    %4973 = vmatpush1.msra.mxu0 %v4941
    %4974 = vmatprep.subr.mxu0 0.0
    %4975 = vmatpush1.msra.mxu0 %v4942
    %4976 = vmatprep.subr.mxu0 0.0
    %4977 = vmatpush1.msra.mxu0 %v4943
    %4978 = vmatprep.subr.mxu0 0.0
    %4979 = vmatpush1.msra.mxu0 %v4944
    %4980 = vmatprep.subr.mxu0 0.0
    %4981 = vmatpush1.msra.mxu0 %v4945
    %4982 = vmatprep.subr.mxu0 0.0
    %4983 = vmatpush1.msra.mxu0 %v4946
    %4984 = vmatprep.subr.mxu0 0.0
    %4985 = vmatpush1.msra.mxu0 %v4947
    %4986 = vmatprep.subr.mxu0 0.0
    %4987 = vmatpush1.msra.mxu0 %v4948
    %4988 = vmatprep.subr.mxu0 0.0
    %4989 = vmatpush1.msra.mxu0 0.0
    %4990 = vmatprep.subr.mxu0 0.0
    %4991 = vmatpush1.msra.mxu0 0.0
    %4992 = vmatprep.subr.mxu0 0.0
    %4993 = vmatpush1.msra.mxu0 0.0
    %4994 = vmatprep.subr.mxu0 0.0
    %4995 = vmatpush1.msra.mxu0 0.0
    %4996 = vmatprep.subr.mxu0 0.0
    %4997 = vmatpush1.msra.mxu0 0.0
    %4998 = vmatprep.subr.mxu0 0.0
    %4999 = vmatpush1.msra.mxu0 0.0
    %5000 = vmatprep.subr.mxu0 0.0
    %5001 = vmatpush1.msra.mxu0 0.0
    %5002 = vmatprep.subr.mxu0 0.0
    %5003 = vmatpush1.msra.mxu0 0.0
    %5004 = vmatprep.subr.mxu0 0.0
    %5005 = vmatpush1.msra.mxu0 0.0
    %5006 = vmatprep.subr.mxu0 0.0
    %5007 = vmatpush1.msra.mxu0 0.0
    %5008 = vmatprep.subr.mxu0 0.0
    %5009 = vmatpush1.msra.mxu0 0.0
    %5010 = vmatprep.subr.mxu0 0.0
    %5011 = vmatpush1.msra.mxu0 0.0
    %5012 = vmatprep.subr.mxu0 0.0
    %5013 = vmatpush1.msra.mxu0 0.0
    %5014 = vmatprep.subr.mxu0 0.0
    %5015 = vmatpush1.msra.mxu0 0.0
    %5016 = vmatprep.subr.mxu0 0.0
    %5017 = vmatpush1.msra.mxu0 0.0
    %5018 = vmatprep.subr.mxu0 0.0
    %5019 = vmatpush1.msra.mxu0 0.0
    %5020 = vmatprep.mubr.f32.mxu0 0.0
    %5021 = vmatmul.mubr.f32.gmra.mrb[0].mxu0 %v4932
    %v5022 = vpop.f32.mrb[0].mxu0
    %v5023 = vadd.f32 %v4954, %v5022
    %v5024 = vpop.f32.mrb[0].mxu0
    %5025 = vdwg.mxu0
    %5026 = vst [vmem:[#allocation5] sm:$0x3] %v5023
    // Predicated region
    $region38: #{simple_cnn_forward.1} parent=1 // pred_check
      _
    $region39: #{simple_cnn_forward.1} parent=1 // pred_check_branch
      %5028 = sbr.rel (0) target = $region41
    $region40: #{simple_cnn_forward.1} parent=1 // pred_region
      %s5030 = ssub.s32 32, 32
      %5031 = vsyncadd [#allocation6], %s5030
      %s5033 = sshll.u32 [#allocation5], 4
      %s5034 = int_to_ptr.vmem [resolvable:$true] %s5033
      %5036 = dma.vmem_to_hbm [thread:$0]  %s5034, 32, %s9, [#allocation6]
    $region41: #{simple_cnn_forward.1} parent=1 // pred_fallthru
      _
    // Predicated region
    $region42: #{simple_cnn_forward.1} parent=1 // pred_check
      _
    $region43: #{simple_cnn_forward.1} parent=1 // pred_check_branch
      %5038 = sbr.rel (0) target = $region45
    $region44: #{simple_cnn_forward.1} parent=1 // pred_region
      %5039 = dma.done [#allocation6], 32
    $region45: #{simple_cnn_forward.1} parent=1 // pred_fallthru
      _
    %5040 = vsyncpa [#allocation6], 1

</llo_original>
